<compile_context>
chip_gen: v6e
topology: v6e:2x2x1
jax: 0.10.0
libtpu: 0.0.40
codegen_flags: <defaults>
</compile_context>

<pallas_src>
import numpy as np
import jax
import jax.numpy as jnp
from jax import lax
from jax.experimental import pallas as pl
from jax.experimental.pallas import tpu as pltpu

STEP_SIZE = 0.02  # odeint(..., method='euler', options=dict(step_size=0.02))


# ----------------------------------- kernel -----------------------------------

def _make_kernel(mode, T, T_CHUNK, substeps, W, HW, R, HROWS):
    """Kernel body.  State layout inside: (R, HW) with R = B_TILE*G*C rows and
    the flattened H*W spatial dim on the lane axis."""

    def kernel(*refs):
        if mode is None:
            nu_ref, init_ref, out_ref, state_ref = refs
        else:
            w1_ref, b1_ref, w2_ref, b2_ref, init_ref, out_ref, state_ref = refs

        chunk = pl.program_id(1)          # time-chunk index (innermost, "arbitrary")

        # ---- loop-invariant constants, hoisted once per grid step ----
        lane = lax.broadcasted_iota(jnp.int32, (R, HW), 1) % W
        first_col = lane == 0
        last_col = lane == (W - 1)

        def _roll(x, s):
            # Circular rotate along the flattened H*W lane axis (XLU rotate).
            return pltpu.roll(x, s % HW, x.ndim - 1)

        def _shift(x, sy, sx):
            # Gather shift: out[.., y, w] = x[.., (y+sy) % H, (w+sx) % W] on the
            # flattened (rows, H*W) layout.  H-wrap is exact under the flat
            # mod-HW roll; the W-wrap column is patched with a second roll.
            g = sy * W + sx
            if sx == 0:
                return x if g == 0 else _roll(x, -g)
            if sx == 1:
                return jnp.where(last_col, _roll(x, -(g - W)), _roll(x, -g))
            return jnp.where(first_col, _roll(x, -(g + W)), _roll(x, -g))

        if mode is None:
            nu_dt = nu_ref[0, 0]          # dt * nu, read once from SMEM

            def d_state(s):
                lap = (_shift(s, 1, 0) + _shift(s, -1, 0)
                       + _shift(s, 0, 1) + _shift(s, 0, -1) - 4.0 * s)
                return nu_dt * lap
        else:
            w1 = w1_ref[...]                                    # (HROWS+R, 9R)
            w2 = w2_ref[...]                                    # (9R, HROWS), dt folded
            # Hoisted bias broadcasts (JAX does not CSE broadcast_in_dim).
            b1b = jnp.broadcast_to(b1_ref[...], (HROWS, HW))
            b2b = jnp.broadcast_to(b2_ref[...], (R, HW))        # dt folded

            def d_state(s):
                # conv1 + fused nu*dt*Laplacian: roll the (few) input channels,
                # stack the 9 taps (R=8-row aligned pieces) and do ONE matmul.
                cols = {0: s,
                        1: jnp.where(last_col, _roll(s, W - 1), _roll(s, -1)),
                        -1: jnp.where(first_col, _roll(s, 1 - W), _roll(s, 1))}
                taps = []
                for dy in range(3):
                    sy = dy - 1
                    for dx in range(3):
                        base = cols[dx - 1]
                        taps.append(base if sy == 0 else _roll(base, -sy * W))
                stacked = jnp.concatenate(taps, axis=0)          # (9R, HW)
                y1 = jnp.dot(w1, stacked, preferred_element_type=jnp.float32)
                lap_dt = y1[HROWS:, :]                           # nu*dt*Laplacian rows
                h = jnp.tanh(y1[:HROWS, :] + b1b)                # (HROWS, HW)

                # conv2: roll the (few) OUTPUT channels instead of the hidden
                # inputs -> one matmul + 9 small R-row rotations.
                y2 = jnp.dot(w2, h, preferred_element_type=jnp.float32)  # (9R, HW)
                acc = b2b
                for k in range(9):
                    dy, dx = divmod(k, 3)
                    acc = acc + _shift(y2[k * R:(k + 1) * R, :], dy - 1, dx - 1)
                return lap_dt + acc                              # dt * d(state)/dt

        def advance(s):
            # dt is already folded into nu_dt / w1(lap rows) / w2 / b2.
            if substeps == 1:
                return s + d_state(s)
            return lax.fori_loop(0, substeps, lambda _, x: x + d_state(x), s,
                                 unroll=True if substeps <= 8 else 2)

        def time_body(t_local, carry):
            t_global = chunk * T_CHUNK + t_local

            @pl.when(t_global == 0)
            def _():
                state_ref[...] = init_ref[...]      # solution[t[0]] = init_value

            @pl.when(jnp.logical_and(t_global > 0, t_global < T))
            def _():
                state_ref[...] = advance(state_ref[...])

            out_ref[t_local] = state_ref[...]
            return carry

        lax.fori_loop(0, T_CHUNK, time_body, 0,
                      unroll=(T_CHUNK * substeps) <= 8)

    return kernel


# --------------------------- host-side weight folding --------------------------

def _build_fused_weights(params, GC, B_TILE):
    """Build the fused, dt/nu-folded, batch-block-diagonal matmul weights."""
    hidden = int(np.shape(params["w1"])[0])
    R = B_TILE * GC
    HROWS = B_TILE * hidden
    nu_dt = STEP_SIZE * float(params["nu"])

    w1 = np.asarray(params["w1"], np.float32).reshape(hidden, GC, 3, 3)
    b1 = np.asarray(params["b1"], np.float32).reshape(hidden)
    w2 = np.asarray(params["w2"], np.float32).reshape(GC, hidden, 3, 3)
    b2 = np.asarray(params["b2"], np.float32).reshape(GC)

    stencil = np.array([[0., 1., 0.], [1., -4., 1.], [0., 1., 0.]], np.float32)
    eye = np.eye(GC, dtype=np.float32)

    # conv1 (+ fused Laplacian rows): (HROWS + R, 9*R) @ (9*R, HW)
    w1_big = np.zeros((HROWS + R, 9 * R), np.float32)
    # conv2 (dt folded), laid out for "roll the outputs": (9*R, HROWS) @ (HROWS, HW)
    w2_big = np.zeros((9 * R, HROWS), np.float32)
    for bt in range(B_TILE):
        for k in range(9):
            dy, dx = divmod(k, 3)
            w1_big[bt * hidden:(bt + 1) * hidden,
                   k * R + bt * GC:k * R + (bt + 1) * GC] = w1[:, :, dy, dx]
            w1_big[HROWS + bt * GC:HROWS + (bt + 1) * GC,
                   k * R + bt * GC:k * R + (bt + 1) * GC] = nu_dt * stencil[dy, dx] * eye
            w2_big[k * R + bt * GC:k * R + (bt + 1) * GC,
                   bt * hidden:(bt + 1) * hidden] = STEP_SIZE * w2[:, :, dy, dx]

    b1_big = np.tile(b1, B_TILE).reshape(HROWS, 1).astype(np.float32)
    b2_big = (STEP_SIZE * np.tile(b2, B_TILE)).reshape(R, 1).astype(np.float32)
    return w1_big, b1_big, w2_big, b2_big, HROWS


# --------------------------------- wrapper -------------------------------------

def semi_parametric_forward(init_value, t, params, mode="semi"):
    """Equivalent of SemiParametericModel.forward(init_value, t).

    init_value: (B, G, C, H, W) float32
    t:          (T,) times, uniformly spaced on the 0.02 Euler step grid
    params:     {"nu": float} plus, if mode is not None,
                {"w1": (hidden, G*C, 3, 3), "b1": (hidden,),
                 "w2": (G*C, hidden, 3, 3), "b2": (G*C,)}
    returns:    (B, T, G, C, H, W) float32  (already permuted like the module)
    """
    B, G, C, H, W = init_value.shape
    GC, HW = G * C, H * W

    t_np = np.asarray(t, dtype=np.float64)
    T = int(t_np.shape[0])
    if T > 1:
        dts = np.diff(t_np)
        substeps = int(round(float(np.mean(dts)) / STEP_SIZE))
        if substeps < 1 or not np.allclose(dts, substeps * STEP_SIZE, rtol=0.0, atol=1e-6):
            # TODO(synk): torchdiffeq linearly interpolates off-grid output times;
            # only uniformly spaced, grid-aligned t is supported here.
            raise ValueError("t must be uniformly spaced on the 0.02 Euler step grid")
    else:
        substeps = 1   # single output time: only the t==0 copy runs

    # --- batch folding onto the sublane/channel axis (fills the (8,128) tile) ---
    B_TILE = max(1, 8 // GC) if GC < 8 else 1
    B_TILE = min(B_TILE, B)
    if B % B_TILE != 0:
        B_TILE = 1
    NB = B // B_TILE
    R = B_TILE * GC

    # --- time chunking: one output block covers T_CHUNK timesteps ---
    T_CHUNK = max(1, min(T, 64, (2 << 20) // max(1, R * HW * 4)))
    NC = -(-T // T_CHUNK)

    x = jnp.asarray(init_value, jnp.float32).reshape(NB, R, HW)

    operands = []
    in_specs = []
    if mode is None:
        # Scalar nu*dt through SMEM (no padded VMEM tile / lane extract).
        nu_dt = jnp.full((1, 1), STEP_SIZE * float(params["nu"]), dtype=jnp.float32)
        operands.append(nu_dt)
        in_specs.append(pl.BlockSpec(memory_space=pltpu.MemorySpace.SMEM))
        HROWS = 0
    else:
        w1_big, b1_big, w2_big, b2_big, HROWS = _build_fused_weights(params, GC, B_TILE)
        for a in (w1_big, b1_big, w2_big, b2_big):
            operands.append(jnp.asarray(a))
            in_specs.append(pl.BlockSpec(tuple(int(s) for s in a.shape),
                                         lambda b, i: (0, 0)))

    operands.append(x)
    in_specs.append(pl.BlockSpec((None, R, HW), lambda b, i: (b, 0, 0)))

    kernel = _make_kernel(mode, T, T_CHUNK, substeps, W, HW, R, HROWS)

    out = pl.pallas_call(
        kernel,
        out_shape=jax.ShapeDtypeStruct((NB, T, R, HW), jnp.float32),
        grid_spec=pltpu.PrefetchScalarGridSpec(
            num_scalar_prefetch=0,
            # Batch blocks are embarrassingly parallel (megacore); the time-chunk
            # axis is sequential & innermost so the VMEM state scratch carries.
            grid=(NB, NC),
            in_specs=in_specs,
            # Lane-dense output block covering T_CHUNK timesteps -> few, large,
            # unmasked HBM writebacks instead of one tiny one per timestep.
            out_specs=pl.BlockSpec((None, T_CHUNK, R, HW), lambda b, i: (b, i, 0, 0)),
            scratch_shapes=[pltpu.VMEM((R, HW), jnp.float32)],
        ),
        compiler_params=pltpu.CompilerParams(
            dimension_semantics=("parallel", "arbitrary"),
        ),
    )(*operands)

    # Layout plumbing back to the module's (B, T, G, C, H, W) output.
    out = out.reshape(NB, T, B_TILE, GC, HW)
    out = jnp.transpose(out, (0, 2, 1, 3, 4))
    return out.reshape(B, T, G, C, H, W)


# ------------------------------ pure-JAX reference ----------------------------

def _reference_forward(init_value, t, params, mode):
    B, G, C, H, W = init_value.shape
    t_np = np.asarray(t, dtype=np.float64)
    T = int(t_np.shape[0])
    substeps = 1 if T == 1 else int(round(float(t_np[1] - t_np[0]) / STEP_SIZE))
    s = jnp.asarray(init_value, jnp.float32).reshape(B, G * C, H, W)

    def lap(u):
        return (jnp.roll(u, 1, 2) + jnp.roll(u, -1, 2)
                + jnp.roll(u, 1, 3) + jnp.roll(u, -1, 3) - 4.0 * u)

    def conv(u, w, b):
        up = jnp.pad(u, ((0, 0), (0, 0), (1, 1), (1, 1)), mode="wrap")
        out = lax.conv_general_dilated(
            up, jnp.asarray(w, jnp.float32), (1, 1), "VALID",
            dimension_numbers=("NCHW", "OIHW", "NCHW"))
        return out + jnp.asarray(b, jnp.float32)[None, :, None, None]

    def deriv(u):
        para = jnp.float32(params["nu"]) * lap(u)
        if mode is None:
            return para
        h = jnp.tanh(conv(u, params["w1"], params["b1"]))
        return para + conv(h, params["w2"], params["b2"])

    sols = [s]
    for _ in range(T - 1):
        for _ in range(substeps):
            s = s + jnp.float32(STEP_SIZE) * deriv(s)
        sols.append(s)
    out = jnp.stack(sols, axis=0)                 # [T, B, GC, H, W]
    out = jnp.transpose(out, (1, 0, 2, 3, 4))     # permute(1, 0, ...)
    return out.reshape(B, T, G, C, H, W)


# ------------------------------------- main ------------------------------------

if __name__ == "__main__":
    B, G, C, H, W = 2, 2, 2, 16, 16
    hidden = 32
    GC = G * C
    Tpts = 8

    key = jax.random.PRNGKey(0)
    k_init, k_w1, k_b1, k_w2, k_b2 = jax.random.split(key, 5)
    params = {
        "nu": 0.05,
        "w1": np.asarray(0.1 * jax.random.normal(k_w1, (hidden, GC, 3, 3), jnp.float32)),
        "b1": np.asarray(0.01 * jax.random.normal(k_b1, (hidden,), jnp.float32)),
        "w2": np.asarray(0.1 * jax.random.normal(k_w2, (GC, hidden, 3, 3), jnp.float32)),
        "b2": np.asarray(0.01 * jax.random.normal(k_b2, (GC,), jnp.float32)),
    }

    init_value = jax.random.normal(k_init, (B, G, C, H, W), jnp.float32)
    t = jnp.arange(Tpts, dtype=jnp.float32) * STEP_SIZE

    # semi-parametric mode (para + nonpara derivative)
    out = semi_parametric_forward(init_value, t, params, mode="semi")
    out = jax.block_until_ready(out)
    assert out.shape == (B, Tpts, G, C, H, W), out.shape
    ref = jax.block_until_ready(_reference_forward(init_value, t, params, "semi"))
    np.testing.assert_allclose(np.asarray(out), np.asarray(ref), rtol=1e-3, atol=1e-3)

    # purely parametric mode (mode=None path of DerivationCombineModel)
    out_p = jax.block_until_ready(
        semi_parametric_forward(init_value, t, {"nu": params["nu"]}, mode=None))
    ref_p = jax.block_until_ready(_reference_forward(init_value, t, params, None))
    np.testing.assert_allclose(np.asarray(out_p), np.asarray(ref_p), rtol=1e-3, atol=1e-3)

    print("KERNEL_OK")
</pallas_src>

<mosaic_0001>
module attributes {stable_mosaic.version = 11 : i64} {
  func.func @kernel(%arg0: i32, %arg1: i32, %arg2: memref<72x72xf32, #tpu.memory_space<vmem>>, %arg3: memref<64x1xf32, #tpu.memory_space<vmem>>, %arg4: memref<72x64xf32, #tpu.memory_space<vmem>>, %arg5: memref<8x1xf32, #tpu.memory_space<vmem>>, %arg6: memref<1x8x256xf32, #tpu.memory_space<vmem>>, %arg7: memref<1x8x8x256xf32, #tpu.memory_space<vmem>>, %arg8: memref<8x256xf32, #tpu.memory_space<vmem>>) attributes {dimension_semantics = [#tpu.dimension_semantics<parallel>, #tpu.dimension_semantics<arbitrary>], iteration_bounds = array<i64: 1, 1>, scalar_prefetch = 0 : i64, scratch_operands = 1 : i64, tpu.core_type = #tpu.core_type<tc>, window_params = [{pipeline_mode = #tpu.pipeline_mode<synchronous>, transform_indices = @transform_0, window_bounds = array<i64: 72, 72>}, {pipeline_mode = #tpu.pipeline_mode<synchronous>, transform_indices = @transform_1, window_bounds = array<i64: 64, 1>}, {pipeline_mode = #tpu.pipeline_mode<synchronous>, transform_indices = @transform_2, window_bounds = array<i64: 72, 64>}, {pipeline_mode = #tpu.pipeline_mode<synchronous>, transform_indices = @transform_3, window_bounds = array<i64: 8, 1>}, {transform_indices = @transform_4, window_bounds = array<i64: 1, 8, 256>}, {transform_indices = @transform_5, window_bounds = array<i64: 1, 8, 8, 256>}]} {
    %0 = tpu.iota {dimensions = array<i32: 1>} : vector<8x256xi32>
    %c16_i32 = arith.constant 16 : i32
    %c0_i32 = arith.constant 0 : i32
    %1 = arith.cmpi eq, %c16_i32, %c0_i32 : i32
    %c1_i32 = arith.constant 1 : i32
    %2 = arith.select %1, %c1_i32, %c16_i32 : i32
    %3 = vector.broadcast %2 : i32 to vector<8x256xi32>
    %4 = arith.remsi %0, %3 : vector<8x256xi32>
    %c0_i32_0 = arith.constant 0 : i32
    %5 = vector.broadcast %c0_i32_0 : i32 to vector<8x256xi32>
    %6 = arith.cmpi ne, %4, %5 : vector<8x256xi32>
    %c0_i32_1 = arith.constant 0 : i32
    %7 = vector.broadcast %c0_i32_1 : i32 to vector<8x256xi32>
    %8 = arith.cmpi slt, %4, %7 : vector<8x256xi32>
    %c0_i32_2 = arith.constant 0 : i32
    %9 = arith.cmpi slt, %2, %c0_i32_2 : i32
    %10 = vector.broadcast %9 : i1 to vector<8x256xi1>
    %11 = vector.broadcast %10 : vector<8x256xi1> to vector<8x256xi1>
    %12 = arith.xori %8, %11 : vector<8x256xi1>
    %13 = arith.andi %12, %6 : vector<8x256xi1>
    %14 = vector.broadcast %2 : i32 to vector<8x256xi32>
    %15 = arith.addi %4, %14 : vector<8x256xi32>
    %16 = arith.select %13, %15, %4 : vector<8x256xi1>, vector<8x256xi32>
    %c0_i32_3 = arith.constant 0 : i32
    %17 = vector.broadcast %c0_i32_3 : i32 to vector<8x256xi32>
    %18 = arith.cmpi eq, %16, %17 : vector<8x256xi32>
    %c15_i32 = arith.constant 15 : i32
    %19 = vector.broadcast %c15_i32 : i32 to vector<8x256xi32>
    %20 = arith.cmpi eq, %16, %19 : vector<8x256xi32>
    %c0 = arith.constant 0 : index
    %c0_4 = arith.constant 0 : index
    %21 = vector.load %arg2[%c0, %c0_4] : memref<72x72xf32, #tpu.memory_space<vmem>>, vector<72x72xf32>
    %c0_5 = arith.constant 0 : index
    %c0_6 = arith.constant 0 : index
    %22 = vector.load %arg4[%c0_5, %c0_6] : memref<72x64xf32, #tpu.memory_space<vmem>>, vector<72x64xf32>
    %c0_7 = arith.constant 0 : index
    %c0_8 = arith.constant 0 : index
    %23 = vector.load %arg3[%c0_7, %c0_8] : memref<64x1xf32, #tpu.memory_space<vmem>>, vector<64x1xf32>
    %24 = vector.shape_cast %23 : vector<64x1xf32> to vector<64x1xf32>
    %25 = vector.broadcast %24 : vector<64x1xf32> to vector<64x256xf32>
    %c0_9 = arith.constant 0 : index
    %c0_10 = arith.constant 0 : index
    %26 = vector.load %arg5[%c0_9, %c0_10] : memref<8x1xf32, #tpu.memory_space<vmem>>, vector<8x1xf32>
    %27 = vector.shape_cast %26 : vector<8x1xf32> to vector<8x1xf32>
    %28 = vector.broadcast %27 : vector<8x1xf32> to vector<8x256xf32>
    %c0_i32_11 = arith.constant 0 : i32
    %c8_i32 = arith.constant 8 : i32
    %29 = arith.muli %arg1, %c8_i32 : i32
    %30 = arith.addi %29, %c0_i32_11 : i32
    %c0_i32_12 = arith.constant 0 : i32
    %31 = arith.cmpi eq, %30, %c0_i32_12 : i32
    %32 = arith.extui %31 : i1 to i32
    %c0_i32_13 = arith.constant 0 : i32
    %33 = arith.cmpi ne, %32, %c0_i32_13 : i32
    scf.if %33 {
      %c0_101 = arith.constant 0 : index
      %c0_102 = arith.constant 0 : index
      %c0_103 = arith.constant 0 : index
      %149 = vector.load %arg6[%c0_101, %c0_102, %c0_103] : memref<1x8x256xf32, #tpu.memory_space<vmem>>, vector<1x8x256xf32>
      %150 = vector.shape_cast %149 : vector<1x8x256xf32> to vector<8x256xf32>
      %c0_104 = arith.constant 0 : index
      %c0_105 = arith.constant 0 : index
      %151 = vector.load %arg8[%c0_104, %c0_105] : memref<8x256xf32, #tpu.memory_space<vmem>>, vector<8x256xf32>
      tpu.vector_store %arg8[%c0_104, %c0_105], %150 {strides = array<i32>} : memref<8x256xf32, #tpu.memory_space<vmem>>, vector<8x256xf32>,
    } else {
    }
    %c0_i32_14 = arith.constant 0 : i32
    %34 = arith.cmpi sgt, %30, %c0_i32_14 : i32
    %c8_i32_15 = arith.constant 8 : i32
    %35 = arith.cmpi slt, %30, %c8_i32_15 : i32
    %36 = arith.andi %34, %35 : i1
    %37 = arith.extui %36 : i1 to i32
    %c0_i32_16 = arith.constant 0 : i32
    %38 = arith.cmpi ne, %37, %c0_i32_16 : i32
    scf.if %38 {
      %c0_101 = arith.constant 0 : index
      %c0_102 = arith.constant 0 : index
      %149 = vector.load %arg8[%c0_101, %c0_102] : memref<8x256xf32, #tpu.memory_space<vmem>>, vector<8x256xf32>
      %c15_i32_103 = arith.constant 15 : i32
      %150 = tpu.dynamic_rotate %149 by %c15_i32_103 dim 1 : vector<8x256xf32>, i32 -> vector<8x256xf32>
      %c255_i32 = arith.constant 255 : i32
      %151 = tpu.dynamic_rotate %149 by %c255_i32 dim 1 : vector<8x256xf32>, i32 -> vector<8x256xf32>
      %152 = arith.select %20, %150, %151 : vector<8x256xi1>, vector<8x256xf32>
      %c241_i32 = arith.constant 241 : i32
      %153 = tpu.dynamic_rotate %149 by %c241_i32 dim 1 : vector<8x256xf32>, i32 -> vector<8x256xf32>
      %c1_i32_104 = arith.constant 1 : i32
      %154 = tpu.dynamic_rotate %149 by %c1_i32_104 dim 1 : vector<8x256xf32>, i32 -> vector<8x256xf32>
      %155 = arith.select %18, %153, %154 : vector<8x256xi1>, vector<8x256xf32>
      %c16_i32_105 = arith.constant 16 : i32
      %156 = tpu.dynamic_rotate %155 by %c16_i32_105 dim 1 : vector<8x256xf32>, i32 -> vector<8x256xf32>
      %c16_i32_106 = arith.constant 16 : i32
      %157 = tpu.dynamic_rotate %149 by %c16_i32_106 dim 1 : vector<8x256xf32>, i32 -> vector<8x256xf32>
      %c16_i32_107 = arith.constant 16 : i32
      %158 = tpu.dynamic_rotate %152 by %c16_i32_107 dim 1 : vector<8x256xf32>, i32 -> vector<8x256xf32>
      %c240_i32 = arith.constant 240 : i32
      %159 = tpu.dynamic_rotate %155 by %c240_i32 dim 1 : vector<8x256xf32>, i32 -> vector<8x256xf32>
      %c240_i32_108 = arith.constant 240 : i32
      %160 = tpu.dynamic_rotate %149 by %c240_i32_108 dim 1 : vector<8x256xf32>, i32 -> vector<8x256xf32>
      %c240_i32_109 = arith.constant 240 : i32
      %161 = tpu.dynamic_rotate %152 by %c240_i32_109 dim 1 : vector<8x256xf32>, i32 -> vector<8x256xf32>
      %162 = tpu.concatenate %156, %157, %158, %155, %149, %152, %159, %160, %161 in 0 : vector<8x256xf32>, vector<8x256xf32>, vector<8x256xf32>, vector<8x256xf32>, vector<8x256xf32>, vector<8x256xf32>, vector<8x256xf32>, vector<8x256xf32>, vector<8x256xf32> -> vector<72x256xf32>
      %cst = arith.constant dense<0.000000e+00> : vector<72x256xf32>
      %163 = tpu.matmul %21, %162, %cst {dimension_numbers = #tpu.dot_dimension_numbers<[1], [0], [0], [1], [0, 0, 1, 1], [], []>} : vector<72x72xf32>, vector<72x256xf32>, vector<72x256xf32> -> vector<72x256xf32>
      %164 = vector.extract_strided_slice %163 {offsets = [64, 0], sizes = [8, 256], strides = [1, 1]} : vector<72x256xf32> to vector<8x256xf32>
      %165 = vector.extract_strided_slice %163 {offsets = [0, 0], sizes = [64, 256], strides = [1, 1]} : vector<72x256xf32> to vector<64x256xf32>
      %166 = arith.addf %165, %25 : vector<64x256xf32>
      %167 = math.tanh %166 : vector<64x256xf32>
      %cst_110 = arith.constant dense<0.000000e+00> : vector<72x256xf32>
      %168 = tpu.matmul %22, %167, %cst_110 {dimension_numbers = #tpu.dot_dimension_numbers<[1], [0], [0], [1], [0, 0, 1, 1], [], []>} : vector<72x64xf32>, vector<64x256xf32>, vector<72x256xf32> -> vector<72x256xf32>
      %169 = vector.extract_strided_slice %168 {offsets = [0, 0], sizes = [8, 256], strides = [1, 1]} : vector<72x256xf32> to vector<8x256xf32>
      %c1_i32_111 = arith.constant 1 : i32
      %170 = tpu.dynamic_rotate %169 by %c1_i32_111 dim 1 : vector<8x256xf32>, i32 -> vector<8x256xf32>
      %c17_i32 = arith.constant 17 : i32
      %171 = tpu.dynamic_rotate %169 by %c17_i32 dim 1 : vector<8x256xf32>, i32 -> vector<8x256xf32>
      %172 = arith.select %18, %170, %171 : vector<8x256xi1>, vector<8x256xf32>
      %173 = arith.addf %28, %172 : vector<8x256xf32>
      %174 = vector.extract_strided_slice %168 {offsets = [8, 0], sizes = [8, 256], strides = [1, 1]} : vector<72x256xf32> to vector<8x256xf32>
      %c16_i32_112 = arith.constant 16 : i32
      %175 = tpu.dynamic_rotate %174 by %c16_i32_112 dim 1 : vector<8x256xf32>, i32 -> vector<8x256xf32>
      %176 = arith.addf %173, %175 : vector<8x256xf32>
      %177 = vector.extract_strided_slice %168 {offsets = [16, 0], sizes = [8, 256], strides = [1, 1]} : vector<72x256xf32> to vector<8x256xf32>
      %c31_i32 = arith.constant 31 : i32
      %178 = tpu.dynamic_rotate %177 by %c31_i32 dim 1 : vector<8x256xf32>, i32 -> vector<8x256xf32>
      %c15_i32_113 = arith.constant 15 : i32
      %179 = tpu.dynamic_rotate %177 by %c15_i32_113 dim 1 : vector<8x256xf32>, i32 -> vector<8x256xf32>
      %180 = arith.select %20, %178, %179 : vector<8x256xi1>, vector<8x256xf32>
      %181 = arith.addf %176, %180 : vector<8x256xf32>
      %182 = vector.extract_strided_slice %168 {offsets = [24, 0], sizes = [8, 256], strides = [1, 1]} : vector<72x256xf32> to vector<8x256xf32>
      %c241_i32_114 = arith.constant 241 : i32
      %183 = tpu.dynamic_rotate %182 by %c241_i32_114 dim 1 : vector<8x256xf32>, i32 -> vector<8x256xf32>
      %c1_i32_115 = arith.constant 1 : i32
      %184 = tpu.dynamic_rotate %182 by %c1_i32_115 dim 1 : vector<8x256xf32>, i32 -> vector<8x256xf32>
      %185 = arith.select %18, %183, %184 : vector<8x256xi1>, vector<8x256xf32>
      %186 = arith.addf %181, %185 : vector<8x256xf32>
      %187 = vector.extract_strided_slice %168 {offsets = [32, 0], sizes = [8, 256], strides = [1, 1]} : vector<72x256xf32> to vector<8x256xf32>
      %188 = arith.addf %186, %187 : vector<8x256xf32>
      %189 = vector.extract_strided_slice %168 {offsets = [40, 0], sizes = [8, 256], strides = [1, 1]} : vector<72x256xf32> to vector<8x256xf32>
      %c15_i32_116 = arith.constant 15 : i32
      %190 = tpu.dynamic_rotate %189 by %c15_i32_116 dim 1 : vector<8x256xf32>, i32 -> vector<8x256xf32>
      %c255_i32_117 = arith.constant 255 : i32
      %191 = tpu.dynamic_rotate %189 by %c255_i32_117 dim 1 : vector<8x256xf32>, i32 -> vector<8x256xf32>
      %192 = arith.select %20, %190, %191 : vector<8x256xi1>, vector<8x256xf32>
      %193 = arith.addf %188, %192 : vector<8x256xf32>
      %194 = vector.extract_strided_slice %168 {offsets = [48, 0], sizes = [8, 256], strides = [1, 1]} : vector<72x256xf32> to vector<8x256xf32>
      %c225_i32 = arith.constant 225 : i32
      %195 = tpu.dynamic_rotate %194 by %c225_i32 dim 1 : vector<8x256xf32>, i32 -> vector<8x256xf32>
      %c241_i32_118 = arith.constant 241 : i32
      %196 = tpu.dynamic_rotate %194 by %c241_i32_118 dim 1 : vector<8x256xf32>, i32 -> vector<8x256xf32>
      %197 = arith.select %18, %195, %196 : vector<8x256xi1>, vector<8x256xf32>
      %198 = arith.addf %193, %197 : vector<8x256xf32>
      %199 = vector.extract_strided_slice %168 {offsets = [56, 0], sizes = [8, 256], strides = [1, 1]} : vector<72x256xf32> to vector<8x256xf32>
      %c240_i32_119 = arith.constant 240 : i32
      %200 = tpu.dynamic_rotate %199 by %c240_i32_119 dim 1 : vector<8x256xf32>, i32 -> vector<8x256xf32>
      %201 = arith.addf %198, %200 : vector<8x256xf32>
      %202 = vector.extract_strided_slice %168 {offsets = [64, 0], sizes = [8, 256], strides = [1, 1]} : vector<72x256xf32> to vector<8x256xf32>
      %c255_i32_120 = arith.constant 255 : i32
      %203 = tpu.dynamic_rotate %202 by %c255_i32_120 dim 1 : vector<8x256xf32>, i32 -> vector<8x256xf32>
      %c239_i32 = arith.constant 239 : i32
      %204 = tpu.dynamic_rotate %202 by %c239_i32 dim 1 : vector<8x256xf32>, i32 -> vector<8x256xf32>
      %205 = arith.select %20, %203, %204 : vector<8x256xi1>, vector<8x256xf32>
      %206 = arith.addf %201, %205 : vector<8x256xf32>
      %207 = arith.addf %164, %206 : vector<8x256xf32>
      %208 = arith.addf %149, %207 : vector<8x256xf32>
      %c0_121 = arith.constant 0 : index
      %c0_122 = arith.constant 0 : index
      %209 = vector.load %arg8[%c0_121, %c0_122] : memref<8x256xf32, #tpu.memory_space<vmem>>, vector<8x256xf32>
      tpu.vector_store %arg8[%c0_121, %c0_122], %208 {strides = array<i32>} : memref<8x256xf32, #tpu.memory_space<vmem>>, vector<8x256xf32>,
    } else {
    }
    %c0_17 = arith.constant 0 : index
    %c0_18 = arith.constant 0 : index
    %39 = vector.load %arg8[%c0_17, %c0_18] : memref<8x256xf32, #tpu.memory_space<vmem>>, vector<8x256xf32>
    %c0_19 = arith.constant 0 : index
    %40 = arith.index_cast %c0_i32_11 : i32 to index
    %c0_20 = arith.constant 0 : index
    %c0_21 = arith.constant 0 : index
    %41 = vector.load %arg7[%c0_19, %40, %c0_20, %c0_21] : memref<1x8x8x256xf32, #tpu.memory_space<vmem>>, vector<1x1x8x256xf32>
    %42 = vector.shape_cast %41 : vector<1x1x8x256xf32> to vector<8x256xf32>
    %43 = vector.shape_cast %39 : vector<8x256xf32> to vector<1x1x8x256xf32>
    tpu.vector_store %arg7[%c0_19, %40, %c0_20, %c0_21], %43 {strides = array<i32>} : memref<1x8x8x256xf32, #tpu.memory_space<vmem>>, vector<1x1x8x256xf32>,
    %c1_i32_22 = arith.constant 1 : i32
    %c8_i32_23 = arith.constant 8 : i32
    %44 = arith.muli %arg1, %c8_i32_23 : i32
    %45 = arith.addi %44, %c1_i32_22 : i32
    %c0_i32_24 = arith.constant 0 : i32
    %46 = arith.cmpi eq, %45, %c0_i32_24 : i32
    %47 = arith.extui %46 : i1 to i32
    %c0_i32_25 = arith.constant 0 : i32
    %48 = arith.cmpi ne, %47, %c0_i32_25 : i32
    scf.if %48 {
      %c0_101 = arith.constant 0 : index
      %c0_102 = arith.constant 0 : index
      %c0_103 = arith.constant 0 : index
      %149 = vector.load %arg6[%c0_101, %c0_102, %c0_103] : memref<1x8x256xf32, #tpu.memory_space<vmem>>, vector<1x8x256xf32>
      %150 = vector.shape_cast %149 : vector<1x8x256xf32> to vector<8x256xf32>
      %c0_104 = arith.constant 0 : index
      %c0_105 = arith.constant 0 : index
      %151 = vector.load %arg8[%c0_104, %c0_105] : memref<8x256xf32, #tpu.memory_space<vmem>>, vector<8x256xf32>
      tpu.vector_store %arg8[%c0_104, %c0_105], %150 {strides = array<i32>} : memref<8x256xf32, #tpu.memory_space<vmem>>, vector<8x256xf32>,
    } else {
    }
    %c0_i32_26 = arith.constant 0 : i32
    %49 = arith.cmpi sgt, %45, %c0_i32_26 : i32
    %c8_i32_27 = arith.constant 8 : i32
    %50 = arith.cmpi slt, %45, %c8_i32_27 : i32
    %51 = arith.andi %49, %50 : i1
    %52 = arith.extui %51 : i1 to i32
    %c0_i32_28 = arith.constant 0 : i32
    %53 = arith.cmpi ne, %52, %c0_i32_28 : i32
    scf.if %53 {
      %c0_101 = arith.constant 0 : index
      %c0_102 = arith.constant 0 : index
      %149 = vector.load %arg8[%c0_101, %c0_102] : memref<8x256xf32, #tpu.memory_space<vmem>>, vector<8x256xf32>
      %c15_i32_103 = arith.constant 15 : i32
      %150 = tpu.dynamic_rotate %149 by %c15_i32_103 dim 1 : vector<8x256xf32>, i32 -> vector<8x256xf32>
      %c255_i32 = arith.constant 255 : i32
      %151 = tpu.dynamic_rotate %149 by %c255_i32 dim 1 : vector<8x256xf32>, i32 -> vector<8x256xf32>
      %152 = arith.select %20, %150, %151 : vector<8x256xi1>, vector<8x256xf32>
      %c241_i32 = arith.constant 241 : i32
      %153 = tpu.dynamic_rotate %149 by %c241_i32 dim 1 : vector<8x256xf32>, i32 -> vector<8x256xf32>
      %c1_i32_104 = arith.constant 1 : i32
      %154 = tpu.dynamic_rotate %149 by %c1_i32_104 dim 1 : vector<8x256xf32>, i32 -> vector<8x256xf32>
      %155 = arith.select %18, %153, %154 : vector<8x256xi1>, vector<8x256xf32>
      %c16_i32_105 = arith.constant 16 : i32
      %156 = tpu.dynamic_rotate %155 by %c16_i32_105 dim 1 : vector<8x256xf32>, i32 -> vector<8x256xf32>
      %c16_i32_106 = arith.constant 16 : i32
      %157 = tpu.dynamic_rotate %149 by %c16_i32_106 dim 1 : vector<8x256xf32>, i32 -> vector<8x256xf32>
      %c16_i32_107 = arith.constant 16 : i32
      %158 = tpu.dynamic_rotate %152 by %c16_i32_107 dim 1 : vector<8x256xf32>, i32 -> vector<8x256xf32>
      %c240_i32 = arith.constant 240 : i32
      %159 = tpu.dynamic_rotate %155 by %c240_i32 dim 1 : vector<8x256xf32>, i32 -> vector<8x256xf32>
      %c240_i32_108 = arith.constant 240 : i32
      %160 = tpu.dynamic_rotate %149 by %c240_i32_108 dim 1 : vector<8x256xf32>, i32 -> vector<8x256xf32>
      %c240_i32_109 = arith.constant 240 : i32
      %161 = tpu.dynamic_rotate %152 by %c240_i32_109 dim 1 : vector<8x256xf32>, i32 -> vector<8x256xf32>
      %162 = tpu.concatenate %156, %157, %158, %155, %149, %152, %159, %160, %161 in 0 : vector<8x256xf32>, vector<8x256xf32>, vector<8x256xf32>, vector<8x256xf32>, vector<8x256xf32>, vector<8x256xf32>, vector<8x256xf32>, vector<8x256xf32>, vector<8x256xf32> -> vector<72x256xf32>
      %cst = arith.constant dense<0.000000e+00> : vector<72x256xf32>
      %163 = tpu.matmul %21, %162, %cst {dimension_numbers = #tpu.dot_dimension_numbers<[1], [0], [0], [1], [0, 0, 1, 1], [], []>} : vector<72x72xf32>, vector<72x256xf32>, vector<72x256xf32> -> vector<72x256xf32>
      %164 = vector.extract_strided_slice %163 {offsets = [64, 0], sizes = [8, 256], strides = [1, 1]} : vector<72x256xf32> to vector<8x256xf32>
      %165 = vector.extract_strided_slice %163 {offsets = [0, 0], sizes = [64, 256], strides = [1, 1]} : vector<72x256xf32> to vector<64x256xf32>
      %166 = arith.addf %165, %25 : vector<64x256xf32>
      %167 = math.tanh %166 : vector<64x256xf32>
      %cst_110 = arith.constant dense<0.000000e+00> : vector<72x256xf32>
      %168 = tpu.matmul %22, %167, %cst_110 {dimension_numbers = #tpu.dot_dimension_numbers<[1], [0], [0], [1], [0, 0, 1, 1], [], []>} : vector<72x64xf32>, vector<64x256xf32>, vector<72x256xf32> -> vector<72x256xf32>
      %169 = vector.extract_strided_slice %168 {offsets = [0, 0], sizes = [8, 256], strides = [1, 1]} : vector<72x256xf32> to vector<8x256xf32>
      %c1_i32_111 = arith.constant 1 : i32
      %170 = tpu.dynamic_rotate %169 by %c1_i32_111 dim 1 : vector<8x256xf32>, i32 -> vector<8x256xf32>
      %c17_i32 = arith.constant 17 : i32
      %171 = tpu.dynamic_rotate %169 by %c17_i32 dim 1 : vector<8x256xf32>, i32 -> vector<8x256xf32>
      %172 = arith.select %18, %170, %171 : vector<8x256xi1>, vector<8x256xf32>
      %173 = arith.addf %28, %172 : vector<8x256xf32>
      %174 = vector.extract_strided_slice %168 {offsets = [8, 0], sizes = [8, 256], strides = [1, 1]} : vector<72x256xf32> to vector<8x256xf32>
      %c16_i32_112 = arith.constant 16 : i32
      %175 = tpu.dynamic_rotate %174 by %c16_i32_112 dim 1 : vector<8x256xf32>, i32 -> vector<8x256xf32>
      %176 = arith.addf %173, %175 : vector<8x256xf32>
      %177 = vector.extract_strided_slice %168 {offsets = [16, 0], sizes = [8, 256], strides = [1, 1]} : vector<72x256xf32> to vector<8x256xf32>
      %c31_i32 = arith.constant 31 : i32
      %178 = tpu.dynamic_rotate %177 by %c31_i32 dim 1 : vector<8x256xf32>, i32 -> vector<8x256xf32>
      %c15_i32_113 = arith.constant 15 : i32
      %179 = tpu.dynamic_rotate %177 by %c15_i32_113 dim 1 : vector<8x256xf32>, i32 -> vector<8x256xf32>
      %180 = arith.select %20, %178, %179 : vector<8x256xi1>, vector<8x256xf32>
      %181 = arith.addf %176, %180 : vector<8x256xf32>
      %182 = vector.extract_strided_slice %168 {offsets = [24, 0], sizes = [8, 256], strides = [1, 1]} : vector<72x256xf32> to vector<8x256xf32>
      %c241_i32_114 = arith.constant 241 : i32
      %183 = tpu.dynamic_rotate %182 by %c241_i32_114 dim 1 : vector<8x256xf32>, i32 -> vector<8x256xf32>
      %c1_i32_115 = arith.constant 1 : i32
      %184 = tpu.dynamic_rotate %182 by %c1_i32_115 dim 1 : vector<8x256xf32>, i32 -> vector<8x256xf32>
      %185 = arith.select %18, %183, %184 : vector<8x256xi1>, vector<8x256xf32>
      %186 = arith.addf %181, %185 : vector<8x256xf32>
      %187 = vector.extract_strided_slice %168 {offsets = [32, 0], sizes = [8, 256], strides = [1, 1]} : vector<72x256xf32> to vector<8x256xf32>
      %188 = arith.addf %186, %187 : vector<8x256xf32>
      %189 = vector.extract_strided_slice %168 {offsets = [40, 0], sizes = [8, 256], strides = [1, 1]} : vector<72x256xf32> to vector<8x256xf32>
      %c15_i32_116 = arith.constant 15 : i32
      %190 = tpu.dynamic_rotate %189 by %c15_i32_116 dim 1 : vector<8x256xf32>, i32 -> vector<8x256xf32>
      %c255_i32_117 = arith.constant 255 : i32
      %191 = tpu.dynamic_rotate %189 by %c255_i32_117 dim 1 : vector<8x256xf32>, i32 -> vector<8x256xf32>
      %192 = arith.select %20, %190, %191 : vector<8x256xi1>, vector<8x256xf32>
      %193 = arith.addf %188, %192 : vector<8x256xf32>
      %194 = vector.extract_strided_slice %168 {offsets = [48, 0], sizes = [8, 256], strides = [1, 1]} : vector<72x256xf32> to vector<8x256xf32>
      %c225_i32 = arith.constant 225 : i32
      %195 = tpu.dynamic_rotate %194 by %c225_i32 dim 1 : vector<8x256xf32>, i32 -> vector<8x256xf32>
      %c241_i32_118 = arith.constant 241 : i32
      %196 = tpu.dynamic_rotate %194 by %c241_i32_118 dim 1 : vector<8x256xf32>, i32 -> vector<8x256xf32>
      %197 = arith.select %18, %195, %196 : vector<8x256xi1>, vector<8x256xf32>
      %198 = arith.addf %193, %197 : vector<8x256xf32>
      %199 = vector.extract_strided_slice %168 {offsets = [56, 0], sizes = [8, 256], strides = [1, 1]} : vector<72x256xf32> to vector<8x256xf32>
      %c240_i32_119 = arith.constant 240 : i32
      %200 = tpu.dynamic_rotate %199 by %c240_i32_119 dim 1 : vector<8x256xf32>, i32 -> vector<8x256xf32>
      %201 = arith.addf %198, %200 : vector<8x256xf32>
      %202 = vector.extract_strided_slice %168 {offsets = [64, 0], sizes = [8, 256], strides = [1, 1]} : vector<72x256xf32> to vector<8x256xf32>
      %c255_i32_120 = arith.constant 255 : i32
      %203 = tpu.dynamic_rotate %202 by %c255_i32_120 dim 1 : vector<8x256xf32>, i32 -> vector<8x256xf32>
      %c239_i32 = arith.constant 239 : i32
      %204 = tpu.dynamic_rotate %202 by %c239_i32 dim 1 : vector<8x256xf32>, i32 -> vector<8x256xf32>
      %205 = arith.select %20, %203, %204 : vector<8x256xi1>, vector<8x256xf32>
      %206 = arith.addf %201, %205 : vector<8x256xf32>
      %207 = arith.addf %164, %206 : vector<8x256xf32>
      %208 = arith.addf %149, %207 : vector<8x256xf32>
      %c0_121 = arith.constant 0 : index
      %c0_122 = arith.constant 0 : index
      %209 = vector.load %arg8[%c0_121, %c0_122] : memref<8x256xf32, #tpu.memory_space<vmem>>, vector<8x256xf32>
      tpu.vector_store %arg8[%c0_121, %c0_122], %208 {strides = array<i32>} : memref<8x256xf32, #tpu.memory_space<vmem>>, vector<8x256xf32>,
    } else {
    }
    %c0_29 = arith.constant 0 : index
    %c0_30 = arith.constant 0 : index
    %54 = vector.load %arg8[%c0_29, %c0_30] : memref<8x256xf32, #tpu.memory_space<vmem>>, vector<8x256xf32>
    %c0_31 = arith.constant 0 : index
    %55 = arith.index_cast %c1_i32_22 : i32 to index
    %c0_32 = arith.constant 0 : index
    %c0_33 = arith.constant 0 : index
    %56 = vector.load %arg7[%c0_31, %55, %c0_32, %c0_33] : memref<1x8x8x256xf32, #tpu.memory_space<vmem>>, vector<1x1x8x256xf32>
    %57 = vector.shape_cast %56 : vector<1x1x8x256xf32> to vector<8x256xf32>
    %58 = vector.shape_cast %54 : vector<8x256xf32> to vector<1x1x8x256xf32>
    tpu.vector_store %arg7[%c0_31, %55, %c0_32, %c0_33], %58 {strides = array<i32>} : memref<1x8x8x256xf32, #tpu.memory_space<vmem>>, vector<1x1x8x256xf32>,
    %c2_i32 = arith.constant 2 : i32
    %c8_i32_34 = arith.constant 8 : i32
    %59 = arith.muli %arg1, %c8_i32_34 : i32
    %60 = arith.addi %59, %c2_i32 : i32
    %c0_i32_35 = arith.constant 0 : i32
    %61 = arith.cmpi eq, %60, %c0_i32_35 : i32
    %62 = arith.extui %61 : i1 to i32
    %c0_i32_36 = arith.constant 0 : i32
    %63 = arith.cmpi ne, %62, %c0_i32_36 : i32
    scf.if %63 {
      %c0_101 = arith.constant 0 : index
      %c0_102 = arith.constant 0 : index
      %c0_103 = arith.constant 0 : index
      %149 = vector.load %arg6[%c0_101, %c0_102, %c0_103] : memref<1x8x256xf32, #tpu.memory_space<vmem>>, vector<1x8x256xf32>
      %150 = vector.shape_cast %149 : vector<1x8x256xf32> to vector<8x256xf32>
      %c0_104 = arith.constant 0 : index
      %c0_105 = arith.constant 0 : index
      %151 = vector.load %arg8[%c0_104, %c0_105] : memref<8x256xf32, #tpu.memory_space<vmem>>, vector<8x256xf32>
      tpu.vector_store %arg8[%c0_104, %c0_105], %150 {strides = array<i32>} : memref<8x256xf32, #tpu.memory_space<vmem>>, vector<8x256xf32>,
    } else {
    }
    %c0_i32_37 = arith.constant 0 : i32
    %64 = arith.cmpi sgt, %60, %c0_i32_37 : i32
    %c8_i32_38 = arith.constant 8 : i32
    %65 = arith.cmpi slt, %60, %c8_i32_38 : i32
    %66 = arith.andi %64, %65 : i1
    %67 = arith.extui %66 : i1 to i32
    %c0_i32_39 = arith.constant 0 : i32
    %68 = arith.cmpi ne, %67, %c0_i32_39 : i32
    scf.if %68 {
      %c0_101 = arith.constant 0 : index
      %c0_102 = arith.constant 0 : index
      %149 = vector.load %arg8[%c0_101, %c0_102] : memref<8x256xf32, #tpu.memory_space<vmem>>, vector<8x256xf32>
      %c15_i32_103 = arith.constant 15 : i32
      %150 = tpu.dynamic_rotate %149 by %c15_i32_103 dim 1 : vector<8x256xf32>, i32 -> vector<8x256xf32>
      %c255_i32 = arith.constant 255 : i32
      %151 = tpu.dynamic_rotate %149 by %c255_i32 dim 1 : vector<8x256xf32>, i32 -> vector<8x256xf32>
      %152 = arith.select %20, %150, %151 : vector<8x256xi1>, vector<8x256xf32>
      %c241_i32 = arith.constant 241 : i32
      %153 = tpu.dynamic_rotate %149 by %c241_i32 dim 1 : vector<8x256xf32>, i32 -> vector<8x256xf32>
      %c1_i32_104 = arith.constant 1 : i32
      %154 = tpu.dynamic_rotate %149 by %c1_i32_104 dim 1 : vector<8x256xf32>, i32 -> vector<8x256xf32>
      %155 = arith.select %18, %153, %154 : vector<8x256xi1>, vector<8x256xf32>
      %c16_i32_105 = arith.constant 16 : i32
      %156 = tpu.dynamic_rotate %155 by %c16_i32_105 dim 1 : vector<8x256xf32>, i32 -> vector<8x256xf32>
      %c16_i32_106 = arith.constant 16 : i32
      %157 = tpu.dynamic_rotate %149 by %c16_i32_106 dim 1 : vector<8x256xf32>, i32 -> vector<8x256xf32>
      %c16_i32_107 = arith.constant 16 : i32
      %158 = tpu.dynamic_rotate %152 by %c16_i32_107 dim 1 : vector<8x256xf32>, i32 -> vector<8x256xf32>
      %c240_i32 = arith.constant 240 : i32
      %159 = tpu.dynamic_rotate %155 by %c240_i32 dim 1 : vector<8x256xf32>, i32 -> vector<8x256xf32>
      %c240_i32_108 = arith.constant 240 : i32
      %160 = tpu.dynamic_rotate %149 by %c240_i32_108 dim 1 : vector<8x256xf32>, i32 -> vector<8x256xf32>
      %c240_i32_109 = arith.constant 240 : i32
      %161 = tpu.dynamic_rotate %152 by %c240_i32_109 dim 1 : vector<8x256xf32>, i32 -> vector<8x256xf32>
      %162 = tpu.concatenate %156, %157, %158, %155, %149, %152, %159, %160, %161 in 0 : vector<8x256xf32>, vector<8x256xf32>, vector<8x256xf32>, vector<8x256xf32>, vector<8x256xf32>, vector<8x256xf32>, vector<8x256xf32>, vector<8x256xf32>, vector<8x256xf32> -> vector<72x256xf32>
      %cst = arith.constant dense<0.000000e+00> : vector<72x256xf32>
      %163 = tpu.matmul %21, %162, %cst {dimension_numbers = #tpu.dot_dimension_numbers<[1], [0], [0], [1], [0, 0, 1, 1], [], []>} : vector<72x72xf32>, vector<72x256xf32>, vector<72x256xf32> -> vector<72x256xf32>
      %164 = vector.extract_strided_slice %163 {offsets = [64, 0], sizes = [8, 256], strides = [1, 1]} : vector<72x256xf32> to vector<8x256xf32>
      %165 = vector.extract_strided_slice %163 {offsets = [0, 0], sizes = [64, 256], strides = [1, 1]} : vector<72x256xf32> to vector<64x256xf32>
      %166 = arith.addf %165, %25 : vector<64x256xf32>
      %167 = math.tanh %166 : vector<64x256xf32>
      %cst_110 = arith.constant dense<0.000000e+00> : vector<72x256xf32>
      %168 = tpu.matmul %22, %167, %cst_110 {dimension_numbers = #tpu.dot_dimension_numbers<[1], [0], [0], [1], [0, 0, 1, 1], [], []>} : vector<72x64xf32>, vector<64x256xf32>, vector<72x256xf32> -> vector<72x256xf32>
      %169 = vector.extract_strided_slice %168 {offsets = [0, 0], sizes = [8, 256], strides = [1, 1]} : vector<72x256xf32> to vector<8x256xf32>
      %c1_i32_111 = arith.constant 1 : i32
      %170 = tpu.dynamic_rotate %169 by %c1_i32_111 dim 1 : vector<8x256xf32>, i32 -> vector<8x256xf32>
      %c17_i32 = arith.constant 17 : i32
      %171 = tpu.dynamic_rotate %169 by %c17_i32 dim 1 : vector<8x256xf32>, i32 -> vector<8x256xf32>
      %172 = arith.select %18, %170, %171 : vector<8x256xi1>, vector<8x256xf32>
      %173 = arith.addf %28, %172 : vector<8x256xf32>
      %174 = vector.extract_strided_slice %168 {offsets = [8, 0], sizes = [8, 256], strides = [1, 1]} : vector<72x256xf32> to vector<8x256xf32>
      %c16_i32_112 = arith.constant 16 : i32
      %175 = tpu.dynamic_rotate %174 by %c16_i32_112 dim 1 : vector<8x256xf32>, i32 -> vector<8x256xf32>
      %176 = arith.addf %173, %175 : vector<8x256xf32>
      %177 = vector.extract_strided_slice %168 {offsets = [16, 0], sizes = [8, 256], strides = [1, 1]} : vector<72x256xf32> to vector<8x256xf32>
      %c31_i32 = arith.constant 31 : i32
      %178 = tpu.dynamic_rotate %177 by %c31_i32 dim 1 : vector<8x256xf32>, i32 -> vector<8x256xf32>
      %c15_i32_113 = arith.constant 15 : i32
      %179 = tpu.dynamic_rotate %177 by %c15_i32_113 dim 1 : vector<8x256xf32>, i32 -> vector<8x256xf32>
      %180 = arith.select %20, %178, %179 : vector<8x256xi1>, vector<8x256xf32>
      %181 = arith.addf %176, %180 : vector<8x256xf32>
      %182 = vector.extract_strided_slice %168 {offsets = [24, 0], sizes = [8, 256], strides = [1, 1]} : vector<72x256xf32> to vector<8x256xf32>
      %c241_i32_114 = arith.constant 241 : i32
      %183 = tpu.dynamic_rotate %182 by %c241_i32_114 dim 1 : vector<8x256xf32>, i32 -> vector<8x256xf32>
      %c1_i32_115 = arith.constant 1 : i32
      %184 = tpu.dynamic_rotate %182 by %c1_i32_115 dim 1 : vector<8x256xf32>, i32 -> vector<8x256xf32>
      %185 = arith.select %18, %183, %184 : vector<8x256xi1>, vector<8x256xf32>
      %186 = arith.addf %181, %185 : vector<8x256xf32>
      %187 = vector.extract_strided_slice %168 {offsets = [32, 0], sizes = [8, 256], strides = [1, 1]} : vector<72x256xf32> to vector<8x256xf32>
      %188 = arith.addf %186, %187 : vector<8x256xf32>
      %189 = vector.extract_strided_slice %168 {offsets = [40, 0], sizes = [8, 256], strides = [1, 1]} : vector<72x256xf32> to vector<8x256xf32>
      %c15_i32_116 = arith.constant 15 : i32
      %190 = tpu.dynamic_rotate %189 by %c15_i32_116 dim 1 : vector<8x256xf32>, i32 -> vector<8x256xf32>
      %c255_i32_117 = arith.constant 255 : i32
      %191 = tpu.dynamic_rotate %189 by %c255_i32_117 dim 1 : vector<8x256xf32>, i32 -> vector<8x256xf32>
      %192 = arith.select %20, %190, %191 : vector<8x256xi1>, vector<8x256xf32>
      %193 = arith.addf %188, %192 : vector<8x256xf32>
      %194 = vector.extract_strided_slice %168 {offsets = [48, 0], sizes = [8, 256], strides = [1, 1]} : vector<72x256xf32> to vector<8x256xf32>
      %c225_i32 = arith.constant 225 : i32
      %195 = tpu.dynamic_rotate %194 by %c225_i32 dim 1 : vector<8x256xf32>, i32 -> vector<8x256xf32>
      %c241_i32_118 = arith.constant 241 : i32
      %196 = tpu.dynamic_rotate %194 by %c241_i32_118 dim 1 : vector<8x256xf32>, i32 -> vector<8x256xf32>
      %197 = arith.select %18, %195, %196 : vector<8x256xi1>, vector<8x256xf32>
      %198 = arith.addf %193, %197 : vector<8x256xf32>
      %199 = vector.extract_strided_slice %168 {offsets = [56, 0], sizes = [8, 256], strides = [1, 1]} : vector<72x256xf32> to vector<8x256xf32>
      %c240_i32_119 = arith.constant 240 : i32
      %200 = tpu.dynamic_rotate %199 by %c240_i32_119 dim 1 : vector<8x256xf32>, i32 -> vector<8x256xf32>
      %201 = arith.addf %198, %200 : vector<8x256xf32>
      %202 = vector.extract_strided_slice %168 {offsets = [64, 0], sizes = [8, 256], strides = [1, 1]} : vector<72x256xf32> to vector<8x256xf32>
      %c255_i32_120 = arith.constant 255 : i32
      %203 = tpu.dynamic_rotate %202 by %c255_i32_120 dim 1 : vector<8x256xf32>, i32 -> vector<8x256xf32>
      %c239_i32 = arith.constant 239 : i32
      %204 = tpu.dynamic_rotate %202 by %c239_i32 dim 1 : vector<8x256xf32>, i32 -> vector<8x256xf32>
      %205 = arith.select %20, %203, %204 : vector<8x256xi1>, vector<8x256xf32>
      %206 = arith.addf %201, %205 : vector<8x256xf32>
      %207 = arith.addf %164, %206 : vector<8x256xf32>
      %208 = arith.addf %149, %207 : vector<8x256xf32>
      %c0_121 = arith.constant 0 : index
      %c0_122 = arith.constant 0 : index
      %209 = vector.load %arg8[%c0_121, %c0_122] : memref<8x256xf32, #tpu.memory_space<vmem>>, vector<8x256xf32>
      tpu.vector_store %arg8[%c0_121, %c0_122], %208 {strides = array<i32>} : memref<8x256xf32, #tpu.memory_space<vmem>>, vector<8x256xf32>,
    } else {
    }
    %c0_40 = arith.constant 0 : index
    %c0_41 = arith.constant 0 : index
    %69 = vector.load %arg8[%c0_40, %c0_41] : memref<8x256xf32, #tpu.memory_space<vmem>>, vector<8x256xf32>
    %c0_42 = arith.constant 0 : index
    %70 = arith.index_cast %c2_i32 : i32 to index
    %c0_43 = arith.constant 0 : index
    %c0_44 = arith.constant 0 : index
    %71 = vector.load %arg7[%c0_42, %70, %c0_43, %c0_44] : memref<1x8x8x256xf32, #tpu.memory_space<vmem>>, vector<1x1x8x256xf32>
    %72 = vector.shape_cast %71 : vector<1x1x8x256xf32> to vector<8x256xf32>
    %73 = vector.shape_cast %69 : vector<8x256xf32> to vector<1x1x8x256xf32>
    tpu.vector_store %arg7[%c0_42, %70, %c0_43, %c0_44], %73 {strides = array<i32>} : memref<1x8x8x256xf32, #tpu.memory_space<vmem>>, vector<1x1x8x256xf32>,
    %c3_i32 = arith.constant 3 : i32
    %c8_i32_45 = arith.constant 8 : i32
    %74 = arith.muli %arg1, %c8_i32_45 : i32
    %75 = arith.addi %74, %c3_i32 : i32
    %c0_i32_46 = arith.constant 0 : i32
    %76 = arith.cmpi eq, %75, %c0_i32_46 : i32
    %77 = arith.extui %76 : i1 to i32
    %c0_i32_47 = arith.constant 0 : i32
    %78 = arith.cmpi ne, %77, %c0_i32_47 : i32
    scf.if %78 {
      %c0_101 = arith.constant 0 : index
      %c0_102 = arith.constant 0 : index
      %c0_103 = arith.constant 0 : index
      %149 = vector.load %arg6[%c0_101, %c0_102, %c0_103] : memref<1x8x256xf32, #tpu.memory_space<vmem>>, vector<1x8x256xf32>
      %150 = vector.shape_cast %149 : vector<1x8x256xf32> to vector<8x256xf32>
      %c0_104 = arith.constant 0 : index
      %c0_105 = arith.constant 0 : index
      %151 = vector.load %arg8[%c0_104, %c0_105] : memref<8x256xf32, #tpu.memory_space<vmem>>, vector<8x256xf32>
      tpu.vector_store %arg8[%c0_104, %c0_105], %150 {strides = array<i32>} : memref<8x256xf32, #tpu.memory_space<vmem>>, vector<8x256xf32>,
    } else {
    }
    %c0_i32_48 = arith.constant 0 : i32
    %79 = arith.cmpi sgt, %75, %c0_i32_48 : i32
    %c8_i32_49 = arith.constant 8 : i32
    %80 = arith.cmpi slt, %75, %c8_i32_49 : i32
    %81 = arith.andi %79, %80 : i1
    %82 = arith.extui %81 : i1 to i32
    %c0_i32_50 = arith.constant 0 : i32
    %83 = arith.cmpi ne, %82, %c0_i32_50 : i32
    scf.if %83 {
      %c0_101 = arith.constant 0 : index
      %c0_102 = arith.constant 0 : index
      %149 = vector.load %arg8[%c0_101, %c0_102] : memref<8x256xf32, #tpu.memory_space<vmem>>, vector<8x256xf32>
      %c15_i32_103 = arith.constant 15 : i32
      %150 = tpu.dynamic_rotate %149 by %c15_i32_103 dim 1 : vector<8x256xf32>, i32 -> vector<8x256xf32>
      %c255_i32 = arith.constant 255 : i32
      %151 = tpu.dynamic_rotate %149 by %c255_i32 dim 1 : vector<8x256xf32>, i32 -> vector<8x256xf32>
      %152 = arith.select %20, %150, %151 : vector<8x256xi1>, vector<8x256xf32>
      %c241_i32 = arith.constant 241 : i32
      %153 = tpu.dynamic_rotate %149 by %c241_i32 dim 1 : vector<8x256xf32>, i32 -> vector<8x256xf32>
      %c1_i32_104 = arith.constant 1 : i32
      %154 = tpu.dynamic_rotate %149 by %c1_i32_104 dim 1 : vector<8x256xf32>, i32 -> vector<8x256xf32>
      %155 = arith.select %18, %153, %154 : vector<8x256xi1>, vector<8x256xf32>
      %c16_i32_105 = arith.constant 16 : i32
      %156 = tpu.dynamic_rotate %155 by %c16_i32_105 dim 1 : vector<8x256xf32>, i32 -> vector<8x256xf32>
      %c16_i32_106 = arith.constant 16 : i32
      %157 = tpu.dynamic_rotate %149 by %c16_i32_106 dim 1 : vector<8x256xf32>, i32 -> vector<8x256xf32>
      %c16_i32_107 = arith.constant 16 : i32
      %158 = tpu.dynamic_rotate %152 by %c16_i32_107 dim 1 : vector<8x256xf32>, i32 -> vector<8x256xf32>
      %c240_i32 = arith.constant 240 : i32
      %159 = tpu.dynamic_rotate %155 by %c240_i32 dim 1 : vector<8x256xf32>, i32 -> vector<8x256xf32>
      %c240_i32_108 = arith.constant 240 : i32
      %160 = tpu.dynamic_rotate %149 by %c240_i32_108 dim 1 : vector<8x256xf32>, i32 -> vector<8x256xf32>
      %c240_i32_109 = arith.constant 240 : i32
      %161 = tpu.dynamic_rotate %152 by %c240_i32_109 dim 1 : vector<8x256xf32>, i32 -> vector<8x256xf32>
      %162 = tpu.concatenate %156, %157, %158, %155, %149, %152, %159, %160, %161 in 0 : vector<8x256xf32>, vector<8x256xf32>, vector<8x256xf32>, vector<8x256xf32>, vector<8x256xf32>, vector<8x256xf32>, vector<8x256xf32>, vector<8x256xf32>, vector<8x256xf32> -> vector<72x256xf32>
      %cst = arith.constant dense<0.000000e+00> : vector<72x256xf32>
      %163 = tpu.matmul %21, %162, %cst {dimension_numbers = #tpu.dot_dimension_numbers<[1], [0], [0], [1], [0, 0, 1, 1], [], []>} : vector<72x72xf32>, vector<72x256xf32>, vector<72x256xf32> -> vector<72x256xf32>
      %164 = vector.extract_strided_slice %163 {offsets = [64, 0], sizes = [8, 256], strides = [1, 1]} : vector<72x256xf32> to vector<8x256xf32>
      %165 = vector.extract_strided_slice %163 {offsets = [0, 0], sizes = [64, 256], strides = [1, 1]} : vector<72x256xf32> to vector<64x256xf32>
      %166 = arith.addf %165, %25 : vector<64x256xf32>
      %167 = math.tanh %166 : vector<64x256xf32>
      %cst_110 = arith.constant dense<0.000000e+00> : vector<72x256xf32>
      %168 = tpu.matmul %22, %167, %cst_110 {dimension_numbers = #tpu.dot_dimension_numbers<[1], [0], [0], [1], [0, 0, 1, 1], [], []>} : vector<72x64xf32>, vector<64x256xf32>, vector<72x256xf32> -> vector<72x256xf32>
      %169 = vector.extract_strided_slice %168 {offsets = [0, 0], sizes = [8, 256], strides = [1, 1]} : vector<72x256xf32> to vector<8x256xf32>
      %c1_i32_111 = arith.constant 1 : i32
      %170 = tpu.dynamic_rotate %169 by %c1_i32_111 dim 1 : vector<8x256xf32>, i32 -> vector<8x256xf32>
      %c17_i32 = arith.constant 17 : i32
      %171 = tpu.dynamic_rotate %169 by %c17_i32 dim 1 : vector<8x256xf32>, i32 -> vector<8x256xf32>
      %172 = arith.select %18, %170, %171 : vector<8x256xi1>, vector<8x256xf32>
      %173 = arith.addf %28, %172 : vector<8x256xf32>
      %174 = vector.extract_strided_slice %168 {offsets = [8, 0], sizes = [8, 256], strides = [1, 1]} : vector<72x256xf32> to vector<8x256xf32>
      %c16_i32_112 = arith.constant 16 : i32
      %175 = tpu.dynamic_rotate %174 by %c16_i32_112 dim 1 : vector<8x256xf32>, i32 -> vector<8x256xf32>
      %176 = arith.addf %173, %175 : vector<8x256xf32>
      %177 = vector.extract_strided_slice %168 {offsets = [16, 0], sizes = [8, 256], strides = [1, 1]} : vector<72x256xf32> to vector<8x256xf32>
      %c31_i32 = arith.constant 31 : i32
      %178 = tpu.dynamic_rotate %177 by %c31_i32 dim 1 : vector<8x256xf32>, i32 -> vector<8x256xf32>
      %c15_i32_113 = arith.constant 15 : i32
      %179 = tpu.dynamic_rotate %177 by %c15_i32_113 dim 1 : vector<8x256xf32>, i32 -> vector<8x256xf32>
      %180 = arith.select %20, %178, %179 : vector<8x256xi1>, vector<8x256xf32>
      %181 = arith.addf %176, %180 : vector<8x256xf32>
      %182 = vector.extract_strided_slice %168 {offsets = [24, 0], sizes = [8, 256], strides = [1, 1]} : vector<72x256xf32> to vector<8x256xf32>
      %c241_i32_114 = arith.constant 241 : i32
      %183 = tpu.dynamic_rotate %182 by %c241_i32_114 dim 1 : vector<8x256xf32>, i32 -> vector<8x256xf32>
      %c1_i32_115 = arith.constant 1 : i32
      %184 = tpu.dynamic_rotate %182 by %c1_i32_115 dim 1 : vector<8x256xf32>, i32 -> vector<8x256xf32>
      %185 = arith.select %18, %183, %184 : vector<8x256xi1>, vector<8x256xf32>
      %186 = arith.addf %181, %185 : vector<8x256xf32>
      %187 = vector.extract_strided_slice %168 {offsets = [32, 0], sizes = [8, 256], strides = [1, 1]} : vector<72x256xf32> to vector<8x256xf32>
      %188 = arith.addf %186, %187 : vector<8x256xf32>
      %189 = vector.extract_strided_slice %168 {offsets = [40, 0], sizes = [8, 256], strides = [1, 1]} : vector<72x256xf32> to vector<8x256xf32>
      %c15_i32_116 = arith.constant 15 : i32
      %190 = tpu.dynamic_rotate %189 by %c15_i32_116 dim 1 : vector<8x256xf32>, i32 -> vector<8x256xf32>
      %c255_i32_117 = arith.constant 255 : i32
      %191 = tpu.dynamic_rotate %189 by %c255_i32_117 dim 1 : vector<8x256xf32>, i32 -> vector<8x256xf32>
      %192 = arith.select %20, %190, %191 : vector<8x256xi1>, vector<8x256xf32>
      %193 = arith.addf %188, %192 : vector<8x256xf32>
      %194 = vector.extract_strided_slice %168 {offsets = [48, 0], sizes = [8, 256], strides = [1, 1]} : vector<72x256xf32> to vector<8x256xf32>
      %c225_i32 = arith.constant 225 : i32
      %195 = tpu.dynamic_rotate %194 by %c225_i32 dim 1 : vector<8x256xf32>, i32 -> vector<8x256xf32>
      %c241_i32_118 = arith.constant 241 : i32
      %196 = tpu.dynamic_rotate %194 by %c241_i32_118 dim 1 : vector<8x256xf32>, i32 -> vector<8x256xf32>
      %197 = arith.select %18, %195, %196 : vector<8x256xi1>, vector<8x256xf32>
      %198 = arith.addf %193, %197 : vector<8x256xf32>
      %199 = vector.extract_strided_slice %168 {offsets = [56, 0], sizes = [8, 256], strides = [1, 1]} : vector<72x256xf32> to vector<8x256xf32>
      %c240_i32_119 = arith.constant 240 : i32
      %200 = tpu.dynamic_rotate %199 by %c240_i32_119 dim 1 : vector<8x256xf32>, i32 -> vector<8x256xf32>
      %201 = arith.addf %198, %200 : vector<8x256xf32>
      %202 = vector.extract_strided_slice %168 {offsets = [64, 0], sizes = [8, 256], strides = [1, 1]} : vector<72x256xf32> to vector<8x256xf32>
      %c255_i32_120 = arith.constant 255 : i32
      %203 = tpu.dynamic_rotate %202 by %c255_i32_120 dim 1 : vector<8x256xf32>, i32 -> vector<8x256xf32>
      %c239_i32 = arith.constant 239 : i32
      %204 = tpu.dynamic_rotate %202 by %c239_i32 dim 1 : vector<8x256xf32>, i32 -> vector<8x256xf32>
      %205 = arith.select %20, %203, %204 : vector<8x256xi1>, vector<8x256xf32>
      %206 = arith.addf %201, %205 : vector<8x256xf32>
      %207 = arith.addf %164, %206 : vector<8x256xf32>
      %208 = arith.addf %149, %207 : vector<8x256xf32>
      %c0_121 = arith.constant 0 : index
      %c0_122 = arith.constant 0 : index
      %209 = vector.load %arg8[%c0_121, %c0_122] : memref<8x256xf32, #tpu.memory_space<vmem>>, vector<8x256xf32>
      tpu.vector_store %arg8[%c0_121, %c0_122], %208 {strides = array<i32>} : memref<8x256xf32, #tpu.memory_space<vmem>>, vector<8x256xf32>,
    } else {
    }
    %c0_51 = arith.constant 0 : index
    %c0_52 = arith.constant 0 : index
    %84 = vector.load %arg8[%c0_51, %c0_52] : memref<8x256xf32, #tpu.memory_space<vmem>>, vector<8x256xf32>
    %c0_53 = arith.constant 0 : index
    %85 = arith.index_cast %c3_i32 : i32 to index
    %c0_54 = arith.constant 0 : index
    %c0_55 = arith.constant 0 : index
    %86 = vector.load %arg7[%c0_53, %85, %c0_54, %c0_55] : memref<1x8x8x256xf32, #tpu.memory_space<vmem>>, vector<1x1x8x256xf32>
    %87 = vector.shape_cast %86 : vector<1x1x8x256xf32> to vector<8x256xf32>
    %88 = vector.shape_cast %84 : vector<8x256xf32> to vector<1x1x8x256xf32>
    tpu.vector_store %arg7[%c0_53, %85, %c0_54, %c0_55], %88 {strides = array<i32>} : memref<1x8x8x256xf32, #tpu.memory_space<vmem>>, vector<1x1x8x256xf32>,
    %c4_i32 = arith.constant 4 : i32
    %c8_i32_56 = arith.constant 8 : i32
    %89 = arith.muli %arg1, %c8_i32_56 : i32
    %90 = arith.addi %89, %c4_i32 : i32
    %c0_i32_57 = arith.constant 0 : i32
    %91 = arith.cmpi eq, %90, %c0_i32_57 : i32
    %92 = arith.extui %91 : i1 to i32
    %c0_i32_58 = arith.constant 0 : i32
    %93 = arith.cmpi ne, %92, %c0_i32_58 : i32
    scf.if %93 {
      %c0_101 = arith.constant 0 : index
      %c0_102 = arith.constant 0 : index
      %c0_103 = arith.constant 0 : index
      %149 = vector.load %arg6[%c0_101, %c0_102, %c0_103] : memref<1x8x256xf32, #tpu.memory_space<vmem>>, vector<1x8x256xf32>
      %150 = vector.shape_cast %149 : vector<1x8x256xf32> to vector<8x256xf32>
      %c0_104 = arith.constant 0 : index
      %c0_105 = arith.constant 0 : index
      %151 = vector.load %arg8[%c0_104, %c0_105] : memref<8x256xf32, #tpu.memory_space<vmem>>, vector<8x256xf32>
      tpu.vector_store %arg8[%c0_104, %c0_105], %150 {strides = array<i32>} : memref<8x256xf32, #tpu.memory_space<vmem>>, vector<8x256xf32>,
    } else {
    }
    %c0_i32_59 = arith.constant 0 : i32
    %94 = arith.cmpi sgt, %90, %c0_i32_59 : i32
    %c8_i32_60 = arith.constant 8 : i32
    %95 = arith.cmpi slt, %90, %c8_i32_60 : i32
    %96 = arith.andi %94, %95 : i1
    %97 = arith.extui %96 : i1 to i32
    %c0_i32_61 = arith.constant 0 : i32
    %98 = arith.cmpi ne, %97, %c0_i32_61 : i32
    scf.if %98 {
      %c0_101 = arith.constant 0 : index
      %c0_102 = arith.constant 0 : index
      %149 = vector.load %arg8[%c0_101, %c0_102] : memref<8x256xf32, #tpu.memory_space<vmem>>, vector<8x256xf32>
      %c15_i32_103 = arith.constant 15 : i32
      %150 = tpu.dynamic_rotate %149 by %c15_i32_103 dim 1 : vector<8x256xf32>, i32 -> vector<8x256xf32>
      %c255_i32 = arith.constant 255 : i32
      %151 = tpu.dynamic_rotate %149 by %c255_i32 dim 1 : vector<8x256xf32>, i32 -> vector<8x256xf32>
      %152 = arith.select %20, %150, %151 : vector<8x256xi1>, vector<8x256xf32>
      %c241_i32 = arith.constant 241 : i32
      %153 = tpu.dynamic_rotate %149 by %c241_i32 dim 1 : vector<8x256xf32>, i32 -> vector<8x256xf32>
      %c1_i32_104 = arith.constant 1 : i32
      %154 = tpu.dynamic_rotate %149 by %c1_i32_104 dim 1 : vector<8x256xf32>, i32 -> vector<8x256xf32>
      %155 = arith.select %18, %153, %154 : vector<8x256xi1>, vector<8x256xf32>
      %c16_i32_105 = arith.constant 16 : i32
      %156 = tpu.dynamic_rotate %155 by %c16_i32_105 dim 1 : vector<8x256xf32>, i32 -> vector<8x256xf32>
      %c16_i32_106 = arith.constant 16 : i32
      %157 = tpu.dynamic_rotate %149 by %c16_i32_106 dim 1 : vector<8x256xf32>, i32 -> vector<8x256xf32>
      %c16_i32_107 = arith.constant 16 : i32
      %158 = tpu.dynamic_rotate %152 by %c16_i32_107 dim 1 : vector<8x256xf32>, i32 -> vector<8x256xf32>
      %c240_i32 = arith.constant 240 : i32
      %159 = tpu.dynamic_rotate %155 by %c240_i32 dim 1 : vector<8x256xf32>, i32 -> vector<8x256xf32>
      %c240_i32_108 = arith.constant 240 : i32
      %160 = tpu.dynamic_rotate %149 by %c240_i32_108 dim 1 : vector<8x256xf32>, i32 -> vector<8x256xf32>
      %c240_i32_109 = arith.constant 240 : i32
      %161 = tpu.dynamic_rotate %152 by %c240_i32_109 dim 1 : vector<8x256xf32>, i32 -> vector<8x256xf32>
      %162 = tpu.concatenate %156, %157, %158, %155, %149, %152, %159, %160, %161 in 0 : vector<8x256xf32>, vector<8x256xf32>, vector<8x256xf32>, vector<8x256xf32>, vector<8x256xf32>, vector<8x256xf32>, vector<8x256xf32>, vector<8x256xf32>, vector<8x256xf32> -> vector<72x256xf32>
      %cst = arith.constant dense<0.000000e+00> : vector<72x256xf32>
      %163 = tpu.matmul %21, %162, %cst {dimension_numbers = #tpu.dot_dimension_numbers<[1], [0], [0], [1], [0, 0, 1, 1], [], []>} : vector<72x72xf32>, vector<72x256xf32>, vector<72x256xf32> -> vector<72x256xf32>
      %164 = vector.extract_strided_slice %163 {offsets = [64, 0], sizes = [8, 256], strides = [1, 1]} : vector<72x256xf32> to vector<8x256xf32>
      %165 = vector.extract_strided_slice %163 {offsets = [0, 0], sizes = [64, 256], strides = [1, 1]} : vector<72x256xf32> to vector<64x256xf32>
      %166 = arith.addf %165, %25 : vector<64x256xf32>
      %167 = math.tanh %166 : vector<64x256xf32>
      %cst_110 = arith.constant dense<0.000000e+00> : vector<72x256xf32>
      %168 = tpu.matmul %22, %167, %cst_110 {dimension_numbers = #tpu.dot_dimension_numbers<[1], [0], [0], [1], [0, 0, 1, 1], [], []>} : vector<72x64xf32>, vector<64x256xf32>, vector<72x256xf32> -> vector<72x256xf32>
      %169 = vector.extract_strided_slice %168 {offsets = [0, 0], sizes = [8, 256], strides = [1, 1]} : vector<72x256xf32> to vector<8x256xf32>
      %c1_i32_111 = arith.constant 1 : i32
      %170 = tpu.dynamic_rotate %169 by %c1_i32_111 dim 1 : vector<8x256xf32>, i32 -> vector<8x256xf32>
      %c17_i32 = arith.constant 17 : i32
      %171 = tpu.dynamic_rotate %169 by %c17_i32 dim 1 : vector<8x256xf32>, i32 -> vector<8x256xf32>
      %172 = arith.select %18, %170, %171 : vector<8x256xi1>, vector<8x256xf32>
      %173 = arith.addf %28, %172 : vector<8x256xf32>
      %174 = vector.extract_strided_slice %168 {offsets = [8, 0], sizes = [8, 256], strides = [1, 1]} : vector<72x256xf32> to vector<8x256xf32>
      %c16_i32_112 = arith.constant 16 : i32
      %175 = tpu.dynamic_rotate %174 by %c16_i32_112 dim 1 : vector<8x256xf32>, i32 -> vector<8x256xf32>
      %176 = arith.addf %173, %175 : vector<8x256xf32>
      %177 = vector.extract_strided_slice %168 {offsets = [16, 0], sizes = [8, 256], strides = [1, 1]} : vector<72x256xf32> to vector<8x256xf32>
      %c31_i32 = arith.constant 31 : i32
      %178 = tpu.dynamic_rotate %177 by %c31_i32 dim 1 : vector<8x256xf32>, i32 -> vector<8x256xf32>
      %c15_i32_113 = arith.constant 15 : i32
      %179 = tpu.dynamic_rotate %177 by %c15_i32_113 dim 1 : vector<8x256xf32>, i32 -> vector<8x256xf32>
      %180 = arith.select %20, %178, %179 : vector<8x256xi1>, vector<8x256xf32>
      %181 = arith.addf %176, %180 : vector<8x256xf32>
      %182 = vector.extract_strided_slice %168 {offsets = [24, 0], sizes = [8, 256], strides = [1, 1]} : vector<72x256xf32> to vector<8x256xf32>
      %c241_i32_114 = arith.constant 241 : i32
      %183 = tpu.dynamic_rotate %182 by %c241_i32_114 dim 1 : vector<8x256xf32>, i32 -> vector<8x256xf32>
      %c1_i32_115 = arith.constant 1 : i32
      %184 = tpu.dynamic_rotate %182 by %c1_i32_115 dim 1 : vector<8x256xf32>, i32 -> vector<8x256xf32>
      %185 = arith.select %18, %183, %184 : vector<8x256xi1>, vector<8x256xf32>
      %186 = arith.addf %181, %185 : vector<8x256xf32>
      %187 = vector.extract_strided_slice %168 {offsets = [32, 0], sizes = [8, 256], strides = [1, 1]} : vector<72x256xf32> to vector<8x256xf32>
      %188 = arith.addf %186, %187 : vector<8x256xf32>
      %189 = vector.extract_strided_slice %168 {offsets = [40, 0], sizes = [8, 256], strides = [1, 1]} : vector<72x256xf32> to vector<8x256xf32>
      %c15_i32_116 = arith.constant 15 : i32
      %190 = tpu.dynamic_rotate %189 by %c15_i32_116 dim 1 : vector<8x256xf32>, i32 -> vector<8x256xf32>
      %c255_i32_117 = arith.constant 255 : i32
      %191 = tpu.dynamic_rotate %189 by %c255_i32_117 dim 1 : vector<8x256xf32>, i32 -> vector<8x256xf32>
      %192 = arith.select %20, %190, %191 : vector<8x256xi1>, vector<8x256xf32>
      %193 = arith.addf %188, %192 : vector<8x256xf32>
      %194 = vector.extract_strided_slice %168 {offsets = [48, 0], sizes = [8, 256], strides = [1, 1]} : vector<72x256xf32> to vector<8x256xf32>
      %c225_i32 = arith.constant 225 : i32
      %195 = tpu.dynamic_rotate %194 by %c225_i32 dim 1 : vector<8x256xf32>, i32 -> vector<8x256xf32>
      %c241_i32_118 = arith.constant 241 : i32
      %196 = tpu.dynamic_rotate %194 by %c241_i32_118 dim 1 : vector<8x256xf32>, i32 -> vector<8x256xf32>
      %197 = arith.select %18, %195, %196 : vector<8x256xi1>, vector<8x256xf32>
      %198 = arith.addf %193, %197 : vector<8x256xf32>
      %199 = vector.extract_strided_slice %168 {offsets = [56, 0], sizes = [8, 256], strides = [1, 1]} : vector<72x256xf32> to vector<8x256xf32>
      %c240_i32_119 = arith.constant 240 : i32
      %200 = tpu.dynamic_rotate %199 by %c240_i32_119 dim 1 : vector<8x256xf32>, i32 -> vector<8x256xf32>
      %201 = arith.addf %198, %200 : vector<8x256xf32>
      %202 = vector.extract_strided_slice %168 {offsets = [64, 0], sizes = [8, 256], strides = [1, 1]} : vector<72x256xf32> to vector<8x256xf32>
      %c255_i32_120 = arith.constant 255 : i32
      %203 = tpu.dynamic_rotate %202 by %c255_i32_120 dim 1 : vector<8x256xf32>, i32 -> vector<8x256xf32>
      %c239_i32 = arith.constant 239 : i32
      %204 = tpu.dynamic_rotate %202 by %c239_i32 dim 1 : vector<8x256xf32>, i32 -> vector<8x256xf32>
      %205 = arith.select %20, %203, %204 : vector<8x256xi1>, vector<8x256xf32>
      %206 = arith.addf %201, %205 : vector<8x256xf32>
      %207 = arith.addf %164, %206 : vector<8x256xf32>
      %208 = arith.addf %149, %207 : vector<8x256xf32>
      %c0_121 = arith.constant 0 : index
      %c0_122 = arith.constant 0 : index
      %209 = vector.load %arg8[%c0_121, %c0_122] : memref<8x256xf32, #tpu.memory_space<vmem>>, vector<8x256xf32>
      tpu.vector_store %arg8[%c0_121, %c0_122], %208 {strides = array<i32>} : memref<8x256xf32, #tpu.memory_space<vmem>>, vector<8x256xf32>,
    } else {
    }
    %c0_62 = arith.constant 0 : index
    %c0_63 = arith.constant 0 : index
    %99 = vector.load %arg8[%c0_62, %c0_63] : memref<8x256xf32, #tpu.memory_space<vmem>>, vector<8x256xf32>
    %c0_64 = arith.constant 0 : index
    %100 = arith.index_cast %c4_i32 : i32 to index
    %c0_65 = arith.constant 0 : index
    %c0_66 = arith.constant 0 : index
    %101 = vector.load %arg7[%c0_64, %100, %c0_65, %c0_66] : memref<1x8x8x256xf32, #tpu.memory_space<vmem>>, vector<1x1x8x256xf32>
    %102 = vector.shape_cast %101 : vector<1x1x8x256xf32> to vector<8x256xf32>
    %103 = vector.shape_cast %99 : vector<8x256xf32> to vector<1x1x8x256xf32>
    tpu.vector_store %arg7[%c0_64, %100, %c0_65, %c0_66], %103 {strides = array<i32>} : memref<1x8x8x256xf32, #tpu.memory_space<vmem>>, vector<1x1x8x256xf32>,
    %c5_i32 = arith.constant 5 : i32
    %c8_i32_67 = arith.constant 8 : i32
    %104 = arith.muli %arg1, %c8_i32_67 : i32
    %105 = arith.addi %104, %c5_i32 : i32
    %c0_i32_68 = arith.constant 0 : i32
    %106 = arith.cmpi eq, %105, %c0_i32_68 : i32
    %107 = arith.extui %106 : i1 to i32
    %c0_i32_69 = arith.constant 0 : i32
    %108 = arith.cmpi ne, %107, %c0_i32_69 : i32
    scf.if %108 {
      %c0_101 = arith.constant 0 : index
      %c0_102 = arith.constant 0 : index
      %c0_103 = arith.constant 0 : index
      %149 = vector.load %arg6[%c0_101, %c0_102, %c0_103] : memref<1x8x256xf32, #tpu.memory_space<vmem>>, vector<1x8x256xf32>
      %150 = vector.shape_cast %149 : vector<1x8x256xf32> to vector<8x256xf32>
      %c0_104 = arith.constant 0 : index
      %c0_105 = arith.constant 0 : index
      %151 = vector.load %arg8[%c0_104, %c0_105] : memref<8x256xf32, #tpu.memory_space<vmem>>, vector<8x256xf32>
      tpu.vector_store %arg8[%c0_104, %c0_105], %150 {strides = array<i32>} : memref<8x256xf32, #tpu.memory_space<vmem>>, vector<8x256xf32>,
    } else {
    }
    %c0_i32_70 = arith.constant 0 : i32
    %109 = arith.cmpi sgt, %105, %c0_i32_70 : i32
    %c8_i32_71 = arith.constant 8 : i32
    %110 = arith.cmpi slt, %105, %c8_i32_71 : i32
    %111 = arith.andi %109, %110 : i1
    %112 = arith.extui %111 : i1 to i32
    %c0_i32_72 = arith.constant 0 : i32
    %113 = arith.cmpi ne, %112, %c0_i32_72 : i32
    scf.if %113 {
      %c0_101 = arith.constant 0 : index
      %c0_102 = arith.constant 0 : index
      %149 = vector.load %arg8[%c0_101, %c0_102] : memref<8x256xf32, #tpu.memory_space<vmem>>, vector<8x256xf32>
      %c15_i32_103 = arith.constant 15 : i32
      %150 = tpu.dynamic_rotate %149 by %c15_i32_103 dim 1 : vector<8x256xf32>, i32 -> vector<8x256xf32>
      %c255_i32 = arith.constant 255 : i32
      %151 = tpu.dynamic_rotate %149 by %c255_i32 dim 1 : vector<8x256xf32>, i32 -> vector<8x256xf32>
      %152 = arith.select %20, %150, %151 : vector<8x256xi1>, vector<8x256xf32>
      %c241_i32 = arith.constant 241 : i32
      %153 = tpu.dynamic_rotate %149 by %c241_i32 dim 1 : vector<8x256xf32>, i32 -> vector<8x256xf32>
      %c1_i32_104 = arith.constant 1 : i32
      %154 = tpu.dynamic_rotate %149 by %c1_i32_104 dim 1 : vector<8x256xf32>, i32 -> vector<8x256xf32>
      %155 = arith.select %18, %153, %154 : vector<8x256xi1>, vector<8x256xf32>
      %c16_i32_105 = arith.constant 16 : i32
      %156 = tpu.dynamic_rotate %155 by %c16_i32_105 dim 1 : vector<8x256xf32>, i32 -> vector<8x256xf32>
      %c16_i32_106 = arith.constant 16 : i32
      %157 = tpu.dynamic_rotate %149 by %c16_i32_106 dim 1 : vector<8x256xf32>, i32 -> vector<8x256xf32>
      %c16_i32_107 = arith.constant 16 : i32
      %158 = tpu.dynamic_rotate %152 by %c16_i32_107 dim 1 : vector<8x256xf32>, i32 -> vector<8x256xf32>
      %c240_i32 = arith.constant 240 : i32
      %159 = tpu.dynamic_rotate %155 by %c240_i32 dim 1 : vector<8x256xf32>, i32 -> vector<8x256xf32>
      %c240_i32_108 = arith.constant 240 : i32
      %160 = tpu.dynamic_rotate %149 by %c240_i32_108 dim 1 : vector<8x256xf32>, i32 -> vector<8x256xf32>
      %c240_i32_109 = arith.constant 240 : i32
      %161 = tpu.dynamic_rotate %152 by %c240_i32_109 dim 1 : vector<8x256xf32>, i32 -> vector<8x256xf32>
      %162 = tpu.concatenate %156, %157, %158, %155, %149, %152, %159, %160, %161 in 0 : vector<8x256xf32>, vector<8x256xf32>, vector<8x256xf32>, vector<8x256xf32>, vector<8x256xf32>, vector<8x256xf32>, vector<8x256xf32>, vector<8x256xf32>, vector<8x256xf32> -> vector<72x256xf32>
      %cst = arith.constant dense<0.000000e+00> : vector<72x256xf32>
      %163 = tpu.matmul %21, %162, %cst {dimension_numbers = #tpu.dot_dimension_numbers<[1], [0], [0], [1], [0, 0, 1, 1], [], []>} : vector<72x72xf32>, vector<72x256xf32>, vector<72x256xf32> -> vector<72x256xf32>
      %164 = vector.extract_strided_slice %163 {offsets = [64, 0], sizes = [8, 256], strides = [1, 1]} : vector<72x256xf32> to vector<8x256xf32>
      %165 = vector.extract_strided_slice %163 {offsets = [0, 0], sizes = [64, 256], strides = [1, 1]} : vector<72x256xf32> to vector<64x256xf32>
      %166 = arith.addf %165, %25 : vector<64x256xf32>
      %167 = math.tanh %166 : vector<64x256xf32>
      %cst_110 = arith.constant dense<0.000000e+00> : vector<72x256xf32>
      %168 = tpu.matmul %22, %167, %cst_110 {dimension_numbers = #tpu.dot_dimension_numbers<[1], [0], [0], [1], [0, 0, 1, 1], [], []>} : vector<72x64xf32>, vector<64x256xf32>, vector<72x256xf32> -> vector<72x256xf32>
      %169 = vector.extract_strided_slice %168 {offsets = [0, 0], sizes = [8, 256], strides = [1, 1]} : vector<72x256xf32> to vector<8x256xf32>
      %c1_i32_111 = arith.constant 1 : i32
      %170 = tpu.dynamic_rotate %169 by %c1_i32_111 dim 1 : vector<8x256xf32>, i32 -> vector<8x256xf32>
      %c17_i32 = arith.constant 17 : i32
      %171 = tpu.dynamic_rotate %169 by %c17_i32 dim 1 : vector<8x256xf32>, i32 -> vector<8x256xf32>
      %172 = arith.select %18, %170, %171 : vector<8x256xi1>, vector<8x256xf32>
      %173 = arith.addf %28, %172 : vector<8x256xf32>
      %174 = vector.extract_strided_slice %168 {offsets = [8, 0], sizes = [8, 256], strides = [1, 1]} : vector<72x256xf32> to vector<8x256xf32>
      %c16_i32_112 = arith.constant 16 : i32
      %175 = tpu.dynamic_rotate %174 by %c16_i32_112 dim 1 : vector<8x256xf32>, i32 -> vector<8x256xf32>
      %176 = arith.addf %173, %175 : vector<8x256xf32>
      %177 = vector.extract_strided_slice %168 {offsets = [16, 0], sizes = [8, 256], strides = [1, 1]} : vector<72x256xf32> to vector<8x256xf32>
      %c31_i32 = arith.constant 31 : i32
      %178 = tpu.dynamic_rotate %177 by %c31_i32 dim 1 : vector<8x256xf32>, i32 -> vector<8x256xf32>
      %c15_i32_113 = arith.constant 15 : i32
      %179 = tpu.dynamic_rotate %177 by %c15_i32_113 dim 1 : vector<8x256xf32>, i32 -> vector<8x256xf32>
      %180 = arith.select %20, %178, %179 : vector<8x256xi1>, vector<8x256xf32>
      %181 = arith.addf %176, %180 : vector<8x256xf32>
      %182 = vector.extract_strided_slice %168 {offsets = [24, 0], sizes = [8, 256], strides = [1, 1]} : vector<72x256xf32> to vector<8x256xf32>
      %c241_i32_114 = arith.constant 241 : i32
      %183 = tpu.dynamic_rotate %182 by %c241_i32_114 dim 1 : vector<8x256xf32>, i32 -> vector<8x256xf32>
      %c1_i32_115 = arith.constant 1 : i32
      %184 = tpu.dynamic_rotate %182 by %c1_i32_115 dim 1 : vector<8x256xf32>, i32 -> vector<8x256xf32>
      %185 = arith.select %18, %183, %184 : vector<8x256xi1>, vector<8x256xf32>
      %186 = arith.addf %181, %185 : vector<8x256xf32>
      %187 = vector.extract_strided_slice %168 {offsets = [32, 0], sizes = [8, 256], strides = [1, 1]} : vector<72x256xf32> to vector<8x256xf32>
      %188 = arith.addf %186, %187 : vector<8x256xf32>
      %189 = vector.extract_strided_slice %168 {offsets = [40, 0], sizes = [8, 256], strides = [1, 1]} : vector<72x256xf32> to vector<8x256xf32>
      %c15_i32_116 = arith.constant 15 : i32
      %190 = tpu.dynamic_rotate %189 by %c15_i32_116 dim 1 : vector<8x256xf32>, i32 -> vector<8x256xf32>
      %c255_i32_117 = arith.constant 255 : i32
      %191 = tpu.dynamic_rotate %189 by %c255_i32_117 dim 1 : vector<8x256xf32>, i32 -> vector<8x256xf32>
      %192 = arith.select %20, %190, %191 : vector<8x256xi1>, vector<8x256xf32>
      %193 = arith.addf %188, %192 : vector<8x256xf32>
      %194 = vector.extract_strided_slice %168 {offsets = [48, 0], sizes = [8, 256], strides = [1, 1]} : vector<72x256xf32> to vector<8x256xf32>
      %c225_i32 = arith.constant 225 : i32
      %195 = tpu.dynamic_rotate %194 by %c225_i32 dim 1 : vector<8x256xf32>, i32 -> vector<8x256xf32>
      %c241_i32_118 = arith.constant 241 : i32
      %196 = tpu.dynamic_rotate %194 by %c241_i32_118 dim 1 : vector<8x256xf32>, i32 -> vector<8x256xf32>
      %197 = arith.select %18, %195, %196 : vector<8x256xi1>, vector<8x256xf32>
      %198 = arith.addf %193, %197 : vector<8x256xf32>
      %199 = vector.extract_strided_slice %168 {offsets = [56, 0], sizes = [8, 256], strides = [1, 1]} : vector<72x256xf32> to vector<8x256xf32>
      %c240_i32_119 = arith.constant 240 : i32
      %200 = tpu.dynamic_rotate %199 by %c240_i32_119 dim 1 : vector<8x256xf32>, i32 -> vector<8x256xf32>
      %201 = arith.addf %198, %200 : vector<8x256xf32>
      %202 = vector.extract_strided_slice %168 {offsets = [64, 0], sizes = [8, 256], strides = [1, 1]} : vector<72x256xf32> to vector<8x256xf32>
      %c255_i32_120 = arith.constant 255 : i32
      %203 = tpu.dynamic_rotate %202 by %c255_i32_120 dim 1 : vector<8x256xf32>, i32 -> vector<8x256xf32>
      %c239_i32 = arith.constant 239 : i32
      %204 = tpu.dynamic_rotate %202 by %c239_i32 dim 1 : vector<8x256xf32>, i32 -> vector<8x256xf32>
      %205 = arith.select %20, %203, %204 : vector<8x256xi1>, vector<8x256xf32>
      %206 = arith.addf %201, %205 : vector<8x256xf32>
      %207 = arith.addf %164, %206 : vector<8x256xf32>
      %208 = arith.addf %149, %207 : vector<8x256xf32>
      %c0_121 = arith.constant 0 : index
      %c0_122 = arith.constant 0 : index
      %209 = vector.load %arg8[%c0_121, %c0_122] : memref<8x256xf32, #tpu.memory_space<vmem>>, vector<8x256xf32>
      tpu.vector_store %arg8[%c0_121, %c0_122], %208 {strides = array<i32>} : memref<8x256xf32, #tpu.memory_space<vmem>>, vector<8x256xf32>,
    } else {
    }
    %c0_73 = arith.constant 0 : index
    %c0_74 = arith.constant 0 : index
    %114 = vector.load %arg8[%c0_73, %c0_74] : memref<8x256xf32, #tpu.memory_space<vmem>>, vector<8x256xf32>
    %c0_75 = arith.constant 0 : index
    %115 = arith.index_cast %c5_i32 : i32 to index
    %c0_76 = arith.constant 0 : index
    %c0_77 = arith.constant 0 : index
    %116 = vector.load %arg7[%c0_75, %115, %c0_76, %c0_77] : memref<1x8x8x256xf32, #tpu.memory_space<vmem>>, vector<1x1x8x256xf32>
    %117 = vector.shape_cast %116 : vector<1x1x8x256xf32> to vector<8x256xf32>
    %118 = vector.shape_cast %114 : vector<8x256xf32> to vector<1x1x8x256xf32>
    tpu.vector_store %arg7[%c0_75, %115, %c0_76, %c0_77], %118 {strides = array<i32>} : memref<1x8x8x256xf32, #tpu.memory_space<vmem>>, vector<1x1x8x256xf32>,
    %c6_i32 = arith.constant 6 : i32
    %c8_i32_78 = arith.constant 8 : i32
    %119 = arith.muli %arg1, %c8_i32_78 : i32
    %120 = arith.addi %119, %c6_i32 : i32
    %c0_i32_79 = arith.constant 0 : i32
    %121 = arith.cmpi eq, %120, %c0_i32_79 : i32
    %122 = arith.extui %121 : i1 to i32
    %c0_i32_80 = arith.constant 0 : i32
    %123 = arith.cmpi ne, %122, %c0_i32_80 : i32
    scf.if %123 {
      %c0_101 = arith.constant 0 : index
      %c0_102 = arith.constant 0 : index
      %c0_103 = arith.constant 0 : index
      %149 = vector.load %arg6[%c0_101, %c0_102, %c0_103] : memref<1x8x256xf32, #tpu.memory_space<vmem>>, vector<1x8x256xf32>
      %150 = vector.shape_cast %149 : vector<1x8x256xf32> to vector<8x256xf32>
      %c0_104 = arith.constant 0 : index
      %c0_105 = arith.constant 0 : index
      %151 = vector.load %arg8[%c0_104, %c0_105] : memref<8x256xf32, #tpu.memory_space<vmem>>, vector<8x256xf32>
      tpu.vector_store %arg8[%c0_104, %c0_105], %150 {strides = array<i32>} : memref<8x256xf32, #tpu.memory_space<vmem>>, vector<8x256xf32>,
    } else {
    }
    %c0_i32_81 = arith.constant 0 : i32
    %124 = arith.cmpi sgt, %120, %c0_i32_81 : i32
    %c8_i32_82 = arith.constant 8 : i32
    %125 = arith.cmpi slt, %120, %c8_i32_82 : i32
    %126 = arith.andi %124, %125 : i1
    %127 = arith.extui %126 : i1 to i32
    %c0_i32_83 = arith.constant 0 : i32
    %128 = arith.cmpi ne, %127, %c0_i32_83 : i32
    scf.if %128 {
      %c0_101 = arith.constant 0 : index
      %c0_102 = arith.constant 0 : index
      %149 = vector.load %arg8[%c0_101, %c0_102] : memref<8x256xf32, #tpu.memory_space<vmem>>, vector<8x256xf32>
      %c15_i32_103 = arith.constant 15 : i32
      %150 = tpu.dynamic_rotate %149 by %c15_i32_103 dim 1 : vector<8x256xf32>, i32 -> vector<8x256xf32>
      %c255_i32 = arith.constant 255 : i32
      %151 = tpu.dynamic_rotate %149 by %c255_i32 dim 1 : vector<8x256xf32>, i32 -> vector<8x256xf32>
      %152 = arith.select %20, %150, %151 : vector<8x256xi1>, vector<8x256xf32>
      %c241_i32 = arith.constant 241 : i32
      %153 = tpu.dynamic_rotate %149 by %c241_i32 dim 1 : vector<8x256xf32>, i32 -> vector<8x256xf32>
      %c1_i32_104 = arith.constant 1 : i32
      %154 = tpu.dynamic_rotate %149 by %c1_i32_104 dim 1 : vector<8x256xf32>, i32 -> vector<8x256xf32>
      %155 = arith.select %18, %153, %154 : vector<8x256xi1>, vector<8x256xf32>
      %c16_i32_105 = arith.constant 16 : i32
      %156 = tpu.dynamic_rotate %155 by %c16_i32_105 dim 1 : vector<8x256xf32>, i32 -> vector<8x256xf32>
      %c16_i32_106 = arith.constant 16 : i32
      %157 = tpu.dynamic_rotate %149 by %c16_i32_106 dim 1 : vector<8x256xf32>, i32 -> vector<8x256xf32>
      %c16_i32_107 = arith.constant 16 : i32
      %158 = tpu.dynamic_rotate %152 by %c16_i32_107 dim 1 : vector<8x256xf32>, i32 -> vector<8x256xf32>
      %c240_i32 = arith.constant 240 : i32
      %159 = tpu.dynamic_rotate %155 by %c240_i32 dim 1 : vector<8x256xf32>, i32 -> vector<8x256xf32>
      %c240_i32_108 = arith.constant 240 : i32
      %160 = tpu.dynamic_rotate %149 by %c240_i32_108 dim 1 : vector<8x256xf32>, i32 -> vector<8x256xf32>
      %c240_i32_109 = arith.constant 240 : i32
      %161 = tpu.dynamic_rotate %152 by %c240_i32_109 dim 1 : vector<8x256xf32>, i32 -> vector<8x256xf32>
      %162 = tpu.concatenate %156, %157, %158, %155, %149, %152, %159, %160, %161 in 0 : vector<8x256xf32>, vector<8x256xf32>, vector<8x256xf32>, vector<8x256xf32>, vector<8x256xf32>, vector<8x256xf32>, vector<8x256xf32>, vector<8x256xf32>, vector<8x256xf32> -> vector<72x256xf32>
      %cst = arith.constant dense<0.000000e+00> : vector<72x256xf32>
      %163 = tpu.matmul %21, %162, %cst {dimension_numbers = #tpu.dot_dimension_numbers<[1], [0], [0], [1], [0, 0, 1, 1], [], []>} : vector<72x72xf32>, vector<72x256xf32>, vector<72x256xf32> -> vector<72x256xf32>
      %164 = vector.extract_strided_slice %163 {offsets = [64, 0], sizes = [8, 256], strides = [1, 1]} : vector<72x256xf32> to vector<8x256xf32>
      %165 = vector.extract_strided_slice %163 {offsets = [0, 0], sizes = [64, 256], strides = [1, 1]} : vector<72x256xf32> to vector<64x256xf32>
      %166 = arith.addf %165, %25 : vector<64x256xf32>
      %167 = math.tanh %166 : vector<64x256xf32>
      %cst_110 = arith.constant dense<0.000000e+00> : vector<72x256xf32>
      %168 = tpu.matmul %22, %167, %cst_110 {dimension_numbers = #tpu.dot_dimension_numbers<[1], [0], [0], [1], [0, 0, 1, 1], [], []>} : vector<72x64xf32>, vector<64x256xf32>, vector<72x256xf32> -> vector<72x256xf32>
      %169 = vector.extract_strided_slice %168 {offsets = [0, 0], sizes = [8, 256], strides = [1, 1]} : vector<72x256xf32> to vector<8x256xf32>
      %c1_i32_111 = arith.constant 1 : i32
      %170 = tpu.dynamic_rotate %169 by %c1_i32_111 dim 1 : vector<8x256xf32>, i32 -> vector<8x256xf32>
      %c17_i32 = arith.constant 17 : i32
      %171 = tpu.dynamic_rotate %169 by %c17_i32 dim 1 : vector<8x256xf32>, i32 -> vector<8x256xf32>
      %172 = arith.select %18, %170, %171 : vector<8x256xi1>, vector<8x256xf32>
      %173 = arith.addf %28, %172 : vector<8x256xf32>
      %174 = vector.extract_strided_slice %168 {offsets = [8, 0], sizes = [8, 256], strides = [1, 1]} : vector<72x256xf32> to vector<8x256xf32>
      %c16_i32_112 = arith.constant 16 : i32
      %175 = tpu.dynamic_rotate %174 by %c16_i32_112 dim 1 : vector<8x256xf32>, i32 -> vector<8x256xf32>
      %176 = arith.addf %173, %175 : vector<8x256xf32>
      %177 = vector.extract_strided_slice %168 {offsets = [16, 0], sizes = [8, 256], strides = [1, 1]} : vector<72x256xf32> to vector<8x256xf32>
      %c31_i32 = arith.constant 31 : i32
      %178 = tpu.dynamic_rotate %177 by %c31_i32 dim 1 : vector<8x256xf32>, i32 -> vector<8x256xf32>
      %c15_i32_113 = arith.constant 15 : i32
      %179 = tpu.dynamic_rotate %177 by %c15_i32_113 dim 1 : vector<8x256xf32>, i32 -> vector<8x256xf32>
      %180 = arith.select %20, %178, %179 : vector<8x256xi1>, vector<8x256xf32>
      %181 = arith.addf %176, %180 : vector<8x256xf32>
      %182 = vector.extract_strided_slice %168 {offsets = [24, 0], sizes = [8, 256], strides = [1, 1]} : vector<72x256xf32> to vector<8x256xf32>
      %c241_i32_114 = arith.constant 241 : i32
      %183 = tpu.dynamic_rotate %182 by %c241_i32_114 dim 1 : vector<8x256xf32>, i32 -> vector<8x256xf32>
      %c1_i32_115 = arith.constant 1 : i32
      %184 = tpu.dynamic_rotate %182 by %c1_i32_115 dim 1 : vector<8x256xf32>, i32 -> vector<8x256xf32>
      %185 = arith.select %18, %183, %184 : vector<8x256xi1>, vector<8x256xf32>
      %186 = arith.addf %181, %185 : vector<8x256xf32>
      %187 = vector.extract_strided_slice %168 {offsets = [32, 0], sizes = [8, 256], strides = [1, 1]} : vector<72x256xf32> to vector<8x256xf32>
      %188 = arith.addf %186, %187 : vector<8x256xf32>
      %189 = vector.extract_strided_slice %168 {offsets = [40, 0], sizes = [8, 256], strides = [1, 1]} : vector<72x256xf32> to vector<8x256xf32>
      %c15_i32_116 = arith.constant 15 : i32
      %190 = tpu.dynamic_rotate %189 by %c15_i32_116 dim 1 : vector<8x256xf32>, i32 -> vector<8x256xf32>
      %c255_i32_117 = arith.constant 255 : i32
      %191 = tpu.dynamic_rotate %189 by %c255_i32_117 dim 1 : vector<8x256xf32>, i32 -> vector<8x256xf32>
      %192 = arith.select %20, %190, %191 : vector<8x256xi1>, vector<8x256xf32>
      %193 = arith.addf %188, %192 : vector<8x256xf32>
      %194 = vector.extract_strided_slice %168 {offsets = [48, 0], sizes = [8, 256], strides = [1, 1]} : vector<72x256xf32> to vector<8x256xf32>
      %c225_i32 = arith.constant 225 : i32
      %195 = tpu.dynamic_rotate %194 by %c225_i32 dim 1 : vector<8x256xf32>, i32 -> vector<8x256xf32>
      %c241_i32_118 = arith.constant 241 : i32
      %196 = tpu.dynamic_rotate %194 by %c241_i32_118 dim 1 : vector<8x256xf32>, i32 -> vector<8x256xf32>
      %197 = arith.select %18, %195, %196 : vector<8x256xi1>, vector<8x256xf32>
      %198 = arith.addf %193, %197 : vector<8x256xf32>
      %199 = vector.extract_strided_slice %168 {offsets = [56, 0], sizes = [8, 256], strides = [1, 1]} : vector<72x256xf32> to vector<8x256xf32>
      %c240_i32_119 = arith.constant 240 : i32
      %200 = tpu.dynamic_rotate %199 by %c240_i32_119 dim 1 : vector<8x256xf32>, i32 -> vector<8x256xf32>
      %201 = arith.addf %198, %200 : vector<8x256xf32>
      %202 = vector.extract_strided_slice %168 {offsets = [64, 0], sizes = [8, 256], strides = [1, 1]} : vector<72x256xf32> to vector<8x256xf32>
      %c255_i32_120 = arith.constant 255 : i32
      %203 = tpu.dynamic_rotate %202 by %c255_i32_120 dim 1 : vector<8x256xf32>, i32 -> vector<8x256xf32>
      %c239_i32 = arith.constant 239 : i32
      %204 = tpu.dynamic_rotate %202 by %c239_i32 dim 1 : vector<8x256xf32>, i32 -> vector<8x256xf32>
      %205 = arith.select %20, %203, %204 : vector<8x256xi1>, vector<8x256xf32>
      %206 = arith.addf %201, %205 : vector<8x256xf32>
      %207 = arith.addf %164, %206 : vector<8x256xf32>
      %208 = arith.addf %149, %207 : vector<8x256xf32>
      %c0_121 = arith.constant 0 : index
      %c0_122 = arith.constant 0 : index
      %209 = vector.load %arg8[%c0_121, %c0_122] : memref<8x256xf32, #tpu.memory_space<vmem>>, vector<8x256xf32>
      tpu.vector_store %arg8[%c0_121, %c0_122], %208 {strides = array<i32>} : memref<8x256xf32, #tpu.memory_space<vmem>>, vector<8x256xf32>,
    } else {
    }
    %c0_84 = arith.constant 0 : index
    %c0_85 = arith.constant 0 : index
    %129 = vector.load %arg8[%c0_84, %c0_85] : memref<8x256xf32, #tpu.memory_space<vmem>>, vector<8x256xf32>
    %c0_86 = arith.constant 0 : index
    %130 = arith.index_cast %c6_i32 : i32 to index
    %c0_87 = arith.constant 0 : index
    %c0_88 = arith.constant 0 : index
    %131 = vector.load %arg7[%c0_86, %130, %c0_87, %c0_88] : memref<1x8x8x256xf32, #tpu.memory_space<vmem>>, vector<1x1x8x256xf32>
    %132 = vector.shape_cast %131 : vector<1x1x8x256xf32> to vector<8x256xf32>
    %133 = vector.shape_cast %129 : vector<8x256xf32> to vector<1x1x8x256xf32>
    tpu.vector_store %arg7[%c0_86, %130, %c0_87, %c0_88], %133 {strides = array<i32>} : memref<1x8x8x256xf32, #tpu.memory_space<vmem>>, vector<1x1x8x256xf32>,
    %c7_i32 = arith.constant 7 : i32
    %c8_i32_89 = arith.constant 8 : i32
    %134 = arith.muli %arg1, %c8_i32_89 : i32
    %135 = arith.addi %134, %c7_i32 : i32
    %c0_i32_90 = arith.constant 0 : i32
    %136 = arith.cmpi eq, %135, %c0_i32_90 : i32
    %137 = arith.extui %136 : i1 to i32
    %c0_i32_91 = arith.constant 0 : i32
    %138 = arith.cmpi ne, %137, %c0_i32_91 : i32
    scf.if %138 {
      %c0_101 = arith.constant 0 : index
      %c0_102 = arith.constant 0 : index
      %c0_103 = arith.constant 0 : index
      %149 = vector.load %arg6[%c0_101, %c0_102, %c0_103] : memref<1x8x256xf32, #tpu.memory_space<vmem>>, vector<1x8x256xf32>
      %150 = vector.shape_cast %149 : vector<1x8x256xf32> to vector<8x256xf32>
      %c0_104 = arith.constant 0 : index
      %c0_105 = arith.constant 0 : index
      %151 = vector.load %arg8[%c0_104, %c0_105] : memref<8x256xf32, #tpu.memory_space<vmem>>, vector<8x256xf32>
      tpu.vector_store %arg8[%c0_104, %c0_105], %150 {strides = array<i32>} : memref<8x256xf32, #tpu.memory_space<vmem>>, vector<8x256xf32>,
    } else {
    }
    %c0_i32_92 = arith.constant 0 : i32
    %139 = arith.cmpi sgt, %135, %c0_i32_92 : i32
    %c8_i32_93 = arith.constant 8 : i32
    %140 = arith.cmpi slt, %135, %c8_i32_93 : i32
    %141 = arith.andi %139, %140 : i1
    %142 = arith.extui %141 : i1 to i32
    %c0_i32_94 = arith.constant 0 : i32
    %143 = arith.cmpi ne, %142, %c0_i32_94 : i32
    scf.if %143 {
      %c0_101 = arith.constant 0 : index
      %c0_102 = arith.constant 0 : index
      %149 = vector.load %arg8[%c0_101, %c0_102] : memref<8x256xf32, #tpu.memory_space<vmem>>, vector<8x256xf32>
      %c15_i32_103 = arith.constant 15 : i32
      %150 = tpu.dynamic_rotate %149 by %c15_i32_103 dim 1 : vector<8x256xf32>, i32 -> vector<8x256xf32>
      %c255_i32 = arith.constant 255 : i32
      %151 = tpu.dynamic_rotate %149 by %c255_i32 dim 1 : vector<8x256xf32>, i32 -> vector<8x256xf32>
      %152 = arith.select %20, %150, %151 : vector<8x256xi1>, vector<8x256xf32>
      %c241_i32 = arith.constant 241 : i32
      %153 = tpu.dynamic_rotate %149 by %c241_i32 dim 1 : vector<8x256xf32>, i32 -> vector<8x256xf32>
      %c1_i32_104 = arith.constant 1 : i32
      %154 = tpu.dynamic_rotate %149 by %c1_i32_104 dim 1 : vector<8x256xf32>, i32 -> vector<8x256xf32>
      %155 = arith.select %18, %153, %154 : vector<8x256xi1>, vector<8x256xf32>
      %c16_i32_105 = arith.constant 16 : i32
      %156 = tpu.dynamic_rotate %155 by %c16_i32_105 dim 1 : vector<8x256xf32>, i32 -> vector<8x256xf32>
      %c16_i32_106 = arith.constant 16 : i32
      %157 = tpu.dynamic_rotate %149 by %c16_i32_106 dim 1 : vector<8x256xf32>, i32 -> vector<8x256xf32>
      %c16_i32_107 = arith.constant 16 : i32
      %158 = tpu.dynamic_rotate %152 by %c16_i32_107 dim 1 : vector<8x256xf32>, i32 -> vector<8x256xf32>
      %c240_i32 = arith.constant 240 : i32
      %159 = tpu.dynamic_rotate %155 by %c240_i32 dim 1 : vector<8x256xf32>, i32 -> vector<8x256xf32>
      %c240_i32_108 = arith.constant 240 : i32
      %160 = tpu.dynamic_rotate %149 by %c240_i32_108 dim 1 : vector<8x256xf32>, i32 -> vector<8x256xf32>
      %c240_i32_109 = arith.constant 240 : i32
      %161 = tpu.dynamic_rotate %152 by %c240_i32_109 dim 1 : vector<8x256xf32>, i32 -> vector<8x256xf32>
      %162 = tpu.concatenate %156, %157, %158, %155, %149, %152, %159, %160, %161 in 0 : vector<8x256xf32>, vector<8x256xf32>, vector<8x256xf32>, vector<8x256xf32>, vector<8x256xf32>, vector<8x256xf32>, vector<8x256xf32>, vector<8x256xf32>, vector<8x256xf32> -> vector<72x256xf32>
      %cst = arith.constant dense<0.000000e+00> : vector<72x256xf32>
      %163 = tpu.matmul %21, %162, %cst {dimension_numbers = #tpu.dot_dimension_numbers<[1], [0], [0], [1], [0, 0, 1, 1], [], []>} : vector<72x72xf32>, vector<72x256xf32>, vector<72x256xf32> -> vector<72x256xf32>
      %164 = vector.extract_strided_slice %163 {offsets = [64, 0], sizes = [8, 256], strides = [1, 1]} : vector<72x256xf32> to vector<8x256xf32>
      %165 = vector.extract_strided_slice %163 {offsets = [0, 0], sizes = [64, 256], strides = [1, 1]} : vector<72x256xf32> to vector<64x256xf32>
      %166 = arith.addf %165, %25 : vector<64x256xf32>
      %167 = math.tanh %166 : vector<64x256xf32>
      %cst_110 = arith.constant dense<0.000000e+00> : vector<72x256xf32>
      %168 = tpu.matmul %22, %167, %cst_110 {dimension_numbers = #tpu.dot_dimension_numbers<[1], [0], [0], [1], [0, 0, 1, 1], [], []>} : vector<72x64xf32>, vector<64x256xf32>, vector<72x256xf32> -> vector<72x256xf32>
      %169 = vector.extract_strided_slice %168 {offsets = [0, 0], sizes = [8, 256], strides = [1, 1]} : vector<72x256xf32> to vector<8x256xf32>
      %c1_i32_111 = arith.constant 1 : i32
      %170 = tpu.dynamic_rotate %169 by %c1_i32_111 dim 1 : vector<8x256xf32>, i32 -> vector<8x256xf32>
      %c17_i32 = arith.constant 17 : i32
      %171 = tpu.dynamic_rotate %169 by %c17_i32 dim 1 : vector<8x256xf32>, i32 -> vector<8x256xf32>
      %172 = arith.select %18, %170, %171 : vector<8x256xi1>, vector<8x256xf32>
      %173 = arith.addf %28, %172 : vector<8x256xf32>
      %174 = vector.extract_strided_slice %168 {offsets = [8, 0], sizes = [8, 256], strides = [1, 1]} : vector<72x256xf32> to vector<8x256xf32>
      %c16_i32_112 = arith.constant 16 : i32
      %175 = tpu.dynamic_rotate %174 by %c16_i32_112 dim 1 : vector<8x256xf32>, i32 -> vector<8x256xf32>
      %176 = arith.addf %173, %175 : vector<8x256xf32>
      %177 = vector.extract_strided_slice %168 {offsets = [16, 0], sizes = [8, 256], strides = [1, 1]} : vector<72x256xf32> to vector<8x256xf32>
      %c31_i32 = arith.constant 31 : i32
      %178 = tpu.dynamic_rotate %177 by %c31_i32 dim 1 : vector<8x256xf32>, i32 -> vector<8x256xf32>
      %c15_i32_113 = arith.constant 15 : i32
      %179 = tpu.dynamic_rotate %177 by %c15_i32_113 dim 1 : vector<8x256xf32>, i32 -> vector<8x256xf32>
      %180 = arith.select %20, %178, %179 : vector<8x256xi1>, vector<8x256xf32>
      %181 = arith.addf %176, %180 : vector<8x256xf32>
      %182 = vector.extract_strided_slice %168 {offsets = [24, 0], sizes = [8, 256], strides = [1, 1]} : vector<72x256xf32> to vector<8x256xf32>
      %c241_i32_114 = arith.constant 241 : i32
      %183 = tpu.dynamic_rotate %182 by %c241_i32_114 dim 1 : vector<8x256xf32>, i32 -> vector<8x256xf32>
      %c1_i32_115 = arith.constant 1 : i32
      %184 = tpu.dynamic_rotate %182 by %c1_i32_115 dim 1 : vector<8x256xf32>, i32 -> vector<8x256xf32>
      %185 = arith.select %18, %183, %184 : vector<8x256xi1>, vector<8x256xf32>
      %186 = arith.addf %181, %185 : vector<8x256xf32>
      %187 = vector.extract_strided_slice %168 {offsets = [32, 0], sizes = [8, 256], strides = [1, 1]} : vector<72x256xf32> to vector<8x256xf32>
      %188 = arith.addf %186, %187 : vector<8x256xf32>
      %189 = vector.extract_strided_slice %168 {offsets = [40, 0], sizes = [8, 256], strides = [1, 1]} : vector<72x256xf32> to vector<8x256xf32>
      %c15_i32_116 = arith.constant 15 : i32
      %190 = tpu.dynamic_rotate %189 by %c15_i32_116 dim 1 : vector<8x256xf32>, i32 -> vector<8x256xf32>
      %c255_i32_117 = arith.constant 255 : i32
      %191 = tpu.dynamic_rotate %189 by %c255_i32_117 dim 1 : vector<8x256xf32>, i32 -> vector<8x256xf32>
      %192 = arith.select %20, %190, %191 : vector<8x256xi1>, vector<8x256xf32>
      %193 = arith.addf %188, %192 : vector<8x256xf32>
      %194 = vector.extract_strided_slice %168 {offsets = [48, 0], sizes = [8, 256], strides = [1, 1]} : vector<72x256xf32> to vector<8x256xf32>
      %c225_i32 = arith.constant 225 : i32
      %195 = tpu.dynamic_rotate %194 by %c225_i32 dim 1 : vector<8x256xf32>, i32 -> vector<8x256xf32>
      %c241_i32_118 = arith.constant 241 : i32
      %196 = tpu.dynamic_rotate %194 by %c241_i32_118 dim 1 : vector<8x256xf32>, i32 -> vector<8x256xf32>
      %197 = arith.select %18, %195, %196 : vector<8x256xi1>, vector<8x256xf32>
      %198 = arith.addf %193, %197 : vector<8x256xf32>
      %199 = vector.extract_strided_slice %168 {offsets = [56, 0], sizes = [8, 256], strides = [1, 1]} : vector<72x256xf32> to vector<8x256xf32>
      %c240_i32_119 = arith.constant 240 : i32
      %200 = tpu.dynamic_rotate %199 by %c240_i32_119 dim 1 : vector<8x256xf32>, i32 -> vector<8x256xf32>
      %201 = arith.addf %198, %200 : vector<8x256xf32>
      %202 = vector.extract_strided_slice %168 {offsets = [64, 0], sizes = [8, 256], strides = [1, 1]} : vector<72x256xf32> to vector<8x256xf32>
      %c255_i32_120 = arith.constant 255 : i32
      %203 = tpu.dynamic_rotate %202 by %c255_i32_120 dim 1 : vector<8x256xf32>, i32 -> vector<8x256xf32>
      %c239_i32 = arith.constant 239 : i32
      %204 = tpu.dynamic_rotate %202 by %c239_i32 dim 1 : vector<8x256xf32>, i32 -> vector<8x256xf32>
      %205 = arith.select %20, %203, %204 : vector<8x256xi1>, vector<8x256xf32>
      %206 = arith.addf %201, %205 : vector<8x256xf32>
      %207 = arith.addf %164, %206 : vector<8x256xf32>
      %208 = arith.addf %149, %207 : vector<8x256xf32>
      %c0_121 = arith.constant 0 : index
      %c0_122 = arith.constant 0 : index
      %209 = vector.load %arg8[%c0_121, %c0_122] : memref<8x256xf32, #tpu.memory_space<vmem>>, vector<8x256xf32>
      tpu.vector_store %arg8[%c0_121, %c0_122], %208 {strides = array<i32>} : memref<8x256xf32, #tpu.memory_space<vmem>>, vector<8x256xf32>,
    } else {
    }
    %c0_95 = arith.constant 0 : index
    %c0_96 = arith.constant 0 : index
    %144 = vector.load %arg8[%c0_95, %c0_96] : memref<8x256xf32, #tpu.memory_space<vmem>>, vector<8x256xf32>
    %c0_97 = arith.constant 0 : index
    %145 = arith.index_cast %c7_i32 : i32 to index
    %c0_98 = arith.constant 0 : index
    %c0_99 = arith.constant 0 : index
    %146 = vector.load %arg7[%c0_97, %145, %c0_98, %c0_99] : memref<1x8x8x256xf32, #tpu.memory_space<vmem>>, vector<1x1x8x256xf32>
    %147 = vector.shape_cast %146 : vector<1x1x8x256xf32> to vector<8x256xf32>
    %148 = vector.shape_cast %144 : vector<8x256xf32> to vector<1x1x8x256xf32>
    tpu.vector_store %arg7[%c0_97, %145, %c0_98, %c0_99], %148 {strides = array<i32>} : memref<1x8x8x256xf32, #tpu.memory_space<vmem>>, vector<1x1x8x256xf32>,
    %c8_i32_100 = arith.constant 8 : i32
    return
  }
  func.func @transform_0(%arg0: i32, %arg1: i32) -> (i32, i32) {
    %c0_i32 = arith.constant 0 : i32
    %c0_i32_0 = arith.constant 0 : i32
    %c0_i32_1 = arith.constant 0 : i32
    return %c0_i32, %c0_i32_0 : i32, i32
  }
  func.func @transform_1(%arg0: i32, %arg1: i32) -> (i32, i32) {
    %c0_i32 = arith.constant 0 : i32
    %c0_i32_0 = arith.constant 0 : i32
    %c0_i32_1 = arith.constant 0 : i32
    return %c0_i32, %c0_i32_0 : i32, i32
  }
  func.func @transform_2(%arg0: i32, %arg1: i32) -> (i32, i32) {
    %c0_i32 = arith.constant 0 : i32
    %c0_i32_0 = arith.constant 0 : i32
    %c0_i32_1 = arith.constant 0 : i32
    return %c0_i32, %c0_i32_0 : i32, i32
  }
  func.func @transform_3(%arg0: i32, %arg1: i32) -> (i32, i32) {
    %c0_i32 = arith.constant 0 : i32
    %c0_i32_0 = arith.constant 0 : i32
    %c0_i32_1 = arith.constant 0 : i32
    return %c0_i32, %c0_i32_0 : i32, i32
  }
  func.func @transform_4(%arg0: i32, %arg1: i32) -> (i32, i32, i32) {
    %c0_i32 = arith.constant 0 : i32
    %c0_i32_0 = arith.constant 0 : i32
    %c0_i32_1 = arith.constant 0 : i32
    return %arg0, %c0_i32, %c0_i32_0 : i32, i32, i32
  }
  func.func @transform_5(%arg0: i32, %arg1: i32) -> (i32, i32, i32, i32) {
    %c0_i32 = arith.constant 0 : i32
    %c0_i32_0 = arith.constant 0 : i32
    %c0_i32_1 = arith.constant 0 : i32
    return %arg0, %arg1, %c0_i32, %c0_i32_0 : i32, i32, i32, i32
  }
}

</mosaic_0001>

<llo_original>
// kernel: tpu_custom_call.1
$region0: #{tpu_custom_call.1}
  #allocation0 [shape = 'u32[]', space=smem, size = 0x4, offset = 0x4, fixed_abs, tag = 'smem constant byte address 0x4 - core index']
  #allocation1 [shape = 'u32[144,128]{1,0:T(1,128)}', space=vmem, size = 0x12000, scoped, tag = 'internal scratch']
  #allocation2 [shape = 'f32[8,256]{1,0:T(8,128)}', space=vmem, size = 0x2000, scoped, tag = 'scratch operand']
  %s0 = inlined_call_operand.vmem [shape: f32[72,72], index: 0, kind: input, shape index: {}]
  %s1 = inlined_call_operand.vmem [shape: f32[64,1], index: 1, kind: input, shape index: {}]
  %s2 = inlined_call_operand.vmem [shape: f32[72,64], index: 2, kind: input, shape index: {}]
  %s3 = inlined_call_operand.vmem [shape: f32[8,1], index: 3, kind: input, shape index: {}]
  %s4 = inlined_call_operand.vmem [shape: f32[1,8,256], index: 4, kind: input, shape index: {}]
  %s5 = inlined_call_operand.hbm [shape: f32[1,8,8,256], index: 5, kind: output, shape index: {}]
  %s6 = sld [smem:[#allocation0]]
  $region94: #{tpu_custom_call.1} parent=0
    _
  %s8 = ssub.s32 1, %s6
  %s9 = scalar_select 0, %s8, %s6
  $region1: #{tpu_custom_call.1} parent=0
    #allocation3 [shape = 'u8[65536]{0}', space=vmem, size = 0x10000, scoped, tag = 'output window, operand 0, single buffered']
    #allocation4 [shape = 's32[1]{0}', space=sflag, size = 0x4, scoped, tag = 'scoped memory for tpu_custom_call.1']
    %10 = vsyncpa [#allocation4], 0
    // Predicated region
    $region2: #{tpu_custom_call.1} parent=1 // pred_check
      _
    $region3: #{tpu_custom_call.1} parent=1 // pred_check_branch
      %12 = sbr.rel (0) target = $region5
    $region4: #{tpu_custom_call.1} parent=1 // pred_region
      _
    $region5: #{tpu_custom_call.1} parent=1 // pred_fallthru
      _
    // Predicated region
    $region6: #{tpu_custom_call.1} parent=1 // pred_check
      _
    $region7: #{tpu_custom_call.1} parent=1 // pred_check_branch
      %14 = sbr.rel (0) target = $region9
    $region8: #{tpu_custom_call.1} parent=1 // pred_region
      _
    $region9: #{tpu_custom_call.1} parent=1 // pred_fallthru
      _
    // Predicated region
    $region10: #{tpu_custom_call.1} parent=1 // pred_check
      _
    $region11: #{tpu_custom_call.1} parent=1 // pred_check_branch
      %16 = sbr.rel (0) target = $region13
    $region12: #{tpu_custom_call.1} parent=1 // pred_region
      _
    $region13: #{tpu_custom_call.1} parent=1 // pred_fallthru
      _
    // Predicated region
    $region14: #{tpu_custom_call.1} parent=1 // pred_check
      _
    $region15: #{tpu_custom_call.1} parent=1 // pred_check_branch
      %18 = sbr.rel (0) target = $region17
    $region16: #{tpu_custom_call.1} parent=1 // pred_region
      _
    $region17: #{tpu_custom_call.1} parent=1 // pred_fallthru
      _
    // Predicated region
    $region18: #{tpu_custom_call.1} parent=1 // pred_check
      _
    $region19: #{tpu_custom_call.1} parent=1 // pred_check_branch
      %20 = sbr.rel (0) target = $region21
    $region20: #{tpu_custom_call.1} parent=1 // pred_region
      _
    $region21: #{tpu_custom_call.1} parent=1 // pred_fallthru
      _
    %v21 = vlaneseq
    %v22 = vand.u32 %v21, 127
    %v23 = vadd.s32 %v22, 128
    %vm24 = vcmp.lt.s32.totalorder %v22, 0
    %v25 = vsub.s32 0, %v22
    %v26 = vsel %vm24, %v25, %v22
    %v27 = vshrl.u32 %v26, 4
    %v28 = vand.u32 %v26, 15
    %v29 = vsub.s32 0, %v28
    %v30 = vsel %vm24, %v29, %v28
    %vm31 = vcmp.lt.s32.totalorder %v23, 0
    %v32 = vsub.s32 0, %v23
    %v33 = vsel %vm31, %v32, %v23
    %v34 = vshrl.u32 %v33, 4
    %v35 = vand.u32 %v33, 15
    %v36 = vsub.s32 0, %v35
    %v37 = vsel %vm31, %v36, %v35
    %vm38 = vcmp.ne.s32.totalorder %v30, 0
    %vm39 = vcmp.ne.s32.totalorder %v37, 0
    %vm40 = vcmp.lt.s32.totalorder %v30, 0
    %vm41 = vcmp.lt.s32.totalorder %v37, 0
    %vm42 = vmand %vm40, %vm38
    %vm43 = vmand %vm41, %vm39
    %v44 = vadd.s32 %v30, 16
    %v45 = vadd.s32 %v37, 16
    %v46 = vsel %vm42, %v44, %v30
    %v47 = vsel %vm43, %v45, %v37
    %vm48 = vcmp.eq.s32.totalorder %v46, 0
    %vm49 = vcmp.eq.s32.totalorder %v47, 0
    %vm50 = vcmp.eq.s32.totalorder %v46, 15
    %vm51 = vcmp.eq.s32.totalorder %v47, 15
    %v52 = vld [vmem:[%s0] sm:$0xff]
    %v53 = vld [vmem:[%s0 + $0x8] sm:$0xff]
    %v54 = vld [vmem:[%s0 + $0x10] sm:$0xff]
    %v55 = vld [vmem:[%s0 + $0x18] sm:$0xff]
    %v56 = vld [vmem:[%s0 + $0x20] sm:$0xff]
    %v57 = vld [vmem:[%s0 + $0x28] sm:$0xff]
    %v58 = vld [vmem:[%s0 + $0x30] sm:$0xff]
    %v59 = vld [vmem:[%s0 + $0x38] sm:$0xff]
    %v60 = vld [vmem:[%s0 + $0x40] sm:$0xff]
    %v61 = vld [vmem:[%s2] sm:$0xff]
    %v62 = vld [vmem:[%s2 + $0x8] sm:$0xff]
    %v63 = vld [vmem:[%s2 + $0x10] sm:$0xff]
    %v64 = vld [vmem:[%s2 + $0x18] sm:$0xff]
    %v65 = vld [vmem:[%s2 + $0x20] sm:$0xff]
    %v66 = vld [vmem:[%s2 + $0x28] sm:$0xff]
    %v67 = vld [vmem:[%s2 + $0x30] sm:$0xff]
    %v68 = vld [vmem:[%s2 + $0x38] sm:$0xff]
    %v69 = vld [vmem:[%s2 + $0x40] sm:$0xff]
    %v70 = vld [vmem:[%s1] sm:$0xff]
    %v71 = vld [vmem:[%s1 + $0x8] sm:$0xff]
    %v72 = vld [vmem:[%s1 + $0x10] sm:$0xff]
    %v73 = vld [vmem:[%s1 + $0x18] sm:$0xff]
    %v74 = vld [vmem:[%s1 + $0x20] sm:$0xff]
    %v75 = vld [vmem:[%s1 + $0x28] sm:$0xff]
    %v76 = vld [vmem:[%s1 + $0x30] sm:$0xff]
    %v77 = vld [vmem:[%s1 + $0x38] sm:$0xff]
    %79 = vset.pattern.permute.xlu0 0
    %80 = vperm.xlu0 %79, %v70
    %v81 = vpop.permute.xlu0 %80
    %84 = vset.pattern.permute.xlu0 0
    %85 = vperm.xlu0 %84, %v71
    %v86 = vpop.permute.xlu0 %85
    %89 = vset.pattern.permute.xlu0 0
    %90 = vperm.xlu0 %89, %v72
    %v91 = vpop.permute.xlu0 %90
    %94 = vset.pattern.permute.xlu0 0
    %95 = vperm.xlu0 %94, %v73
    %v96 = vpop.permute.xlu0 %95
    %99 = vset.pattern.permute.xlu0 0
    %100 = vperm.xlu0 %99, %v74
    %v101 = vpop.permute.xlu0 %100
    %104 = vset.pattern.permute.xlu0 0
    %105 = vperm.xlu0 %104, %v75
    %v106 = vpop.permute.xlu0 %105
    %109 = vset.pattern.permute.xlu0 0
    %110 = vperm.xlu0 %109, %v76
    %v111 = vpop.permute.xlu0 %110
    %114 = vset.pattern.permute.xlu0 0
    %115 = vperm.xlu0 %114, %v77
    %v116 = vpop.permute.xlu0 %115
    %v118 = vld [vmem:[%s3] sm:$0xff]
    %120 = vset.pattern.permute.xlu0 0
    %121 = vperm.xlu0 %120, %v118
    %v122 = vpop.permute.xlu0 %121
    %s124 = smul.u32 0, 8
    %p125 = scmp.eq.s32.totalorder %s124, 0
    // Predicated region
    $region22: #{tpu_custom_call.1} parent=1 // pred_check
      %p126 = pneg %p125
    $region23: #{tpu_custom_call.1} parent=1 // pred_check_branch
      %128 = sbr.rel (%p126) target = $region25
    $region24: #{tpu_custom_call.1} parent=1 // pred_region
      %v129 = vld [vmem:[%s4] sm:$0xff]
      %v130 = vld [vmem:[%s4 + $0x8] sm:$0xff]
      %131 = vst [vmem:[#allocation2] sm:$0xff] %v129
      %132 = vst [vmem:[#allocation2 + $0x8] sm:$0xff] %v130
    $region25: #{tpu_custom_call.1} parent=1 // pred_fallthru
      _
    %p133 = scmp.gt.s32.totalorder %s124, 0
    %p134 = scmp.lt.s32.totalorder %s124, 8
    %p135 = pnand %p133, %p134
    %p136 = pneg %p135
    // Predicated region
    $region26: #{tpu_custom_call.1} parent=1 // pred_check
      _
    $region27: #{tpu_custom_call.1} parent=1 // pred_check_branch
      %138 = sbr.rel (%p135) target = $region29
    $region28: #{tpu_custom_call.1} parent=1 // pred_region
      %v139 = vld [vmem:[#allocation2] sm:$0xff]
      %v140 = vld [vmem:[#allocation2 + $0x8] sm:$0xff]
      %141 = vrot.lane.b32.xlu0 %v139, 15
      %v142 = vpop.permute.xlu0 %141
      %143 = vrot.lane.b32.xlu0 %v140, 15
      %v144 = vpop.permute.xlu0 %143
      %vm145 = vcmp.lt.s32.totalorder %v22, 15
      %v146 = vsel %vm145, %v142, %v144
      %v147 = vsel %vm145, %v144, %v142
      %148 = vrot.lane.b32.xlu0 %v139, 127
      %v149 = vpop.permute.xlu0 %148
      %150 = vrot.lane.b32.xlu0 %v140, 127
      %v151 = vpop.permute.xlu0 %150
      %vm152 = vcmp.lt.s32.totalorder %v22, 127
      %v153 = vsel %vm152, %v149, %v151
      %v154 = vsel %vm152, %v151, %v149
      %v155 = vsel %vm50, %v147, %v153
      %v156 = vsel %vm51, %v146, %v154
      %157 = vrot.lane.b32.xlu0 %v139, 113
      %v158 = vpop.permute.xlu0 %157
      %159 = vrot.lane.b32.xlu0 %v140, 113
      %v160 = vpop.permute.xlu0 %159
      %vm161 = vcmp.lt.s32.totalorder %v22, 113
      %v162 = vsel %vm161, %v158, %v160
      %v163 = vsel %vm161, %v160, %v158
      %164 = vrot.lane.b32.xlu0 %v139, 1
      %v165 = vpop.permute.xlu0 %164
      %166 = vrot.lane.b32.xlu0 %v140, 1
      %v167 = vpop.permute.xlu0 %166
      %vm168 = vcmp.lt.s32.totalorder %v22, 1
      %v169 = vsel %vm168, %v165, %v167
      %v170 = vsel %vm168, %v167, %v165
      %v171 = vsel %vm48, %v162, %v170
      %v172 = vsel %vm49, %v163, %v169
      %173 = vrot.lane.b32.xlu0 %v171, 16
      %v174 = vpop.permute.xlu0 %173
      %175 = vrot.lane.b32.xlu0 %v172, 16
      %v176 = vpop.permute.xlu0 %175
      %vm177 = vcmp.lt.s32.totalorder %v22, 16
      %v178 = vsel %vm177, %v174, %v176
      %v179 = vsel %vm177, %v176, %v174
      %180 = vrot.lane.b32.xlu0 %v139, 16
      %v181 = vpop.permute.xlu0 %180
      %182 = vrot.lane.b32.xlu0 %v140, 16
      %v183 = vpop.permute.xlu0 %182
      %v184 = vsel %vm177, %v181, %v183
      %v185 = vsel %vm177, %v183, %v181
      %186 = vrot.lane.b32.xlu0 %v155, 16
      %v187 = vpop.permute.xlu0 %186
      %188 = vrot.lane.b32.xlu0 %v156, 16
      %v189 = vpop.permute.xlu0 %188
      %v190 = vsel %vm177, %v187, %v189
      %v191 = vsel %vm177, %v189, %v187
      %192 = vrot.lane.b32.xlu0 %v171, 112
      %v193 = vpop.permute.xlu0 %192
      %194 = vrot.lane.b32.xlu0 %v172, 112
      %v195 = vpop.permute.xlu0 %194
      %vm196 = vcmp.lt.s32.totalorder %v22, 112
      %v197 = vsel %vm196, %v193, %v195
      %v198 = vsel %vm196, %v195, %v193
      %199 = vrot.lane.b32.xlu0 %v139, 112
      %v200 = vpop.permute.xlu0 %199
      %201 = vrot.lane.b32.xlu0 %v140, 112
      %v202 = vpop.permute.xlu0 %201
      %v203 = vsel %vm196, %v200, %v202
      %v204 = vsel %vm196, %v202, %v200
      %205 = vrot.lane.b32.xlu0 %v155, 112
      %v206 = vpop.permute.xlu0 %205
      %207 = vrot.lane.b32.xlu0 %v156, 112
      %v208 = vpop.permute.xlu0 %207
      %v209 = vsel %vm196, %v206, %v208
      %v210 = vsel %vm196, %v208, %v206
      %vm211 = vcmask 588800
      %v213 = vsel %vm211, %v52, 0
      %v216 = vsel %vm211, %v53, 0
      %v219 = vsel %vm211, %v54, 0
      %v222 = vsel %vm211, %v55, 0
      %v225 = vsel %vm211, %v56, 0
      %v228 = vsel %vm211, %v57, 0
      %v231 = vsel %vm211, %v58, 0
      %v234 = vsel %vm211, %v59, 0
      %v237 = vsel %vm211, %v60, 0
      %239 = vmatprep.subr.mxu0 0.0
      %240 = vmatpush1.msra.mxu0 0.0
      %241 = vmatprep.subr.mxu0 0.0
      %242 = vmatpush1.msra.mxu0 0.0
      %243 = vmatprep.subr.mxu0 0.0
      %244 = vmatpush1.msra.mxu0 0.0
      %245 = vmatprep.subr.mxu0 0.0
      %246 = vmatpush1.msra.mxu0 0.0
      %247 = vmatprep.subr.mxu0 0.0
      %248 = vmatpush1.msra.mxu0 0.0
      %249 = vmatprep.subr.mxu0 0.0
      %250 = vmatpush1.msra.mxu0 0.0
      %251 = vmatprep.subr.mxu0 0.0
      %252 = vmatpush1.msra.mxu0 0.0
      %253 = vmatprep.subr.mxu0 %v210
      %254 = vmatpush1.msra.mxu0 %v209
      %255 = vmatprep.subr.mxu0 %v204
      %256 = vmatpush1.msra.mxu0 %v203
      %257 = vmatprep.subr.mxu0 %v198
      %258 = vmatpush1.msra.mxu0 %v197
      %259 = vmatprep.subr.mxu0 %v156
      %260 = vmatpush1.msra.mxu0 %v155
      %261 = vmatprep.subr.mxu0 %v140
      %262 = vmatpush1.msra.mxu0 %v139
      %263 = vmatprep.subr.mxu0 %v172
      %264 = vmatpush1.msra.mxu0 %v171
      %265 = vmatprep.subr.mxu0 %v190
      %266 = vmatpush1.msra.mxu0 %v191
      %267 = vmatprep.subr.mxu0 %v184
      %268 = vmatpush1.msra.mxu0 %v185
      %269 = vmatprep.subr.mxu0 %v178
      %270 = vmatpush1.msra.mxu0 %v179
      %271 = vmatprep.subr.mxu0 0.0
      %272 = vmatpush2.msra.mxu0 0.0
      %273 = vmatprep.subr.mxu0 0.0
      %274 = vmatpush2.msra.mxu0 0.0
      %275 = vmatprep.subr.mxu0 0.0
      %276 = vmatpush2.msra.mxu0 0.0
      %277 = vmatprep.subr.mxu0 0.0
      %278 = vmatpush2.msra.mxu0 0.0
      %279 = vmatprep.subr.mxu0 0.0
      %280 = vmatpush2.msra.mxu0 0.0
      %281 = vmatprep.subr.mxu0 0.0
      %282 = vmatpush2.msra.mxu0 0.0
      %283 = vmatprep.subr.mxu0 0.0
      %284 = vmatpush2.msra.mxu0 0.0
      %285 = vmatprep.subr.mxu0 0.0
      %286 = vmatpush2.msra.mxu0 0.0
      %287 = vmatprep.subr.mxu0 0.0
      %288 = vmatpush2.msra.mxu0 0.0
      %289 = vmatprep.subr.mxu0 0.0
      %290 = vmatpush2.msra.mxu0 0.0
      %291 = vmatprep.subr.mxu0 0.0
      %292 = vmatpush2.msra.mxu0 0.0
      %293 = vmatprep.subr.mxu0 0.0
      %294 = vmatpush2.msra.mxu0 0.0
      %295 = vmatprep.subr.mxu0 0.0
      %296 = vmatpush2.msra.mxu0 0.0
      %297 = vmatprep.subr.mxu0 0.0
      %298 = vmatpush2.msra.mxu0 0.0
      %299 = vmatprep.subr.mxu0 0.0
      %300 = vmatpush2.msra.mxu0 0.0
      %301 = vmatprep.subr.mxu0 0.0
      %302 = vmatpush2.msra.mxu0 0.0
      %303 = vmatprep.mubr.f32.mxu0 0.0
      %304 = vmatmul.mubr.f32.gmra.mxu0 %v213
      %v305 = vpop.f32.mrf.mxu0
      %v306 = vadd.f32 0.0, %v305
      %v307 = vpop.f32.mrf.mxu0
      %v308 = vadd.f32 0.0, %v307
      %309 = vmatprep.mubr.f32.mxu0 0.0
      %310 = vmatmul.mubr.f32.gmra.mxu0 %v216
      %v311 = vpop.f32.mrf.mxu0
      %v312 = vadd.f32 0.0, %v311
      %v313 = vpop.f32.mrf.mxu0
      %v314 = vadd.f32 0.0, %v313
      %315 = vmatprep.mubr.f32.mxu0 0.0
      %316 = vmatmul.mubr.f32.gmra.mxu0 %v219
      %v317 = vpop.f32.mrf.mxu0
      %v318 = vadd.f32 0.0, %v317
      %v319 = vpop.f32.mrf.mxu0
      %v320 = vadd.f32 0.0, %v319
      %321 = vmatprep.mubr.f32.mxu0 0.0
      %322 = vmatmul.mubr.f32.gmra.mxu0 %v222
      %v323 = vpop.f32.mrf.mxu0
      %v324 = vadd.f32 0.0, %v323
      %v325 = vpop.f32.mrf.mxu0
      %v326 = vadd.f32 0.0, %v325
      %327 = vmatprep.mubr.f32.mxu0 0.0
      %328 = vmatmul.mubr.f32.gmra.mxu0 %v225
      %v329 = vpop.f32.mrf.mxu0
      %v330 = vadd.f32 0.0, %v329
      %v331 = vpop.f32.mrf.mxu0
      %v332 = vadd.f32 0.0, %v331
      %333 = vmatprep.mubr.f32.mxu0 0.0
      %334 = vmatmul.mubr.f32.gmra.mxu0 %v228
      %v335 = vpop.f32.mrf.mxu0
      %v336 = vadd.f32 0.0, %v335
      %v337 = vpop.f32.mrf.mxu0
      %v338 = vadd.f32 0.0, %v337
      %339 = vmatprep.mubr.f32.mxu0 0.0
      %340 = vmatmul.mubr.f32.gmra.mxu0 %v231
      %v341 = vpop.f32.mrf.mxu0
      %v342 = vadd.f32 0.0, %v341
      %v343 = vpop.f32.mrf.mxu0
      %v344 = vadd.f32 0.0, %v343
      %345 = vmatprep.mubr.f32.mxu0 0.0
      %346 = vmatmul.mubr.f32.gmra.mxu0 %v234
      %v347 = vpop.f32.mrf.mxu0
      %v348 = vadd.f32 0.0, %v347
      %v349 = vpop.f32.mrf.mxu0
      %v350 = vadd.f32 0.0, %v349
      %351 = vmatprep.mubr.f32.mxu0 0.0
      %352 = vmatmul.mubr.f32.gmra.mxu0 %v237
      %v353 = vpop.f32.mrf.mxu0
      %v354 = vadd.f32 0.0, %v353
      %v355 = vpop.f32.mrf.mxu0
      %v356 = vadd.f32 0.0, %v355
      %357 = vdwg.mxu0
      %v358 = vadd.f32 %v306, %v81
      %v359 = vadd.f32 %v308, %v81
      %v360 = vadd.f32 %v312, %v86
      %v361 = vadd.f32 %v314, %v86
      %v362 = vadd.f32 %v318, %v91
      %v363 = vadd.f32 %v320, %v91
      %v364 = vadd.f32 %v324, %v96
      %v365 = vadd.f32 %v326, %v96
      %v366 = vadd.f32 %v330, %v101
      %v367 = vadd.f32 %v332, %v101
      %v368 = vadd.f32 %v336, %v106
      %v369 = vadd.f32 %v338, %v106
      %v370 = vadd.f32 %v342, %v111
      %v371 = vadd.f32 %v344, %v111
      %v372 = vadd.f32 %v348, %v116
      %v373 = vadd.f32 %v350, %v116
      %v374 = vtanh.pop %v358
      %v375 = vtanh.pop %v359
      %v376 = vtanh.pop %v360
      %v377 = vtanh.pop %v361
      %v378 = vtanh.pop %v362
      %v379 = vtanh.pop %v363
      %v380 = vtanh.pop %v364
      %v381 = vtanh.pop %v365
      %v382 = vtanh.pop %v366
      %v383 = vtanh.pop %v367
      %v384 = vtanh.pop %v368
      %v385 = vtanh.pop %v369
      %v386 = vtanh.pop %v370
      %v387 = vtanh.pop %v371
      %v388 = vtanh.pop %v372
      %v389 = vtanh.pop %v373
      %vm390 = vcmask 523264
      %v392 = vsel %vm390, %v61, 0
      %v395 = vsel %vm390, %v62, 0
      %v398 = vsel %vm390, %v63, 0
      %v401 = vsel %vm390, %v64, 0
      %v404 = vsel %vm390, %v65, 0
      %v407 = vsel %vm390, %v66, 0
      %v410 = vsel %vm390, %v67, 0
      %v413 = vsel %vm390, %v68, 0
      %v416 = vsel %vm390, %v69, 0
      %418 = vmatprep.subr.mxu0 0.0
      %419 = vmatpush1.msra.mxu0 0.0
      %420 = vmatprep.subr.mxu0 0.0
      %421 = vmatpush1.msra.mxu0 0.0
      %422 = vmatprep.subr.mxu0 0.0
      %423 = vmatpush1.msra.mxu0 0.0
      %424 = vmatprep.subr.mxu0 0.0
      %425 = vmatpush1.msra.mxu0 0.0
      %426 = vmatprep.subr.mxu0 0.0
      %427 = vmatpush1.msra.mxu0 0.0
      %428 = vmatprep.subr.mxu0 0.0
      %429 = vmatpush1.msra.mxu0 0.0
      %430 = vmatprep.subr.mxu0 0.0
      %431 = vmatpush1.msra.mxu0 0.0
      %432 = vmatprep.subr.mxu0 0.0
      %433 = vmatpush1.msra.mxu0 0.0
      %434 = vmatprep.subr.mxu0 %v389
      %435 = vmatpush1.msra.mxu0 %v388
      %436 = vmatprep.subr.mxu0 %v387
      %437 = vmatpush1.msra.mxu0 %v386
      %438 = vmatprep.subr.mxu0 %v385
      %439 = vmatpush1.msra.mxu0 %v384
      %440 = vmatprep.subr.mxu0 %v383
      %441 = vmatpush1.msra.mxu0 %v382
      %442 = vmatprep.subr.mxu0 %v381
      %443 = vmatpush1.msra.mxu0 %v380
      %444 = vmatprep.subr.mxu0 %v379
      %445 = vmatpush1.msra.mxu0 %v378
      %446 = vmatprep.subr.mxu0 %v377
      %447 = vmatpush1.msra.mxu0 %v376
      %448 = vmatprep.subr.mxu0 %v375
      %449 = vmatpush1.msra.mxu0 %v374
      %450 = vmatprep.subr.mxu0 0.0
      %451 = vmatpush2.msra.mxu0 0.0
      %452 = vmatprep.subr.mxu0 0.0
      %453 = vmatpush2.msra.mxu0 0.0
      %454 = vmatprep.subr.mxu0 0.0
      %455 = vmatpush2.msra.mxu0 0.0
      %456 = vmatprep.subr.mxu0 0.0
      %457 = vmatpush2.msra.mxu0 0.0
      %458 = vmatprep.subr.mxu0 0.0
      %459 = vmatpush2.msra.mxu0 0.0
      %460 = vmatprep.subr.mxu0 0.0
      %461 = vmatpush2.msra.mxu0 0.0
      %462 = vmatprep.subr.mxu0 0.0
      %463 = vmatpush2.msra.mxu0 0.0
      %464 = vmatprep.subr.mxu0 0.0
      %465 = vmatpush2.msra.mxu0 0.0
      %466 = vmatprep.subr.mxu0 0.0
      %467 = vmatpush2.msra.mxu0 0.0
      %468 = vmatprep.subr.mxu0 0.0
      %469 = vmatpush2.msra.mxu0 0.0
      %470 = vmatprep.subr.mxu0 0.0
      %471 = vmatpush2.msra.mxu0 0.0
      %472 = vmatprep.subr.mxu0 0.0
      %473 = vmatpush2.msra.mxu0 0.0
      %474 = vmatprep.subr.mxu0 0.0
      %475 = vmatpush2.msra.mxu0 0.0
      %476 = vmatprep.subr.mxu0 0.0
      %477 = vmatpush2.msra.mxu0 0.0
      %478 = vmatprep.subr.mxu0 0.0
      %479 = vmatpush2.msra.mxu0 0.0
      %480 = vmatprep.subr.mxu0 0.0
      %481 = vmatpush2.msra.mxu0 0.0
      %482 = vmatprep.mubr.f32.mxu0 0.0
      %483 = vmatmul.mubr.f32.gmra.mxu0 %v392
      %v484 = vpop.f32.mrf.mxu0
      %v485 = vadd.f32 0.0, %v484
      %v486 = vpop.f32.mrf.mxu0
      %v487 = vadd.f32 0.0, %v486
      %488 = vmatprep.mubr.f32.mxu0 0.0
      %489 = vmatmul.mubr.f32.gmra.mxu0 %v395
      %v490 = vpop.f32.mrf.mxu0
      %v491 = vadd.f32 0.0, %v490
      %v492 = vpop.f32.mrf.mxu0
      %v493 = vadd.f32 0.0, %v492
      %494 = vmatprep.mubr.f32.mxu0 0.0
      %495 = vmatmul.mubr.f32.gmra.mxu0 %v398
      %v496 = vpop.f32.mrf.mxu0
      %v497 = vadd.f32 0.0, %v496
      %v498 = vpop.f32.mrf.mxu0
      %v499 = vadd.f32 0.0, %v498
      %500 = vmatprep.mubr.f32.mxu0 0.0
      %501 = vmatmul.mubr.f32.gmra.mxu0 %v401
      %v502 = vpop.f32.mrf.mxu0
      %v503 = vadd.f32 0.0, %v502
      %v504 = vpop.f32.mrf.mxu0
      %v505 = vadd.f32 0.0, %v504
      %506 = vmatprep.mubr.f32.mxu0 0.0
      %507 = vmatmul.mubr.f32.gmra.mxu0 %v404
      %v508 = vpop.f32.mrf.mxu0
      %v509 = vadd.f32 0.0, %v508
      %v510 = vpop.f32.mrf.mxu0
      %v511 = vadd.f32 0.0, %v510
      %512 = vmatprep.mubr.f32.mxu0 0.0
      %513 = vmatmul.mubr.f32.gmra.mxu0 %v407
      %v514 = vpop.f32.mrf.mxu0
      %v515 = vadd.f32 0.0, %v514
      %v516 = vpop.f32.mrf.mxu0
      %v517 = vadd.f32 0.0, %v516
      %518 = vmatprep.mubr.f32.mxu0 0.0
      %519 = vmatmul.mubr.f32.gmra.mxu0 %v410
      %v520 = vpop.f32.mrf.mxu0
      %v521 = vadd.f32 0.0, %v520
      %v522 = vpop.f32.mrf.mxu0
      %v523 = vadd.f32 0.0, %v522
      %524 = vmatprep.mubr.f32.mxu0 0.0
      %525 = vmatmul.mubr.f32.gmra.mxu0 %v413
      %v526 = vpop.f32.mrf.mxu0
      %v527 = vadd.f32 0.0, %v526
      %v528 = vpop.f32.mrf.mxu0
      %v529 = vadd.f32 0.0, %v528
      %530 = vmatprep.mubr.f32.mxu0 0.0
      %531 = vmatmul.mubr.f32.gmra.mxu0 %v416
      %v532 = vpop.f32.mrf.mxu0
      %v533 = vadd.f32 0.0, %v532
      %v534 = vpop.f32.mrf.mxu0
      %v535 = vadd.f32 0.0, %v534
      %536 = vdwg.mxu0
      %537 = vrot.lane.b32.xlu0 %v485, 1
      %v538 = vpop.permute.xlu0 %537
      %539 = vrot.lane.b32.xlu0 %v487, 1
      %v540 = vpop.permute.xlu0 %539
      %v541 = vsel %vm168, %v538, %v540
      %v542 = vsel %vm168, %v540, %v538
      %543 = vrot.lane.b32.xlu0 %v485, 17
      %v544 = vpop.permute.xlu0 %543
      %545 = vrot.lane.b32.xlu0 %v487, 17
      %v546 = vpop.permute.xlu0 %545
      %vm547 = vcmp.lt.s32.totalorder %v22, 17
      %v548 = vsel %vm547, %v544, %v546
      %v549 = vsel %vm547, %v546, %v544
      %v550 = vsel %vm48, %v542, %v549
      %v551 = vsel %vm49, %v541, %v548
      %v552 = vadd.f32 %v122, %v550
      %v553 = vadd.f32 %v122, %v551
      %554 = vrot.lane.b32.xlu0 %v491, 16
      %v555 = vpop.permute.xlu0 %554
      %556 = vrot.lane.b32.xlu0 %v493, 16
      %v557 = vpop.permute.xlu0 %556
      %v558 = vsel %vm177, %v555, %v557
      %v559 = vsel %vm177, %v557, %v555
      %v560 = vadd.f32 %v552, %v559
      %v561 = vadd.f32 %v553, %v558
      %562 = vrot.lane.b32.xlu0 %v497, 31
      %v563 = vpop.permute.xlu0 %562
      %564 = vrot.lane.b32.xlu0 %v499, 31
      %v565 = vpop.permute.xlu0 %564
      %vm566 = vcmp.lt.s32.totalorder %v22, 31
      %v567 = vsel %vm566, %v563, %v565
      %v568 = vsel %vm566, %v565, %v563
      %569 = vrot.lane.b32.xlu0 %v497, 15
      %v570 = vpop.permute.xlu0 %569
      %571 = vrot.lane.b32.xlu0 %v499, 15
      %v572 = vpop.permute.xlu0 %571
      %v573 = vsel %vm145, %v570, %v572
      %v574 = vsel %vm145, %v572, %v570
      %v575 = vsel %vm50, %v568, %v574
      %v576 = vsel %vm51, %v567, %v573
      %v577 = vadd.f32 %v560, %v575
      %v578 = vadd.f32 %v561, %v576
      %579 = vrot.lane.b32.xlu0 %v503, 113
      %v580 = vpop.permute.xlu0 %579
      %581 = vrot.lane.b32.xlu0 %v505, 113
      %v582 = vpop.permute.xlu0 %581
      %v583 = vsel %vm161, %v580, %v582
      %v584 = vsel %vm161, %v582, %v580
      %585 = vrot.lane.b32.xlu0 %v503, 1
      %v586 = vpop.permute.xlu0 %585
      %587 = vrot.lane.b32.xlu0 %v505, 1
      %v588 = vpop.permute.xlu0 %587
      %v589 = vsel %vm168, %v586, %v588
      %v590 = vsel %vm168, %v588, %v586
      %v591 = vsel %vm48, %v583, %v590
      %v592 = vsel %vm49, %v584, %v589
      %v593 = vadd.f32 %v577, %v591
      %v594 = vadd.f32 %v578, %v592
      %v595 = vadd.f32 %v593, %v509
      %v596 = vadd.f32 %v594, %v511
      %597 = vrot.lane.b32.xlu0 %v515, 15
      %v598 = vpop.permute.xlu0 %597
      %599 = vrot.lane.b32.xlu0 %v517, 15
      %v600 = vpop.permute.xlu0 %599
      %v601 = vsel %vm145, %v598, %v600
      %v602 = vsel %vm145, %v600, %v598
      %603 = vrot.lane.b32.xlu0 %v515, 127
      %v604 = vpop.permute.xlu0 %603
      %605 = vrot.lane.b32.xlu0 %v517, 127
      %v606 = vpop.permute.xlu0 %605
      %v607 = vsel %vm152, %v604, %v606
      %v608 = vsel %vm152, %v606, %v604
      %v609 = vsel %vm50, %v602, %v607
      %v610 = vsel %vm51, %v601, %v608
      %v611 = vadd.f32 %v595, %v609
      %v612 = vadd.f32 %v596, %v610
      %613 = vrot.lane.b32.xlu0 %v521, 97
      %v614 = vpop.permute.xlu0 %613
      %615 = vrot.lane.b32.xlu0 %v523, 97
      %v616 = vpop.permute.xlu0 %615
      %vm617 = vcmp.lt.s32.totalorder %v22, 97
      %v618 = vsel %vm617, %v614, %v616
      %v619 = vsel %vm617, %v616, %v614
      %620 = vrot.lane.b32.xlu0 %v521, 113
      %v621 = vpop.permute.xlu0 %620
      %622 = vrot.lane.b32.xlu0 %v523, 113
      %v623 = vpop.permute.xlu0 %622
      %v624 = vsel %vm161, %v621, %v623
      %v625 = vsel %vm161, %v623, %v621
      %v626 = vsel %vm48, %v618, %v624
      %v627 = vsel %vm49, %v619, %v625
      %v628 = vadd.f32 %v611, %v626
      %v629 = vadd.f32 %v612, %v627
      %630 = vrot.lane.b32.xlu0 %v527, 112
      %v631 = vpop.permute.xlu0 %630
      %632 = vrot.lane.b32.xlu0 %v529, 112
      %v633 = vpop.permute.xlu0 %632
      %v634 = vsel %vm196, %v631, %v633
      %v635 = vsel %vm196, %v633, %v631
      %v636 = vadd.f32 %v628, %v634
      %v637 = vadd.f32 %v629, %v635
      %638 = vrot.lane.b32.xlu0 %v533, 127
      %v639 = vpop.permute.xlu0 %638
      %640 = vrot.lane.b32.xlu0 %v535, 127
      %v641 = vpop.permute.xlu0 %640
      %v642 = vsel %vm152, %v639, %v641
      %v643 = vsel %vm152, %v641, %v639
      %644 = vrot.lane.b32.xlu0 %v533, 111
      %v645 = vpop.permute.xlu0 %644
      %646 = vrot.lane.b32.xlu0 %v535, 111
      %v647 = vpop.permute.xlu0 %646
      %vm648 = vcmp.lt.s32.totalorder %v22, 111
      %v649 = vsel %vm648, %v645, %v647
      %v650 = vsel %vm648, %v647, %v645
      %v651 = vsel %vm50, %v642, %v649
      %v652 = vsel %vm51, %v643, %v650
      %v653 = vadd.f32 %v636, %v651
      %v654 = vadd.f32 %v637, %v652
      %v655 = vadd.f32 %v354, %v653
      %v656 = vadd.f32 %v356, %v654
      %v657 = vadd.f32 %v139, %v655
      %v658 = vadd.f32 %v140, %v656
      %659 = vst [vmem:[#allocation2] sm:$0xff] %v657
      %660 = vst [vmem:[#allocation2 + $0x8] sm:$0xff] %v658
    $region29: #{tpu_custom_call.1} parent=1 // pred_fallthru
      _
    %v661 = vld [vmem:[#allocation2] sm:$0xff]
    %v662 = vld [vmem:[#allocation2 + $0x8] sm:$0xff]
    %663 = vst [vmem:[#allocation3] sm:$0xff] %v661
    %664 = vst [vmem:[#allocation3 + $0x8] sm:$0xff] %v662
    %s665 = sadd.s32 %s124, 1
    %p666 = scmp.eq.s32.totalorder %s665, 0
    // Predicated region
    $region30: #{tpu_custom_call.1} parent=1 // pred_check
      %p667 = pneg %p666
    $region31: #{tpu_custom_call.1} parent=1 // pred_check_branch
      %669 = sbr.rel (%p667) target = $region33
    $region32: #{tpu_custom_call.1} parent=1 // pred_region
      %v670 = vld [vmem:[%s4] sm:$0xff]
      %v671 = vld [vmem:[%s4 + $0x8] sm:$0xff]
      %672 = vst [vmem:[#allocation2] sm:$0xff] %v670
      %673 = vst [vmem:[#allocation2 + $0x8] sm:$0xff] %v671
    $region33: #{tpu_custom_call.1} parent=1 // pred_fallthru
      _
    %p674 = scmp.gt.s32.totalorder %s665, 0
    %p675 = scmp.lt.s32.totalorder %s665, 8
    %p676 = pnand %p674, %p675
    %p677 = pneg %p676
    // Predicated region
    $region34: #{tpu_custom_call.1} parent=1 // pred_check
      _
    $region35: #{tpu_custom_call.1} parent=1 // pred_check_branch
      %679 = sbr.rel (%p676) target = $region37
    $region36: #{tpu_custom_call.1} parent=1 // pred_region
      %v680 = vld [vmem:[#allocation2] sm:$0xff]
      %v681 = vld [vmem:[#allocation2 + $0x8] sm:$0xff]
      %682 = vrot.lane.b32.xlu0 %v680, 15
      %v683 = vpop.permute.xlu0 %682
      %684 = vrot.lane.b32.xlu0 %v681, 15
      %v685 = vpop.permute.xlu0 %684
      %vm686 = vcmp.lt.s32.totalorder %v22, 15
      %v687 = vsel %vm686, %v683, %v685
      %v688 = vsel %vm686, %v685, %v683
      %689 = vrot.lane.b32.xlu0 %v680, 127
      %v690 = vpop.permute.xlu0 %689
      %691 = vrot.lane.b32.xlu0 %v681, 127
      %v692 = vpop.permute.xlu0 %691
      %vm693 = vcmp.lt.s32.totalorder %v22, 127
      %v694 = vsel %vm693, %v690, %v692
      %v695 = vsel %vm693, %v692, %v690
      %v696 = vsel %vm50, %v688, %v694
      %v697 = vsel %vm51, %v687, %v695
      %698 = vrot.lane.b32.xlu0 %v680, 113
      %v699 = vpop.permute.xlu0 %698
      %700 = vrot.lane.b32.xlu0 %v681, 113
      %v701 = vpop.permute.xlu0 %700
      %vm702 = vcmp.lt.s32.totalorder %v22, 113
      %v703 = vsel %vm702, %v699, %v701
      %v704 = vsel %vm702, %v701, %v699
      %705 = vrot.lane.b32.xlu0 %v680, 1
      %v706 = vpop.permute.xlu0 %705
      %707 = vrot.lane.b32.xlu0 %v681, 1
      %v708 = vpop.permute.xlu0 %707
      %vm709 = vcmp.lt.s32.totalorder %v22, 1
      %v710 = vsel %vm709, %v706, %v708
      %v711 = vsel %vm709, %v708, %v706
      %v712 = vsel %vm48, %v703, %v711
      %v713 = vsel %vm49, %v704, %v710
      %714 = vrot.lane.b32.xlu0 %v712, 16
      %v715 = vpop.permute.xlu0 %714
      %716 = vrot.lane.b32.xlu0 %v713, 16
      %v717 = vpop.permute.xlu0 %716
      %vm718 = vcmp.lt.s32.totalorder %v22, 16
      %v719 = vsel %vm718, %v715, %v717
      %v720 = vsel %vm718, %v717, %v715
      %721 = vrot.lane.b32.xlu0 %v680, 16
      %v722 = vpop.permute.xlu0 %721
      %723 = vrot.lane.b32.xlu0 %v681, 16
      %v724 = vpop.permute.xlu0 %723
      %v725 = vsel %vm718, %v722, %v724
      %v726 = vsel %vm718, %v724, %v722
      %727 = vrot.lane.b32.xlu0 %v696, 16
      %v728 = vpop.permute.xlu0 %727
      %729 = vrot.lane.b32.xlu0 %v697, 16
      %v730 = vpop.permute.xlu0 %729
      %v731 = vsel %vm718, %v728, %v730
      %v732 = vsel %vm718, %v730, %v728
      %733 = vrot.lane.b32.xlu0 %v712, 112
      %v734 = vpop.permute.xlu0 %733
      %735 = vrot.lane.b32.xlu0 %v713, 112
      %v736 = vpop.permute.xlu0 %735
      %vm737 = vcmp.lt.s32.totalorder %v22, 112
      %v738 = vsel %vm737, %v734, %v736
      %v739 = vsel %vm737, %v736, %v734
      %740 = vrot.lane.b32.xlu0 %v680, 112
      %v741 = vpop.permute.xlu0 %740
      %742 = vrot.lane.b32.xlu0 %v681, 112
      %v743 = vpop.permute.xlu0 %742
      %v744 = vsel %vm737, %v741, %v743
      %v745 = vsel %vm737, %v743, %v741
      %746 = vrot.lane.b32.xlu0 %v696, 112
      %v747 = vpop.permute.xlu0 %746
      %748 = vrot.lane.b32.xlu0 %v697, 112
      %v749 = vpop.permute.xlu0 %748
      %v750 = vsel %vm737, %v747, %v749
      %v751 = vsel %vm737, %v749, %v747
      %vm752 = vcmask 588800
      %v754 = vsel %vm752, %v52, 0
      %v757 = vsel %vm752, %v53, 0
      %v760 = vsel %vm752, %v54, 0
      %v763 = vsel %vm752, %v55, 0
      %v766 = vsel %vm752, %v56, 0
      %v769 = vsel %vm752, %v57, 0
      %v772 = vsel %vm752, %v58, 0
      %v775 = vsel %vm752, %v59, 0
      %v778 = vsel %vm752, %v60, 0
      %780 = vmatprep.subr.mxu0 0.0
      %781 = vmatpush1.msra.mxu0 0.0
      %782 = vmatprep.subr.mxu0 0.0
      %783 = vmatpush1.msra.mxu0 0.0
      %784 = vmatprep.subr.mxu0 0.0
      %785 = vmatpush1.msra.mxu0 0.0
      %786 = vmatprep.subr.mxu0 0.0
      %787 = vmatpush1.msra.mxu0 0.0
      %788 = vmatprep.subr.mxu0 0.0
      %789 = vmatpush1.msra.mxu0 0.0
      %790 = vmatprep.subr.mxu0 0.0
      %791 = vmatpush1.msra.mxu0 0.0
      %792 = vmatprep.subr.mxu0 0.0
      %793 = vmatpush1.msra.mxu0 0.0
      %794 = vmatprep.subr.mxu0 %v751
      %795 = vmatpush1.msra.mxu0 %v750
      %796 = vmatprep.subr.mxu0 %v745
      %797 = vmatpush1.msra.mxu0 %v744
      %798 = vmatprep.subr.mxu0 %v739
      %799 = vmatpush1.msra.mxu0 %v738
      %800 = vmatprep.subr.mxu0 %v697
      %801 = vmatpush1.msra.mxu0 %v696
      %802 = vmatprep.subr.mxu0 %v681
      %803 = vmatpush1.msra.mxu0 %v680
      %804 = vmatprep.subr.mxu0 %v713
      %805 = vmatpush1.msra.mxu0 %v712
      %806 = vmatprep.subr.mxu0 %v731
      %807 = vmatpush1.msra.mxu0 %v732
      %808 = vmatprep.subr.mxu0 %v725
      %809 = vmatpush1.msra.mxu0 %v726
      %810 = vmatprep.subr.mxu0 %v719
      %811 = vmatpush1.msra.mxu0 %v720
      %812 = vmatprep.subr.mxu0 0.0
      %813 = vmatpush2.msra.mxu0 0.0
      %814 = vmatprep.subr.mxu0 0.0
      %815 = vmatpush2.msra.mxu0 0.0
      %816 = vmatprep.subr.mxu0 0.0
      %817 = vmatpush2.msra.mxu0 0.0
      %818 = vmatprep.subr.mxu0 0.0
      %819 = vmatpush2.msra.mxu0 0.0
      %820 = vmatprep.subr.mxu0 0.0
      %821 = vmatpush2.msra.mxu0 0.0
      %822 = vmatprep.subr.mxu0 0.0
      %823 = vmatpush2.msra.mxu0 0.0
      %824 = vmatprep.subr.mxu0 0.0
      %825 = vmatpush2.msra.mxu0 0.0
      %826 = vmatprep.subr.mxu0 0.0
      %827 = vmatpush2.msra.mxu0 0.0
      %828 = vmatprep.subr.mxu0 0.0
      %829 = vmatpush2.msra.mxu0 0.0
      %830 = vmatprep.subr.mxu0 0.0
      %831 = vmatpush2.msra.mxu0 0.0
      %832 = vmatprep.subr.mxu0 0.0
      %833 = vmatpush2.msra.mxu0 0.0
      %834 = vmatprep.subr.mxu0 0.0
      %835 = vmatpush2.msra.mxu0 0.0
      %836 = vmatprep.subr.mxu0 0.0
      %837 = vmatpush2.msra.mxu0 0.0
      %838 = vmatprep.subr.mxu0 0.0
      %839 = vmatpush2.msra.mxu0 0.0
      %840 = vmatprep.subr.mxu0 0.0
      %841 = vmatpush2.msra.mxu0 0.0
      %842 = vmatprep.subr.mxu0 0.0
      %843 = vmatpush2.msra.mxu0 0.0
      %844 = vmatprep.mubr.f32.mxu0 0.0
      %845 = vmatmul.mubr.f32.gmra.mxu0 %v754
      %v846 = vpop.f32.mrf.mxu0
      %v847 = vadd.f32 0.0, %v846
      %v848 = vpop.f32.mrf.mxu0
      %v849 = vadd.f32 0.0, %v848
      %850 = vmatprep.mubr.f32.mxu0 0.0
      %851 = vmatmul.mubr.f32.gmra.mxu0 %v757
      %v852 = vpop.f32.mrf.mxu0
      %v853 = vadd.f32 0.0, %v852
      %v854 = vpop.f32.mrf.mxu0
      %v855 = vadd.f32 0.0, %v854
      %856 = vmatprep.mubr.f32.mxu0 0.0
      %857 = vmatmul.mubr.f32.gmra.mxu0 %v760
      %v858 = vpop.f32.mrf.mxu0
      %v859 = vadd.f32 0.0, %v858
      %v860 = vpop.f32.mrf.mxu0
      %v861 = vadd.f32 0.0, %v860
      %862 = vmatprep.mubr.f32.mxu0 0.0
      %863 = vmatmul.mubr.f32.gmra.mxu0 %v763
      %v864 = vpop.f32.mrf.mxu0
      %v865 = vadd.f32 0.0, %v864
      %v866 = vpop.f32.mrf.mxu0
      %v867 = vadd.f32 0.0, %v866
      %868 = vmatprep.mubr.f32.mxu0 0.0
      %869 = vmatmul.mubr.f32.gmra.mxu0 %v766
      %v870 = vpop.f32.mrf.mxu0
      %v871 = vadd.f32 0.0, %v870
      %v872 = vpop.f32.mrf.mxu0
      %v873 = vadd.f32 0.0, %v872
      %874 = vmatprep.mubr.f32.mxu0 0.0
      %875 = vmatmul.mubr.f32.gmra.mxu0 %v769
      %v876 = vpop.f32.mrf.mxu0
      %v877 = vadd.f32 0.0, %v876
      %v878 = vpop.f32.mrf.mxu0
      %v879 = vadd.f32 0.0, %v878
      %880 = vmatprep.mubr.f32.mxu0 0.0
      %881 = vmatmul.mubr.f32.gmra.mxu0 %v772
      %v882 = vpop.f32.mrf.mxu0
      %v883 = vadd.f32 0.0, %v882
      %v884 = vpop.f32.mrf.mxu0
      %v885 = vadd.f32 0.0, %v884
      %886 = vmatprep.mubr.f32.mxu0 0.0
      %887 = vmatmul.mubr.f32.gmra.mxu0 %v775
      %v888 = vpop.f32.mrf.mxu0
      %v889 = vadd.f32 0.0, %v888
      %v890 = vpop.f32.mrf.mxu0
      %v891 = vadd.f32 0.0, %v890
      %892 = vmatprep.mubr.f32.mxu0 0.0
      %893 = vmatmul.mubr.f32.gmra.mxu0 %v778
      %v894 = vpop.f32.mrf.mxu0
      %v895 = vadd.f32 0.0, %v894
      %v896 = vpop.f32.mrf.mxu0
      %v897 = vadd.f32 0.0, %v896
      %898 = vdwg.mxu0
      %v899 = vadd.f32 %v847, %v81
      %v900 = vadd.f32 %v849, %v81
      %v901 = vadd.f32 %v853, %v86
      %v902 = vadd.f32 %v855, %v86
      %v903 = vadd.f32 %v859, %v91
      %v904 = vadd.f32 %v861, %v91
      %v905 = vadd.f32 %v865, %v96
      %v906 = vadd.f32 %v867, %v96
      %v907 = vadd.f32 %v871, %v101
      %v908 = vadd.f32 %v873, %v101
      %v909 = vadd.f32 %v877, %v106
      %v910 = vadd.f32 %v879, %v106
      %v911 = vadd.f32 %v883, %v111
      %v912 = vadd.f32 %v885, %v111
      %v913 = vadd.f32 %v889, %v116
      %v914 = vadd.f32 %v891, %v116
      %v915 = vtanh.pop %v899
      %v916 = vtanh.pop %v900
      %v917 = vtanh.pop %v901
      %v918 = vtanh.pop %v902
      %v919 = vtanh.pop %v903
      %v920 = vtanh.pop %v904
      %v921 = vtanh.pop %v905
      %v922 = vtanh.pop %v906
      %v923 = vtanh.pop %v907
      %v924 = vtanh.pop %v908
      %v925 = vtanh.pop %v909
      %v926 = vtanh.pop %v910
      %v927 = vtanh.pop %v911
      %v928 = vtanh.pop %v912
      %v929 = vtanh.pop %v913
      %v930 = vtanh.pop %v914
      %vm931 = vcmask 523264
      %v933 = vsel %vm931, %v61, 0
      %v936 = vsel %vm931, %v62, 0
      %v939 = vsel %vm931, %v63, 0
      %v942 = vsel %vm931, %v64, 0
      %v945 = vsel %vm931, %v65, 0
      %v948 = vsel %vm931, %v66, 0
      %v951 = vsel %vm931, %v67, 0
      %v954 = vsel %vm931, %v68, 0
      %v957 = vsel %vm931, %v69, 0
      %959 = vmatprep.subr.mxu0 0.0
      %960 = vmatpush1.msra.mxu0 0.0
      %961 = vmatprep.subr.mxu0 0.0
      %962 = vmatpush1.msra.mxu0 0.0
      %963 = vmatprep.subr.mxu0 0.0
      %964 = vmatpush1.msra.mxu0 0.0
      %965 = vmatprep.subr.mxu0 0.0
      %966 = vmatpush1.msra.mxu0 0.0
      %967 = vmatprep.subr.mxu0 0.0
      %968 = vmatpush1.msra.mxu0 0.0
      %969 = vmatprep.subr.mxu0 0.0
      %970 = vmatpush1.msra.mxu0 0.0
      %971 = vmatprep.subr.mxu0 0.0
      %972 = vmatpush1.msra.mxu0 0.0
      %973 = vmatprep.subr.mxu0 0.0
      %974 = vmatpush1.msra.mxu0 0.0
      %975 = vmatprep.subr.mxu0 %v930
      %976 = vmatpush1.msra.mxu0 %v929
      %977 = vmatprep.subr.mxu0 %v928
      %978 = vmatpush1.msra.mxu0 %v927
      %979 = vmatprep.subr.mxu0 %v926
      %980 = vmatpush1.msra.mxu0 %v925
      %981 = vmatprep.subr.mxu0 %v924
      %982 = vmatpush1.msra.mxu0 %v923
      %983 = vmatprep.subr.mxu0 %v922
      %984 = vmatpush1.msra.mxu0 %v921
      %985 = vmatprep.subr.mxu0 %v920
      %986 = vmatpush1.msra.mxu0 %v919
      %987 = vmatprep.subr.mxu0 %v918
      %988 = vmatpush1.msra.mxu0 %v917
      %989 = vmatprep.subr.mxu0 %v916
      %990 = vmatpush1.msra.mxu0 %v915
      %991 = vmatprep.subr.mxu0 0.0
      %992 = vmatpush2.msra.mxu0 0.0
      %993 = vmatprep.subr.mxu0 0.0
      %994 = vmatpush2.msra.mxu0 0.0
      %995 = vmatprep.subr.mxu0 0.0
      %996 = vmatpush2.msra.mxu0 0.0
      %997 = vmatprep.subr.mxu0 0.0
      %998 = vmatpush2.msra.mxu0 0.0
      %999 = vmatprep.subr.mxu0 0.0
      %1000 = vmatpush2.msra.mxu0 0.0
      %1001 = vmatprep.subr.mxu0 0.0
      %1002 = vmatpush2.msra.mxu0 0.0
      %1003 = vmatprep.subr.mxu0 0.0
      %1004 = vmatpush2.msra.mxu0 0.0
      %1005 = vmatprep.subr.mxu0 0.0
      %1006 = vmatpush2.msra.mxu0 0.0
      %1007 = vmatprep.subr.mxu0 0.0
      %1008 = vmatpush2.msra.mxu0 0.0
      %1009 = vmatprep.subr.mxu0 0.0
      %1010 = vmatpush2.msra.mxu0 0.0
      %1011 = vmatprep.subr.mxu0 0.0
      %1012 = vmatpush2.msra.mxu0 0.0
      %1013 = vmatprep.subr.mxu0 0.0
      %1014 = vmatpush2.msra.mxu0 0.0
      %1015 = vmatprep.subr.mxu0 0.0
      %1016 = vmatpush2.msra.mxu0 0.0
      %1017 = vmatprep.subr.mxu0 0.0
      %1018 = vmatpush2.msra.mxu0 0.0
      %1019 = vmatprep.subr.mxu0 0.0
      %1020 = vmatpush2.msra.mxu0 0.0
      %1021 = vmatprep.subr.mxu0 0.0
      %1022 = vmatpush2.msra.mxu0 0.0
      %1023 = vmatprep.mubr.f32.mxu0 0.0
      %1024 = vmatmul.mubr.f32.gmra.mxu0 %v933
      %v1025 = vpop.f32.mrf.mxu0
      %v1026 = vadd.f32 0.0, %v1025
      %v1027 = vpop.f32.mrf.mxu0
      %v1028 = vadd.f32 0.0, %v1027
      %1029 = vmatprep.mubr.f32.mxu0 0.0
      %1030 = vmatmul.mubr.f32.gmra.mxu0 %v936
      %v1031 = vpop.f32.mrf.mxu0
      %v1032 = vadd.f32 0.0, %v1031
      %v1033 = vpop.f32.mrf.mxu0
      %v1034 = vadd.f32 0.0, %v1033
      %1035 = vmatprep.mubr.f32.mxu0 0.0
      %1036 = vmatmul.mubr.f32.gmra.mxu0 %v939
      %v1037 = vpop.f32.mrf.mxu0
      %v1038 = vadd.f32 0.0, %v1037
      %v1039 = vpop.f32.mrf.mxu0
      %v1040 = vadd.f32 0.0, %v1039
      %1041 = vmatprep.mubr.f32.mxu0 0.0
      %1042 = vmatmul.mubr.f32.gmra.mxu0 %v942
      %v1043 = vpop.f32.mrf.mxu0
      %v1044 = vadd.f32 0.0, %v1043
      %v1045 = vpop.f32.mrf.mxu0
      %v1046 = vadd.f32 0.0, %v1045
      %1047 = vmatprep.mubr.f32.mxu0 0.0
      %1048 = vmatmul.mubr.f32.gmra.mxu0 %v945
      %v1049 = vpop.f32.mrf.mxu0
      %v1050 = vadd.f32 0.0, %v1049
      %v1051 = vpop.f32.mrf.mxu0
      %v1052 = vadd.f32 0.0, %v1051
      %1053 = vmatprep.mubr.f32.mxu0 0.0
      %1054 = vmatmul.mubr.f32.gmra.mxu0 %v948
      %v1055 = vpop.f32.mrf.mxu0
      %v1056 = vadd.f32 0.0, %v1055
      %v1057 = vpop.f32.mrf.mxu0
      %v1058 = vadd.f32 0.0, %v1057
      %1059 = vmatprep.mubr.f32.mxu0 0.0
      %1060 = vmatmul.mubr.f32.gmra.mxu0 %v951
      %v1061 = vpop.f32.mrf.mxu0
      %v1062 = vadd.f32 0.0, %v1061
      %v1063 = vpop.f32.mrf.mxu0
      %v1064 = vadd.f32 0.0, %v1063
      %1065 = vmatprep.mubr.f32.mxu0 0.0
      %1066 = vmatmul.mubr.f32.gmra.mxu0 %v954
      %v1067 = vpop.f32.mrf.mxu0
      %v1068 = vadd.f32 0.0, %v1067
      %v1069 = vpop.f32.mrf.mxu0
      %v1070 = vadd.f32 0.0, %v1069
      %1071 = vmatprep.mubr.f32.mxu0 0.0
      %1072 = vmatmul.mubr.f32.gmra.mxu0 %v957
      %v1073 = vpop.f32.mrf.mxu0
      %v1074 = vadd.f32 0.0, %v1073
      %v1075 = vpop.f32.mrf.mxu0
      %v1076 = vadd.f32 0.0, %v1075
      %1077 = vdwg.mxu0
      %1078 = vrot.lane.b32.xlu0 %v1026, 1
      %v1079 = vpop.permute.xlu0 %1078
      %1080 = vrot.lane.b32.xlu0 %v1028, 1
      %v1081 = vpop.permute.xlu0 %1080
      %v1082 = vsel %vm709, %v1079, %v1081
      %v1083 = vsel %vm709, %v1081, %v1079
      %1084 = vrot.lane.b32.xlu0 %v1026, 17
      %v1085 = vpop.permute.xlu0 %1084
      %1086 = vrot.lane.b32.xlu0 %v1028, 17
      %v1087 = vpop.permute.xlu0 %1086
      %vm1088 = vcmp.lt.s32.totalorder %v22, 17
      %v1089 = vsel %vm1088, %v1085, %v1087
      %v1090 = vsel %vm1088, %v1087, %v1085
      %v1091 = vsel %vm48, %v1083, %v1090
      %v1092 = vsel %vm49, %v1082, %v1089
      %v1093 = vadd.f32 %v122, %v1091
      %v1094 = vadd.f32 %v122, %v1092
      %1095 = vrot.lane.b32.xlu0 %v1032, 16
      %v1096 = vpop.permute.xlu0 %1095
      %1097 = vrot.lane.b32.xlu0 %v1034, 16
      %v1098 = vpop.permute.xlu0 %1097
      %v1099 = vsel %vm718, %v1096, %v1098
      %v1100 = vsel %vm718, %v1098, %v1096
      %v1101 = vadd.f32 %v1093, %v1100
      %v1102 = vadd.f32 %v1094, %v1099
      %1103 = vrot.lane.b32.xlu0 %v1038, 31
      %v1104 = vpop.permute.xlu0 %1103
      %1105 = vrot.lane.b32.xlu0 %v1040, 31
      %v1106 = vpop.permute.xlu0 %1105
      %vm1107 = vcmp.lt.s32.totalorder %v22, 31
      %v1108 = vsel %vm1107, %v1104, %v1106
      %v1109 = vsel %vm1107, %v1106, %v1104
      %1110 = vrot.lane.b32.xlu0 %v1038, 15
      %v1111 = vpop.permute.xlu0 %1110
      %1112 = vrot.lane.b32.xlu0 %v1040, 15
      %v1113 = vpop.permute.xlu0 %1112
      %v1114 = vsel %vm686, %v1111, %v1113
      %v1115 = vsel %vm686, %v1113, %v1111
      %v1116 = vsel %vm50, %v1109, %v1115
      %v1117 = vsel %vm51, %v1108, %v1114
      %v1118 = vadd.f32 %v1101, %v1116
      %v1119 = vadd.f32 %v1102, %v1117
      %1120 = vrot.lane.b32.xlu0 %v1044, 113
      %v1121 = vpop.permute.xlu0 %1120
      %1122 = vrot.lane.b32.xlu0 %v1046, 113
      %v1123 = vpop.permute.xlu0 %1122
      %v1124 = vsel %vm702, %v1121, %v1123
      %v1125 = vsel %vm702, %v1123, %v1121
      %1126 = vrot.lane.b32.xlu0 %v1044, 1
      %v1127 = vpop.permute.xlu0 %1126
      %1128 = vrot.lane.b32.xlu0 %v1046, 1
      %v1129 = vpop.permute.xlu0 %1128
      %v1130 = vsel %vm709, %v1127, %v1129
      %v1131 = vsel %vm709, %v1129, %v1127
      %v1132 = vsel %vm48, %v1124, %v1131
      %v1133 = vsel %vm49, %v1125, %v1130
      %v1134 = vadd.f32 %v1118, %v1132
      %v1135 = vadd.f32 %v1119, %v1133
      %v1136 = vadd.f32 %v1134, %v1050
      %v1137 = vadd.f32 %v1135, %v1052
      %1138 = vrot.lane.b32.xlu0 %v1056, 15
      %v1139 = vpop.permute.xlu0 %1138
      %1140 = vrot.lane.b32.xlu0 %v1058, 15
      %v1141 = vpop.permute.xlu0 %1140
      %v1142 = vsel %vm686, %v1139, %v1141
      %v1143 = vsel %vm686, %v1141, %v1139
      %1144 = vrot.lane.b32.xlu0 %v1056, 127
      %v1145 = vpop.permute.xlu0 %1144
      %1146 = vrot.lane.b32.xlu0 %v1058, 127
      %v1147 = vpop.permute.xlu0 %1146
      %v1148 = vsel %vm693, %v1145, %v1147
      %v1149 = vsel %vm693, %v1147, %v1145
      %v1150 = vsel %vm50, %v1143, %v1148
      %v1151 = vsel %vm51, %v1142, %v1149
      %v1152 = vadd.f32 %v1136, %v1150
      %v1153 = vadd.f32 %v1137, %v1151
      %1154 = vrot.lane.b32.xlu0 %v1062, 97
      %v1155 = vpop.permute.xlu0 %1154
      %1156 = vrot.lane.b32.xlu0 %v1064, 97
      %v1157 = vpop.permute.xlu0 %1156
      %vm1158 = vcmp.lt.s32.totalorder %v22, 97
      %v1159 = vsel %vm1158, %v1155, %v1157
      %v1160 = vsel %vm1158, %v1157, %v1155
      %1161 = vrot.lane.b32.xlu0 %v1062, 113
      %v1162 = vpop.permute.xlu0 %1161
      %1163 = vrot.lane.b32.xlu0 %v1064, 113
      %v1164 = vpop.permute.xlu0 %1163
      %v1165 = vsel %vm702, %v1162, %v1164
      %v1166 = vsel %vm702, %v1164, %v1162
      %v1167 = vsel %vm48, %v1159, %v1165
      %v1168 = vsel %vm49, %v1160, %v1166
      %v1169 = vadd.f32 %v1152, %v1167
      %v1170 = vadd.f32 %v1153, %v1168
      %1171 = vrot.lane.b32.xlu0 %v1068, 112
      %v1172 = vpop.permute.xlu0 %1171
      %1173 = vrot.lane.b32.xlu0 %v1070, 112
      %v1174 = vpop.permute.xlu0 %1173
      %v1175 = vsel %vm737, %v1172, %v1174
      %v1176 = vsel %vm737, %v1174, %v1172
      %v1177 = vadd.f32 %v1169, %v1175
      %v1178 = vadd.f32 %v1170, %v1176
      %1179 = vrot.lane.b32.xlu0 %v1074, 127
      %v1180 = vpop.permute.xlu0 %1179
      %1181 = vrot.lane.b32.xlu0 %v1076, 127
      %v1182 = vpop.permute.xlu0 %1181
      %v1183 = vsel %vm693, %v1180, %v1182
      %v1184 = vsel %vm693, %v1182, %v1180
      %1185 = vrot.lane.b32.xlu0 %v1074, 111
      %v1186 = vpop.permute.xlu0 %1185
      %1187 = vrot.lane.b32.xlu0 %v1076, 111
      %v1188 = vpop.permute.xlu0 %1187
      %vm1189 = vcmp.lt.s32.totalorder %v22, 111
      %v1190 = vsel %vm1189, %v1186, %v1188
      %v1191 = vsel %vm1189, %v1188, %v1186
      %v1192 = vsel %vm50, %v1183, %v1190
      %v1193 = vsel %vm51, %v1184, %v1191
      %v1194 = vadd.f32 %v1177, %v1192
      %v1195 = vadd.f32 %v1178, %v1193
      %v1196 = vadd.f32 %v895, %v1194
      %v1197 = vadd.f32 %v897, %v1195
      %v1198 = vadd.f32 %v680, %v1196
      %v1199 = vadd.f32 %v681, %v1197
      %1200 = vst [vmem:[#allocation2] sm:$0xff] %v1198
      %1201 = vst [vmem:[#allocation2 + $0x8] sm:$0xff] %v1199
    $region37: #{tpu_custom_call.1} parent=1 // pred_fallthru
      _
    %v1202 = vld [vmem:[#allocation2] sm:$0xff]
    %v1203 = vld [vmem:[#allocation2 + $0x8] sm:$0xff]
    %s1204 = scalar_lea.vmem [#allocation3], 16
    %1205 = vst [vmem:[%s1204] sm:$0xff] %v1202
    %1206 = vst [vmem:[%s1204 + $0x8] sm:$0xff] %v1203
    %s1207 = sadd.s32 %s124, 2
    %p1208 = scmp.eq.s32.totalorder %s1207, 0
    // Predicated region
    $region38: #{tpu_custom_call.1} parent=1 // pred_check
      %p1209 = pneg %p1208
    $region39: #{tpu_custom_call.1} parent=1 // pred_check_branch
      %1211 = sbr.rel (%p1209) target = $region41
    $region40: #{tpu_custom_call.1} parent=1 // pred_region
      %v1212 = vld [vmem:[%s4] sm:$0xff]
      %v1213 = vld [vmem:[%s4 + $0x8] sm:$0xff]
      %1214 = vst [vmem:[#allocation2] sm:$0xff] %v1212
      %1215 = vst [vmem:[#allocation2 + $0x8] sm:$0xff] %v1213
    $region41: #{tpu_custom_call.1} parent=1 // pred_fallthru
      _
    %p1216 = scmp.gt.s32.totalorder %s1207, 0
    %p1217 = scmp.lt.s32.totalorder %s1207, 8
    %p1218 = pnand %p1216, %p1217
    %p1219 = pneg %p1218
    // Predicated region
    $region42: #{tpu_custom_call.1} parent=1 // pred_check
      _
    $region43: #{tpu_custom_call.1} parent=1 // pred_check_branch
      %1221 = sbr.rel (%p1218) target = $region45
    $region44: #{tpu_custom_call.1} parent=1 // pred_region
      %v1222 = vld [vmem:[#allocation2] sm:$0xff]
      %v1223 = vld [vmem:[#allocation2 + $0x8] sm:$0xff]
      %1224 = vrot.lane.b32.xlu0 %v1222, 15
      %v1225 = vpop.permute.xlu0 %1224
      %1226 = vrot.lane.b32.xlu0 %v1223, 15
      %v1227 = vpop.permute.xlu0 %1226
      %vm1228 = vcmp.lt.s32.totalorder %v22, 15
      %v1229 = vsel %vm1228, %v1225, %v1227
      %v1230 = vsel %vm1228, %v1227, %v1225
      %1231 = vrot.lane.b32.xlu0 %v1222, 127
      %v1232 = vpop.permute.xlu0 %1231
      %1233 = vrot.lane.b32.xlu0 %v1223, 127
      %v1234 = vpop.permute.xlu0 %1233
      %vm1235 = vcmp.lt.s32.totalorder %v22, 127
      %v1236 = vsel %vm1235, %v1232, %v1234
      %v1237 = vsel %vm1235, %v1234, %v1232
      %v1238 = vsel %vm50, %v1230, %v1236
      %v1239 = vsel %vm51, %v1229, %v1237
      %1240 = vrot.lane.b32.xlu0 %v1222, 113
      %v1241 = vpop.permute.xlu0 %1240
      %1242 = vrot.lane.b32.xlu0 %v1223, 113
      %v1243 = vpop.permute.xlu0 %1242
      %vm1244 = vcmp.lt.s32.totalorder %v22, 113
      %v1245 = vsel %vm1244, %v1241, %v1243
      %v1246 = vsel %vm1244, %v1243, %v1241
      %1247 = vrot.lane.b32.xlu0 %v1222, 1
      %v1248 = vpop.permute.xlu0 %1247
      %1249 = vrot.lane.b32.xlu0 %v1223, 1
      %v1250 = vpop.permute.xlu0 %1249
      %vm1251 = vcmp.lt.s32.totalorder %v22, 1
      %v1252 = vsel %vm1251, %v1248, %v1250
      %v1253 = vsel %vm1251, %v1250, %v1248
      %v1254 = vsel %vm48, %v1245, %v1253
      %v1255 = vsel %vm49, %v1246, %v1252
      %1256 = vrot.lane.b32.xlu0 %v1254, 16
      %v1257 = vpop.permute.xlu0 %1256
      %1258 = vrot.lane.b32.xlu0 %v1255, 16
      %v1259 = vpop.permute.xlu0 %1258
      %vm1260 = vcmp.lt.s32.totalorder %v22, 16
      %v1261 = vsel %vm1260, %v1257, %v1259
      %v1262 = vsel %vm1260, %v1259, %v1257
      %1263 = vrot.lane.b32.xlu0 %v1222, 16
      %v1264 = vpop.permute.xlu0 %1263
      %1265 = vrot.lane.b32.xlu0 %v1223, 16
      %v1266 = vpop.permute.xlu0 %1265
      %v1267 = vsel %vm1260, %v1264, %v1266
      %v1268 = vsel %vm1260, %v1266, %v1264
      %1269 = vrot.lane.b32.xlu0 %v1238, 16
      %v1270 = vpop.permute.xlu0 %1269
      %1271 = vrot.lane.b32.xlu0 %v1239, 16
      %v1272 = vpop.permute.xlu0 %1271
      %v1273 = vsel %vm1260, %v1270, %v1272
      %v1274 = vsel %vm1260, %v1272, %v1270
      %1275 = vrot.lane.b32.xlu0 %v1254, 112
      %v1276 = vpop.permute.xlu0 %1275
      %1277 = vrot.lane.b32.xlu0 %v1255, 112
      %v1278 = vpop.permute.xlu0 %1277
      %vm1279 = vcmp.lt.s32.totalorder %v22, 112
      %v1280 = vsel %vm1279, %v1276, %v1278
      %v1281 = vsel %vm1279, %v1278, %v1276
      %1282 = vrot.lane.b32.xlu0 %v1222, 112
      %v1283 = vpop.permute.xlu0 %1282
      %1284 = vrot.lane.b32.xlu0 %v1223, 112
      %v1285 = vpop.permute.xlu0 %1284
      %v1286 = vsel %vm1279, %v1283, %v1285
      %v1287 = vsel %vm1279, %v1285, %v1283
      %1288 = vrot.lane.b32.xlu0 %v1238, 112
      %v1289 = vpop.permute.xlu0 %1288
      %1290 = vrot.lane.b32.xlu0 %v1239, 112
      %v1291 = vpop.permute.xlu0 %1290
      %v1292 = vsel %vm1279, %v1289, %v1291
      %v1293 = vsel %vm1279, %v1291, %v1289
      %vm1294 = vcmask 588800
      %v1296 = vsel %vm1294, %v52, 0
      %v1299 = vsel %vm1294, %v53, 0
      %v1302 = vsel %vm1294, %v54, 0
      %v1305 = vsel %vm1294, %v55, 0
      %v1308 = vsel %vm1294, %v56, 0
      %v1311 = vsel %vm1294, %v57, 0
      %v1314 = vsel %vm1294, %v58, 0
      %v1317 = vsel %vm1294, %v59, 0
      %v1320 = vsel %vm1294, %v60, 0
      %1322 = vmatprep.subr.mxu0 0.0
      %1323 = vmatpush1.msra.mxu0 0.0
      %1324 = vmatprep.subr.mxu0 0.0
      %1325 = vmatpush1.msra.mxu0 0.0
      %1326 = vmatprep.subr.mxu0 0.0
      %1327 = vmatpush1.msra.mxu0 0.0
      %1328 = vmatprep.subr.mxu0 0.0
      %1329 = vmatpush1.msra.mxu0 0.0
      %1330 = vmatprep.subr.mxu0 0.0
      %1331 = vmatpush1.msra.mxu0 0.0
      %1332 = vmatprep.subr.mxu0 0.0
      %1333 = vmatpush1.msra.mxu0 0.0
      %1334 = vmatprep.subr.mxu0 0.0
      %1335 = vmatpush1.msra.mxu0 0.0
      %1336 = vmatprep.subr.mxu0 %v1293
      %1337 = vmatpush1.msra.mxu0 %v1292
      %1338 = vmatprep.subr.mxu0 %v1287
      %1339 = vmatpush1.msra.mxu0 %v1286
      %1340 = vmatprep.subr.mxu0 %v1281
      %1341 = vmatpush1.msra.mxu0 %v1280
      %1342 = vmatprep.subr.mxu0 %v1239
      %1343 = vmatpush1.msra.mxu0 %v1238
      %1344 = vmatprep.subr.mxu0 %v1223
      %1345 = vmatpush1.msra.mxu0 %v1222
      %1346 = vmatprep.subr.mxu0 %v1255
      %1347 = vmatpush1.msra.mxu0 %v1254
      %1348 = vmatprep.subr.mxu0 %v1273
      %1349 = vmatpush1.msra.mxu0 %v1274
      %1350 = vmatprep.subr.mxu0 %v1267
      %1351 = vmatpush1.msra.mxu0 %v1268
      %1352 = vmatprep.subr.mxu0 %v1261
      %1353 = vmatpush1.msra.mxu0 %v1262
      %1354 = vmatprep.subr.mxu0 0.0
      %1355 = vmatpush2.msra.mxu0 0.0
      %1356 = vmatprep.subr.mxu0 0.0
      %1357 = vmatpush2.msra.mxu0 0.0
      %1358 = vmatprep.subr.mxu0 0.0
      %1359 = vmatpush2.msra.mxu0 0.0
      %1360 = vmatprep.subr.mxu0 0.0
      %1361 = vmatpush2.msra.mxu0 0.0
      %1362 = vmatprep.subr.mxu0 0.0
      %1363 = vmatpush2.msra.mxu0 0.0
      %1364 = vmatprep.subr.mxu0 0.0
      %1365 = vmatpush2.msra.mxu0 0.0
      %1366 = vmatprep.subr.mxu0 0.0
      %1367 = vmatpush2.msra.mxu0 0.0
      %1368 = vmatprep.subr.mxu0 0.0
      %1369 = vmatpush2.msra.mxu0 0.0
      %1370 = vmatprep.subr.mxu0 0.0
      %1371 = vmatpush2.msra.mxu0 0.0
      %1372 = vmatprep.subr.mxu0 0.0
      %1373 = vmatpush2.msra.mxu0 0.0
      %1374 = vmatprep.subr.mxu0 0.0
      %1375 = vmatpush2.msra.mxu0 0.0
      %1376 = vmatprep.subr.mxu0 0.0
      %1377 = vmatpush2.msra.mxu0 0.0
      %1378 = vmatprep.subr.mxu0 0.0
      %1379 = vmatpush2.msra.mxu0 0.0
      %1380 = vmatprep.subr.mxu0 0.0
      %1381 = vmatpush2.msra.mxu0 0.0
      %1382 = vmatprep.subr.mxu0 0.0
      %1383 = vmatpush2.msra.mxu0 0.0
      %1384 = vmatprep.subr.mxu0 0.0
      %1385 = vmatpush2.msra.mxu0 0.0
      %1386 = vmatprep.mubr.f32.mxu0 0.0
      %1387 = vmatmul.mubr.f32.gmra.mxu0 %v1296
      %v1388 = vpop.f32.mrf.mxu0
      %v1389 = vadd.f32 0.0, %v1388
      %v1390 = vpop.f32.mrf.mxu0
      %v1391 = vadd.f32 0.0, %v1390
      %1392 = vmatprep.mubr.f32.mxu0 0.0
      %1393 = vmatmul.mubr.f32.gmra.mxu0 %v1299
      %v1394 = vpop.f32.mrf.mxu0
      %v1395 = vadd.f32 0.0, %v1394
      %v1396 = vpop.f32.mrf.mxu0
      %v1397 = vadd.f32 0.0, %v1396
      %1398 = vmatprep.mubr.f32.mxu0 0.0
      %1399 = vmatmul.mubr.f32.gmra.mxu0 %v1302
      %v1400 = vpop.f32.mrf.mxu0
      %v1401 = vadd.f32 0.0, %v1400
      %v1402 = vpop.f32.mrf.mxu0
      %v1403 = vadd.f32 0.0, %v1402
      %1404 = vmatprep.mubr.f32.mxu0 0.0
      %1405 = vmatmul.mubr.f32.gmra.mxu0 %v1305
      %v1406 = vpop.f32.mrf.mxu0
      %v1407 = vadd.f32 0.0, %v1406
      %v1408 = vpop.f32.mrf.mxu0
      %v1409 = vadd.f32 0.0, %v1408
      %1410 = vmatprep.mubr.f32.mxu0 0.0
      %1411 = vmatmul.mubr.f32.gmra.mxu0 %v1308
      %v1412 = vpop.f32.mrf.mxu0
      %v1413 = vadd.f32 0.0, %v1412
      %v1414 = vpop.f32.mrf.mxu0
      %v1415 = vadd.f32 0.0, %v1414
      %1416 = vmatprep.mubr.f32.mxu0 0.0
      %1417 = vmatmul.mubr.f32.gmra.mxu0 %v1311
      %v1418 = vpop.f32.mrf.mxu0
      %v1419 = vadd.f32 0.0, %v1418
      %v1420 = vpop.f32.mrf.mxu0
      %v1421 = vadd.f32 0.0, %v1420
      %1422 = vmatprep.mubr.f32.mxu0 0.0
      %1423 = vmatmul.mubr.f32.gmra.mxu0 %v1314
      %v1424 = vpop.f32.mrf.mxu0
      %v1425 = vadd.f32 0.0, %v1424
      %v1426 = vpop.f32.mrf.mxu0
      %v1427 = vadd.f32 0.0, %v1426
      %1428 = vmatprep.mubr.f32.mxu0 0.0
      %1429 = vmatmul.mubr.f32.gmra.mxu0 %v1317
      %v1430 = vpop.f32.mrf.mxu0
      %v1431 = vadd.f32 0.0, %v1430
      %v1432 = vpop.f32.mrf.mxu0
      %v1433 = vadd.f32 0.0, %v1432
      %1434 = vmatprep.mubr.f32.mxu0 0.0
      %1435 = vmatmul.mubr.f32.gmra.mxu0 %v1320
      %v1436 = vpop.f32.mrf.mxu0
      %v1437 = vadd.f32 0.0, %v1436
      %v1438 = vpop.f32.mrf.mxu0
      %v1439 = vadd.f32 0.0, %v1438
      %1440 = vdwg.mxu0
      %v1441 = vadd.f32 %v1389, %v81
      %v1442 = vadd.f32 %v1391, %v81
      %v1443 = vadd.f32 %v1395, %v86
      %v1444 = vadd.f32 %v1397, %v86
      %v1445 = vadd.f32 %v1401, %v91
      %v1446 = vadd.f32 %v1403, %v91
      %v1447 = vadd.f32 %v1407, %v96
      %v1448 = vadd.f32 %v1409, %v96
      %v1449 = vadd.f32 %v1413, %v101
      %v1450 = vadd.f32 %v1415, %v101
      %v1451 = vadd.f32 %v1419, %v106
      %v1452 = vadd.f32 %v1421, %v106
      %v1453 = vadd.f32 %v1425, %v111
      %v1454 = vadd.f32 %v1427, %v111
      %v1455 = vadd.f32 %v1431, %v116
      %v1456 = vadd.f32 %v1433, %v116
      %v1457 = vtanh.pop %v1441
      %v1458 = vtanh.pop %v1442
      %v1459 = vtanh.pop %v1443
      %v1460 = vtanh.pop %v1444
      %v1461 = vtanh.pop %v1445
      %v1462 = vtanh.pop %v1446
      %v1463 = vtanh.pop %v1447
      %v1464 = vtanh.pop %v1448
      %v1465 = vtanh.pop %v1449
      %v1466 = vtanh.pop %v1450
      %v1467 = vtanh.pop %v1451
      %v1468 = vtanh.pop %v1452
      %v1469 = vtanh.pop %v1453
      %v1470 = vtanh.pop %v1454
      %v1471 = vtanh.pop %v1455
      %v1472 = vtanh.pop %v1456
      %vm1473 = vcmask 523264
      %v1475 = vsel %vm1473, %v61, 0
      %v1478 = vsel %vm1473, %v62, 0
      %v1481 = vsel %vm1473, %v63, 0
      %v1484 = vsel %vm1473, %v64, 0
      %v1487 = vsel %vm1473, %v65, 0
      %v1490 = vsel %vm1473, %v66, 0
      %v1493 = vsel %vm1473, %v67, 0
      %v1496 = vsel %vm1473, %v68, 0
      %v1499 = vsel %vm1473, %v69, 0
      %1501 = vmatprep.subr.mxu0 0.0
      %1502 = vmatpush1.msra.mxu0 0.0
      %1503 = vmatprep.subr.mxu0 0.0
      %1504 = vmatpush1.msra.mxu0 0.0
      %1505 = vmatprep.subr.mxu0 0.0
      %1506 = vmatpush1.msra.mxu0 0.0
      %1507 = vmatprep.subr.mxu0 0.0
      %1508 = vmatpush1.msra.mxu0 0.0
      %1509 = vmatprep.subr.mxu0 0.0
      %1510 = vmatpush1.msra.mxu0 0.0
      %1511 = vmatprep.subr.mxu0 0.0
      %1512 = vmatpush1.msra.mxu0 0.0
      %1513 = vmatprep.subr.mxu0 0.0
      %1514 = vmatpush1.msra.mxu0 0.0
      %1515 = vmatprep.subr.mxu0 0.0
      %1516 = vmatpush1.msra.mxu0 0.0
      %1517 = vmatprep.subr.mxu0 %v1472
      %1518 = vmatpush1.msra.mxu0 %v1471
      %1519 = vmatprep.subr.mxu0 %v1470
      %1520 = vmatpush1.msra.mxu0 %v1469
      %1521 = vmatprep.subr.mxu0 %v1468
      %1522 = vmatpush1.msra.mxu0 %v1467
      %1523 = vmatprep.subr.mxu0 %v1466
      %1524 = vmatpush1.msra.mxu0 %v1465
      %1525 = vmatprep.subr.mxu0 %v1464
      %1526 = vmatpush1.msra.mxu0 %v1463
      %1527 = vmatprep.subr.mxu0 %v1462
      %1528 = vmatpush1.msra.mxu0 %v1461
      %1529 = vmatprep.subr.mxu0 %v1460
      %1530 = vmatpush1.msra.mxu0 %v1459
      %1531 = vmatprep.subr.mxu0 %v1458
      %1532 = vmatpush1.msra.mxu0 %v1457
      %1533 = vmatprep.subr.mxu0 0.0
      %1534 = vmatpush2.msra.mxu0 0.0
      %1535 = vmatprep.subr.mxu0 0.0
      %1536 = vmatpush2.msra.mxu0 0.0
      %1537 = vmatprep.subr.mxu0 0.0
      %1538 = vmatpush2.msra.mxu0 0.0
      %1539 = vmatprep.subr.mxu0 0.0
      %1540 = vmatpush2.msra.mxu0 0.0
      %1541 = vmatprep.subr.mxu0 0.0
      %1542 = vmatpush2.msra.mxu0 0.0
      %1543 = vmatprep.subr.mxu0 0.0
      %1544 = vmatpush2.msra.mxu0 0.0
      %1545 = vmatprep.subr.mxu0 0.0
      %1546 = vmatpush2.msra.mxu0 0.0
      %1547 = vmatprep.subr.mxu0 0.0
      %1548 = vmatpush2.msra.mxu0 0.0
      %1549 = vmatprep.subr.mxu0 0.0
      %1550 = vmatpush2.msra.mxu0 0.0
      %1551 = vmatprep.subr.mxu0 0.0
      %1552 = vmatpush2.msra.mxu0 0.0
      %1553 = vmatprep.subr.mxu0 0.0
      %1554 = vmatpush2.msra.mxu0 0.0
      %1555 = vmatprep.subr.mxu0 0.0
      %1556 = vmatpush2.msra.mxu0 0.0
      %1557 = vmatprep.subr.mxu0 0.0
      %1558 = vmatpush2.msra.mxu0 0.0
      %1559 = vmatprep.subr.mxu0 0.0
      %1560 = vmatpush2.msra.mxu0 0.0
      %1561 = vmatprep.subr.mxu0 0.0
      %1562 = vmatpush2.msra.mxu0 0.0
      %1563 = vmatprep.subr.mxu0 0.0
      %1564 = vmatpush2.msra.mxu0 0.0
      %1565 = vmatprep.mubr.f32.mxu0 0.0
      %1566 = vmatmul.mubr.f32.gmra.mxu0 %v1475
      %v1567 = vpop.f32.mrf.mxu0
      %v1568 = vadd.f32 0.0, %v1567
      %v1569 = vpop.f32.mrf.mxu0
      %v1570 = vadd.f32 0.0, %v1569
      %1571 = vmatprep.mubr.f32.mxu0 0.0
      %1572 = vmatmul.mubr.f32.gmra.mxu0 %v1478
      %v1573 = vpop.f32.mrf.mxu0
      %v1574 = vadd.f32 0.0, %v1573
      %v1575 = vpop.f32.mrf.mxu0
      %v1576 = vadd.f32 0.0, %v1575
      %1577 = vmatprep.mubr.f32.mxu0 0.0
      %1578 = vmatmul.mubr.f32.gmra.mxu0 %v1481
      %v1579 = vpop.f32.mrf.mxu0
      %v1580 = vadd.f32 0.0, %v1579
      %v1581 = vpop.f32.mrf.mxu0
      %v1582 = vadd.f32 0.0, %v1581
      %1583 = vmatprep.mubr.f32.mxu0 0.0
      %1584 = vmatmul.mubr.f32.gmra.mxu0 %v1484
      %v1585 = vpop.f32.mrf.mxu0
      %v1586 = vadd.f32 0.0, %v1585
      %v1587 = vpop.f32.mrf.mxu0
      %v1588 = vadd.f32 0.0, %v1587
      %1589 = vmatprep.mubr.f32.mxu0 0.0
      %1590 = vmatmul.mubr.f32.gmra.mxu0 %v1487
      %v1591 = vpop.f32.mrf.mxu0
      %v1592 = vadd.f32 0.0, %v1591
      %v1593 = vpop.f32.mrf.mxu0
      %v1594 = vadd.f32 0.0, %v1593
      %1595 = vmatprep.mubr.f32.mxu0 0.0
      %1596 = vmatmul.mubr.f32.gmra.mxu0 %v1490
      %v1597 = vpop.f32.mrf.mxu0
      %v1598 = vadd.f32 0.0, %v1597
      %v1599 = vpop.f32.mrf.mxu0
      %v1600 = vadd.f32 0.0, %v1599
      %1601 = vmatprep.mubr.f32.mxu0 0.0
      %1602 = vmatmul.mubr.f32.gmra.mxu0 %v1493
      %v1603 = vpop.f32.mrf.mxu0
      %v1604 = vadd.f32 0.0, %v1603
      %v1605 = vpop.f32.mrf.mxu0
      %v1606 = vadd.f32 0.0, %v1605
      %1607 = vmatprep.mubr.f32.mxu0 0.0
      %1608 = vmatmul.mubr.f32.gmra.mxu0 %v1496
      %v1609 = vpop.f32.mrf.mxu0
      %v1610 = vadd.f32 0.0, %v1609
      %v1611 = vpop.f32.mrf.mxu0
      %v1612 = vadd.f32 0.0, %v1611
      %1613 = vmatprep.mubr.f32.mxu0 0.0
      %1614 = vmatmul.mubr.f32.gmra.mxu0 %v1499
      %v1615 = vpop.f32.mrf.mxu0
      %v1616 = vadd.f32 0.0, %v1615
      %v1617 = vpop.f32.mrf.mxu0
      %v1618 = vadd.f32 0.0, %v1617
      %1619 = vdwg.mxu0
      %1620 = vrot.lane.b32.xlu0 %v1568, 1
      %v1621 = vpop.permute.xlu0 %1620
      %1622 = vrot.lane.b32.xlu0 %v1570, 1
      %v1623 = vpop.permute.xlu0 %1622
      %v1624 = vsel %vm1251, %v1621, %v1623
      %v1625 = vsel %vm1251, %v1623, %v1621
      %1626 = vrot.lane.b32.xlu0 %v1568, 17
      %v1627 = vpop.permute.xlu0 %1626
      %1628 = vrot.lane.b32.xlu0 %v1570, 17
      %v1629 = vpop.permute.xlu0 %1628
      %vm1630 = vcmp.lt.s32.totalorder %v22, 17
      %v1631 = vsel %vm1630, %v1627, %v1629
      %v1632 = vsel %vm1630, %v1629, %v1627
      %v1633 = vsel %vm48, %v1625, %v1632
      %v1634 = vsel %vm49, %v1624, %v1631
      %v1635 = vadd.f32 %v122, %v1633
      %v1636 = vadd.f32 %v122, %v1634
      %1637 = vrot.lane.b32.xlu0 %v1574, 16
      %v1638 = vpop.permute.xlu0 %1637
      %1639 = vrot.lane.b32.xlu0 %v1576, 16
      %v1640 = vpop.permute.xlu0 %1639
      %v1641 = vsel %vm1260, %v1638, %v1640
      %v1642 = vsel %vm1260, %v1640, %v1638
      %v1643 = vadd.f32 %v1635, %v1642
      %v1644 = vadd.f32 %v1636, %v1641
      %1645 = vrot.lane.b32.xlu0 %v1580, 31
      %v1646 = vpop.permute.xlu0 %1645
      %1647 = vrot.lane.b32.xlu0 %v1582, 31
      %v1648 = vpop.permute.xlu0 %1647
      %vm1649 = vcmp.lt.s32.totalorder %v22, 31
      %v1650 = vsel %vm1649, %v1646, %v1648
      %v1651 = vsel %vm1649, %v1648, %v1646
      %1652 = vrot.lane.b32.xlu0 %v1580, 15
      %v1653 = vpop.permute.xlu0 %1652
      %1654 = vrot.lane.b32.xlu0 %v1582, 15
      %v1655 = vpop.permute.xlu0 %1654
      %v1656 = vsel %vm1228, %v1653, %v1655
      %v1657 = vsel %vm1228, %v1655, %v1653
      %v1658 = vsel %vm50, %v1651, %v1657
      %v1659 = vsel %vm51, %v1650, %v1656
      %v1660 = vadd.f32 %v1643, %v1658
      %v1661 = vadd.f32 %v1644, %v1659
      %1662 = vrot.lane.b32.xlu0 %v1586, 113
      %v1663 = vpop.permute.xlu0 %1662
      %1664 = vrot.lane.b32.xlu0 %v1588, 113
      %v1665 = vpop.permute.xlu0 %1664
      %v1666 = vsel %vm1244, %v1663, %v1665
      %v1667 = vsel %vm1244, %v1665, %v1663
      %1668 = vrot.lane.b32.xlu0 %v1586, 1
      %v1669 = vpop.permute.xlu0 %1668
      %1670 = vrot.lane.b32.xlu0 %v1588, 1
      %v1671 = vpop.permute.xlu0 %1670
      %v1672 = vsel %vm1251, %v1669, %v1671
      %v1673 = vsel %vm1251, %v1671, %v1669
      %v1674 = vsel %vm48, %v1666, %v1673
      %v1675 = vsel %vm49, %v1667, %v1672
      %v1676 = vadd.f32 %v1660, %v1674
      %v1677 = vadd.f32 %v1661, %v1675
      %v1678 = vadd.f32 %v1676, %v1592
      %v1679 = vadd.f32 %v1677, %v1594
      %1680 = vrot.lane.b32.xlu0 %v1598, 15
      %v1681 = vpop.permute.xlu0 %1680
      %1682 = vrot.lane.b32.xlu0 %v1600, 15
      %v1683 = vpop.permute.xlu0 %1682
      %v1684 = vsel %vm1228, %v1681, %v1683
      %v1685 = vsel %vm1228, %v1683, %v1681
      %1686 = vrot.lane.b32.xlu0 %v1598, 127
      %v1687 = vpop.permute.xlu0 %1686
      %1688 = vrot.lane.b32.xlu0 %v1600, 127
      %v1689 = vpop.permute.xlu0 %1688
      %v1690 = vsel %vm1235, %v1687, %v1689
      %v1691 = vsel %vm1235, %v1689, %v1687
      %v1692 = vsel %vm50, %v1685, %v1690
      %v1693 = vsel %vm51, %v1684, %v1691
      %v1694 = vadd.f32 %v1678, %v1692
      %v1695 = vadd.f32 %v1679, %v1693
      %1696 = vrot.lane.b32.xlu0 %v1604, 97
      %v1697 = vpop.permute.xlu0 %1696
      %1698 = vrot.lane.b32.xlu0 %v1606, 97
      %v1699 = vpop.permute.xlu0 %1698
      %vm1700 = vcmp.lt.s32.totalorder %v22, 97
      %v1701 = vsel %vm1700, %v1697, %v1699
      %v1702 = vsel %vm1700, %v1699, %v1697
      %1703 = vrot.lane.b32.xlu0 %v1604, 113
      %v1704 = vpop.permute.xlu0 %1703
      %1705 = vrot.lane.b32.xlu0 %v1606, 113
      %v1706 = vpop.permute.xlu0 %1705
      %v1707 = vsel %vm1244, %v1704, %v1706
      %v1708 = vsel %vm1244, %v1706, %v1704
      %v1709 = vsel %vm48, %v1701, %v1707
      %v1710 = vsel %vm49, %v1702, %v1708
      %v1711 = vadd.f32 %v1694, %v1709
      %v1712 = vadd.f32 %v1695, %v1710
      %1713 = vrot.lane.b32.xlu0 %v1610, 112
      %v1714 = vpop.permute.xlu0 %1713
      %1715 = vrot.lane.b32.xlu0 %v1612, 112
      %v1716 = vpop.permute.xlu0 %1715
      %v1717 = vsel %vm1279, %v1714, %v1716
      %v1718 = vsel %vm1279, %v1716, %v1714
      %v1719 = vadd.f32 %v1711, %v1717
      %v1720 = vadd.f32 %v1712, %v1718
      %1721 = vrot.lane.b32.xlu0 %v1616, 127
      %v1722 = vpop.permute.xlu0 %1721
      %1723 = vrot.lane.b32.xlu0 %v1618, 127
      %v1724 = vpop.permute.xlu0 %1723
      %v1725 = vsel %vm1235, %v1722, %v1724
      %v1726 = vsel %vm1235, %v1724, %v1722
      %1727 = vrot.lane.b32.xlu0 %v1616, 111
      %v1728 = vpop.permute.xlu0 %1727
      %1729 = vrot.lane.b32.xlu0 %v1618, 111
      %v1730 = vpop.permute.xlu0 %1729
      %vm1731 = vcmp.lt.s32.totalorder %v22, 111
      %v1732 = vsel %vm1731, %v1728, %v1730
      %v1733 = vsel %vm1731, %v1730, %v1728
      %v1734 = vsel %vm50, %v1725, %v1732
      %v1735 = vsel %vm51, %v1726, %v1733
      %v1736 = vadd.f32 %v1719, %v1734
      %v1737 = vadd.f32 %v1720, %v1735
      %v1738 = vadd.f32 %v1437, %v1736
      %v1739 = vadd.f32 %v1439, %v1737
      %v1740 = vadd.f32 %v1222, %v1738
      %v1741 = vadd.f32 %v1223, %v1739
      %1742 = vst [vmem:[#allocation2] sm:$0xff] %v1740
      %1743 = vst [vmem:[#allocation2 + $0x8] sm:$0xff] %v1741
    $region45: #{tpu_custom_call.1} parent=1 // pred_fallthru
      _
    %v1744 = vld [vmem:[#allocation2] sm:$0xff]
    %v1745 = vld [vmem:[#allocation2 + $0x8] sm:$0xff]
    %s1746 = scalar_lea.vmem [#allocation3], 32
    %1747 = vst [vmem:[%s1746] sm:$0xff] %v1744
    %1748 = vst [vmem:[%s1746 + $0x8] sm:$0xff] %v1745
    %s1749 = sadd.s32 %s124, 3
    %p1750 = scmp.eq.s32.totalorder %s1749, 0
    // Predicated region
    $region46: #{tpu_custom_call.1} parent=1 // pred_check
      %p1751 = pneg %p1750
    $region47: #{tpu_custom_call.1} parent=1 // pred_check_branch
      %1753 = sbr.rel (%p1751) target = $region49
    $region48: #{tpu_custom_call.1} parent=1 // pred_region
      %v1754 = vld [vmem:[%s4] sm:$0xff]
      %v1755 = vld [vmem:[%s4 + $0x8] sm:$0xff]
      %1756 = vst [vmem:[#allocation2] sm:$0xff] %v1754
      %1757 = vst [vmem:[#allocation2 + $0x8] sm:$0xff] %v1755
    $region49: #{tpu_custom_call.1} parent=1 // pred_fallthru
      _
    %p1758 = scmp.gt.s32.totalorder %s1749, 0
    %p1759 = scmp.lt.s32.totalorder %s1749, 8
    %p1760 = pnand %p1758, %p1759
    %p1761 = pneg %p1760
    // Predicated region
    $region50: #{tpu_custom_call.1} parent=1 // pred_check
      _
    $region51: #{tpu_custom_call.1} parent=1 // pred_check_branch
      %1763 = sbr.rel (%p1760) target = $region53
    $region52: #{tpu_custom_call.1} parent=1 // pred_region
      %v1764 = vld [vmem:[#allocation2] sm:$0xff]
      %v1765 = vld [vmem:[#allocation2 + $0x8] sm:$0xff]
      %1766 = vrot.lane.b32.xlu0 %v1764, 15
      %v1767 = vpop.permute.xlu0 %1766
      %1768 = vrot.lane.b32.xlu0 %v1765, 15
      %v1769 = vpop.permute.xlu0 %1768
      %vm1770 = vcmp.lt.s32.totalorder %v22, 15
      %v1771 = vsel %vm1770, %v1767, %v1769
      %v1772 = vsel %vm1770, %v1769, %v1767
      %1773 = vrot.lane.b32.xlu0 %v1764, 127
      %v1774 = vpop.permute.xlu0 %1773
      %1775 = vrot.lane.b32.xlu0 %v1765, 127
      %v1776 = vpop.permute.xlu0 %1775
      %vm1777 = vcmp.lt.s32.totalorder %v22, 127
      %v1778 = vsel %vm1777, %v1774, %v1776
      %v1779 = vsel %vm1777, %v1776, %v1774
      %v1780 = vsel %vm50, %v1772, %v1778
      %v1781 = vsel %vm51, %v1771, %v1779
      %1782 = vrot.lane.b32.xlu0 %v1764, 113
      %v1783 = vpop.permute.xlu0 %1782
      %1784 = vrot.lane.b32.xlu0 %v1765, 113
      %v1785 = vpop.permute.xlu0 %1784
      %vm1786 = vcmp.lt.s32.totalorder %v22, 113
      %v1787 = vsel %vm1786, %v1783, %v1785
      %v1788 = vsel %vm1786, %v1785, %v1783
      %1789 = vrot.lane.b32.xlu0 %v1764, 1
      %v1790 = vpop.permute.xlu0 %1789
      %1791 = vrot.lane.b32.xlu0 %v1765, 1
      %v1792 = vpop.permute.xlu0 %1791
      %vm1793 = vcmp.lt.s32.totalorder %v22, 1
      %v1794 = vsel %vm1793, %v1790, %v1792
      %v1795 = vsel %vm1793, %v1792, %v1790
      %v1796 = vsel %vm48, %v1787, %v1795
      %v1797 = vsel %vm49, %v1788, %v1794
      %1798 = vrot.lane.b32.xlu0 %v1796, 16
      %v1799 = vpop.permute.xlu0 %1798
      %1800 = vrot.lane.b32.xlu0 %v1797, 16
      %v1801 = vpop.permute.xlu0 %1800
      %vm1802 = vcmp.lt.s32.totalorder %v22, 16
      %v1803 = vsel %vm1802, %v1799, %v1801
      %v1804 = vsel %vm1802, %v1801, %v1799
      %1805 = vrot.lane.b32.xlu0 %v1764, 16
      %v1806 = vpop.permute.xlu0 %1805
      %1807 = vrot.lane.b32.xlu0 %v1765, 16
      %v1808 = vpop.permute.xlu0 %1807
      %v1809 = vsel %vm1802, %v1806, %v1808
      %v1810 = vsel %vm1802, %v1808, %v1806
      %1811 = vrot.lane.b32.xlu0 %v1780, 16
      %v1812 = vpop.permute.xlu0 %1811
      %1813 = vrot.lane.b32.xlu0 %v1781, 16
      %v1814 = vpop.permute.xlu0 %1813
      %v1815 = vsel %vm1802, %v1812, %v1814
      %v1816 = vsel %vm1802, %v1814, %v1812
      %1817 = vrot.lane.b32.xlu0 %v1796, 112
      %v1818 = vpop.permute.xlu0 %1817
      %1819 = vrot.lane.b32.xlu0 %v1797, 112
      %v1820 = vpop.permute.xlu0 %1819
      %vm1821 = vcmp.lt.s32.totalorder %v22, 112
      %v1822 = vsel %vm1821, %v1818, %v1820
      %v1823 = vsel %vm1821, %v1820, %v1818
      %1824 = vrot.lane.b32.xlu0 %v1764, 112
      %v1825 = vpop.permute.xlu0 %1824
      %1826 = vrot.lane.b32.xlu0 %v1765, 112
      %v1827 = vpop.permute.xlu0 %1826
      %v1828 = vsel %vm1821, %v1825, %v1827
      %v1829 = vsel %vm1821, %v1827, %v1825
      %1830 = vrot.lane.b32.xlu0 %v1780, 112
      %v1831 = vpop.permute.xlu0 %1830
      %1832 = vrot.lane.b32.xlu0 %v1781, 112
      %v1833 = vpop.permute.xlu0 %1832
      %v1834 = vsel %vm1821, %v1831, %v1833
      %v1835 = vsel %vm1821, %v1833, %v1831
      %vm1836 = vcmask 588800
      %v1838 = vsel %vm1836, %v52, 0
      %v1841 = vsel %vm1836, %v53, 0
      %v1844 = vsel %vm1836, %v54, 0
      %v1847 = vsel %vm1836, %v55, 0
      %v1850 = vsel %vm1836, %v56, 0
      %v1853 = vsel %vm1836, %v57, 0
      %v1856 = vsel %vm1836, %v58, 0
      %v1859 = vsel %vm1836, %v59, 0
      %v1862 = vsel %vm1836, %v60, 0
      %1864 = vmatprep.subr.mxu0 0.0
      %1865 = vmatpush1.msra.mxu0 0.0
      %1866 = vmatprep.subr.mxu0 0.0
      %1867 = vmatpush1.msra.mxu0 0.0
      %1868 = vmatprep.subr.mxu0 0.0
      %1869 = vmatpush1.msra.mxu0 0.0
      %1870 = vmatprep.subr.mxu0 0.0
      %1871 = vmatpush1.msra.mxu0 0.0
      %1872 = vmatprep.subr.mxu0 0.0
      %1873 = vmatpush1.msra.mxu0 0.0
      %1874 = vmatprep.subr.mxu0 0.0
      %1875 = vmatpush1.msra.mxu0 0.0
      %1876 = vmatprep.subr.mxu0 0.0
      %1877 = vmatpush1.msra.mxu0 0.0
      %1878 = vmatprep.subr.mxu0 %v1835
      %1879 = vmatpush1.msra.mxu0 %v1834
      %1880 = vmatprep.subr.mxu0 %v1829
      %1881 = vmatpush1.msra.mxu0 %v1828
      %1882 = vmatprep.subr.mxu0 %v1823
      %1883 = vmatpush1.msra.mxu0 %v1822
      %1884 = vmatprep.subr.mxu0 %v1781
      %1885 = vmatpush1.msra.mxu0 %v1780
      %1886 = vmatprep.subr.mxu0 %v1765
      %1887 = vmatpush1.msra.mxu0 %v1764
      %1888 = vmatprep.subr.mxu0 %v1797
      %1889 = vmatpush1.msra.mxu0 %v1796
      %1890 = vmatprep.subr.mxu0 %v1815
      %1891 = vmatpush1.msra.mxu0 %v1816
      %1892 = vmatprep.subr.mxu0 %v1809
      %1893 = vmatpush1.msra.mxu0 %v1810
      %1894 = vmatprep.subr.mxu0 %v1803
      %1895 = vmatpush1.msra.mxu0 %v1804
      %1896 = vmatprep.subr.mxu0 0.0
      %1897 = vmatpush2.msra.mxu0 0.0
      %1898 = vmatprep.subr.mxu0 0.0
      %1899 = vmatpush2.msra.mxu0 0.0
      %1900 = vmatprep.subr.mxu0 0.0
      %1901 = vmatpush2.msra.mxu0 0.0
      %1902 = vmatprep.subr.mxu0 0.0
      %1903 = vmatpush2.msra.mxu0 0.0
      %1904 = vmatprep.subr.mxu0 0.0
      %1905 = vmatpush2.msra.mxu0 0.0
      %1906 = vmatprep.subr.mxu0 0.0
      %1907 = vmatpush2.msra.mxu0 0.0
      %1908 = vmatprep.subr.mxu0 0.0
      %1909 = vmatpush2.msra.mxu0 0.0
      %1910 = vmatprep.subr.mxu0 0.0
      %1911 = vmatpush2.msra.mxu0 0.0
      %1912 = vmatprep.subr.mxu0 0.0
      %1913 = vmatpush2.msra.mxu0 0.0
      %1914 = vmatprep.subr.mxu0 0.0
      %1915 = vmatpush2.msra.mxu0 0.0
      %1916 = vmatprep.subr.mxu0 0.0
      %1917 = vmatpush2.msra.mxu0 0.0
      %1918 = vmatprep.subr.mxu0 0.0
      %1919 = vmatpush2.msra.mxu0 0.0
      %1920 = vmatprep.subr.mxu0 0.0
      %1921 = vmatpush2.msra.mxu0 0.0
      %1922 = vmatprep.subr.mxu0 0.0
      %1923 = vmatpush2.msra.mxu0 0.0
      %1924 = vmatprep.subr.mxu0 0.0
      %1925 = vmatpush2.msra.mxu0 0.0
      %1926 = vmatprep.subr.mxu0 0.0
      %1927 = vmatpush2.msra.mxu0 0.0
      %1928 = vmatprep.mubr.f32.mxu0 0.0
      %1929 = vmatmul.mubr.f32.gmra.mxu0 %v1838
      %v1930 = vpop.f32.mrf.mxu0
      %v1931 = vadd.f32 0.0, %v1930
      %v1932 = vpop.f32.mrf.mxu0
      %v1933 = vadd.f32 0.0, %v1932
      %1934 = vmatprep.mubr.f32.mxu0 0.0
      %1935 = vmatmul.mubr.f32.gmra.mxu0 %v1841
      %v1936 = vpop.f32.mrf.mxu0
      %v1937 = vadd.f32 0.0, %v1936
      %v1938 = vpop.f32.mrf.mxu0
      %v1939 = vadd.f32 0.0, %v1938
      %1940 = vmatprep.mubr.f32.mxu0 0.0
      %1941 = vmatmul.mubr.f32.gmra.mxu0 %v1844
      %v1942 = vpop.f32.mrf.mxu0
      %v1943 = vadd.f32 0.0, %v1942
      %v1944 = vpop.f32.mrf.mxu0
      %v1945 = vadd.f32 0.0, %v1944
      %1946 = vmatprep.mubr.f32.mxu0 0.0
      %1947 = vmatmul.mubr.f32.gmra.mxu0 %v1847
      %v1948 = vpop.f32.mrf.mxu0
      %v1949 = vadd.f32 0.0, %v1948
      %v1950 = vpop.f32.mrf.mxu0
      %v1951 = vadd.f32 0.0, %v1950
      %1952 = vmatprep.mubr.f32.mxu0 0.0
      %1953 = vmatmul.mubr.f32.gmra.mxu0 %v1850
      %v1954 = vpop.f32.mrf.mxu0
      %v1955 = vadd.f32 0.0, %v1954
      %v1956 = vpop.f32.mrf.mxu0
      %v1957 = vadd.f32 0.0, %v1956
      %1958 = vmatprep.mubr.f32.mxu0 0.0
      %1959 = vmatmul.mubr.f32.gmra.mxu0 %v1853
      %v1960 = vpop.f32.mrf.mxu0
      %v1961 = vadd.f32 0.0, %v1960
      %v1962 = vpop.f32.mrf.mxu0
      %v1963 = vadd.f32 0.0, %v1962
      %1964 = vmatprep.mubr.f32.mxu0 0.0
      %1965 = vmatmul.mubr.f32.gmra.mxu0 %v1856
      %v1966 = vpop.f32.mrf.mxu0
      %v1967 = vadd.f32 0.0, %v1966
      %v1968 = vpop.f32.mrf.mxu0
      %v1969 = vadd.f32 0.0, %v1968
      %1970 = vmatprep.mubr.f32.mxu0 0.0
      %1971 = vmatmul.mubr.f32.gmra.mxu0 %v1859
      %v1972 = vpop.f32.mrf.mxu0
      %v1973 = vadd.f32 0.0, %v1972
      %v1974 = vpop.f32.mrf.mxu0
      %v1975 = vadd.f32 0.0, %v1974
      %1976 = vmatprep.mubr.f32.mxu0 0.0
      %1977 = vmatmul.mubr.f32.gmra.mxu0 %v1862
      %v1978 = vpop.f32.mrf.mxu0
      %v1979 = vadd.f32 0.0, %v1978
      %v1980 = vpop.f32.mrf.mxu0
      %v1981 = vadd.f32 0.0, %v1980
      %1982 = vdwg.mxu0
      %v1983 = vadd.f32 %v1931, %v81
      %v1984 = vadd.f32 %v1933, %v81
      %v1985 = vadd.f32 %v1937, %v86
      %v1986 = vadd.f32 %v1939, %v86
      %v1987 = vadd.f32 %v1943, %v91
      %v1988 = vadd.f32 %v1945, %v91
      %v1989 = vadd.f32 %v1949, %v96
      %v1990 = vadd.f32 %v1951, %v96
      %v1991 = vadd.f32 %v1955, %v101
      %v1992 = vadd.f32 %v1957, %v101
      %v1993 = vadd.f32 %v1961, %v106
      %v1994 = vadd.f32 %v1963, %v106
      %v1995 = vadd.f32 %v1967, %v111
      %v1996 = vadd.f32 %v1969, %v111
      %v1997 = vadd.f32 %v1973, %v116
      %v1998 = vadd.f32 %v1975, %v116
      %v1999 = vtanh.pop %v1983
      %v2000 = vtanh.pop %v1984
      %v2001 = vtanh.pop %v1985
      %v2002 = vtanh.pop %v1986
      %v2003 = vtanh.pop %v1987
      %v2004 = vtanh.pop %v1988
      %v2005 = vtanh.pop %v1989
      %v2006 = vtanh.pop %v1990
      %v2007 = vtanh.pop %v1991
      %v2008 = vtanh.pop %v1992
      %v2009 = vtanh.pop %v1993
      %v2010 = vtanh.pop %v1994
      %v2011 = vtanh.pop %v1995
      %v2012 = vtanh.pop %v1996
      %v2013 = vtanh.pop %v1997
      %v2014 = vtanh.pop %v1998
      %vm2015 = vcmask 523264
      %v2017 = vsel %vm2015, %v61, 0
      %v2020 = vsel %vm2015, %v62, 0
      %v2023 = vsel %vm2015, %v63, 0
      %v2026 = vsel %vm2015, %v64, 0
      %v2029 = vsel %vm2015, %v65, 0
      %v2032 = vsel %vm2015, %v66, 0
      %v2035 = vsel %vm2015, %v67, 0
      %v2038 = vsel %vm2015, %v68, 0
      %v2041 = vsel %vm2015, %v69, 0
      %2043 = vmatprep.subr.mxu0 0.0
      %2044 = vmatpush1.msra.mxu0 0.0
      %2045 = vmatprep.subr.mxu0 0.0
      %2046 = vmatpush1.msra.mxu0 0.0
      %2047 = vmatprep.subr.mxu0 0.0
      %2048 = vmatpush1.msra.mxu0 0.0
      %2049 = vmatprep.subr.mxu0 0.0
      %2050 = vmatpush1.msra.mxu0 0.0
      %2051 = vmatprep.subr.mxu0 0.0
      %2052 = vmatpush1.msra.mxu0 0.0
      %2053 = vmatprep.subr.mxu0 0.0
      %2054 = vmatpush1.msra.mxu0 0.0
      %2055 = vmatprep.subr.mxu0 0.0
      %2056 = vmatpush1.msra.mxu0 0.0
      %2057 = vmatprep.subr.mxu0 0.0
      %2058 = vmatpush1.msra.mxu0 0.0
      %2059 = vmatprep.subr.mxu0 %v2014
      %2060 = vmatpush1.msra.mxu0 %v2013
      %2061 = vmatprep.subr.mxu0 %v2012
      %2062 = vmatpush1.msra.mxu0 %v2011
      %2063 = vmatprep.subr.mxu0 %v2010
      %2064 = vmatpush1.msra.mxu0 %v2009
      %2065 = vmatprep.subr.mxu0 %v2008
      %2066 = vmatpush1.msra.mxu0 %v2007
      %2067 = vmatprep.subr.mxu0 %v2006
      %2068 = vmatpush1.msra.mxu0 %v2005
      %2069 = vmatprep.subr.mxu0 %v2004
      %2070 = vmatpush1.msra.mxu0 %v2003
      %2071 = vmatprep.subr.mxu0 %v2002
      %2072 = vmatpush1.msra.mxu0 %v2001
      %2073 = vmatprep.subr.mxu0 %v2000
      %2074 = vmatpush1.msra.mxu0 %v1999
      %2075 = vmatprep.subr.mxu0 0.0
      %2076 = vmatpush2.msra.mxu0 0.0
      %2077 = vmatprep.subr.mxu0 0.0
      %2078 = vmatpush2.msra.mxu0 0.0
      %2079 = vmatprep.subr.mxu0 0.0
      %2080 = vmatpush2.msra.mxu0 0.0
      %2081 = vmatprep.subr.mxu0 0.0
      %2082 = vmatpush2.msra.mxu0 0.0
      %2083 = vmatprep.subr.mxu0 0.0
      %2084 = vmatpush2.msra.mxu0 0.0
      %2085 = vmatprep.subr.mxu0 0.0
      %2086 = vmatpush2.msra.mxu0 0.0
      %2087 = vmatprep.subr.mxu0 0.0
      %2088 = vmatpush2.msra.mxu0 0.0
      %2089 = vmatprep.subr.mxu0 0.0
      %2090 = vmatpush2.msra.mxu0 0.0
      %2091 = vmatprep.subr.mxu0 0.0
      %2092 = vmatpush2.msra.mxu0 0.0
      %2093 = vmatprep.subr.mxu0 0.0
      %2094 = vmatpush2.msra.mxu0 0.0
      %2095 = vmatprep.subr.mxu0 0.0
      %2096 = vmatpush2.msra.mxu0 0.0
      %2097 = vmatprep.subr.mxu0 0.0
      %2098 = vmatpush2.msra.mxu0 0.0
      %2099 = vmatprep.subr.mxu0 0.0
      %2100 = vmatpush2.msra.mxu0 0.0
      %2101 = vmatprep.subr.mxu0 0.0
      %2102 = vmatpush2.msra.mxu0 0.0
      %2103 = vmatprep.subr.mxu0 0.0
      %2104 = vmatpush2.msra.mxu0 0.0
      %2105 = vmatprep.subr.mxu0 0.0
      %2106 = vmatpush2.msra.mxu0 0.0
      %2107 = vmatprep.mubr.f32.mxu0 0.0
      %2108 = vmatmul.mubr.f32.gmra.mxu0 %v2017
      %v2109 = vpop.f32.mrf.mxu0
      %v2110 = vadd.f32 0.0, %v2109
      %v2111 = vpop.f32.mrf.mxu0
      %v2112 = vadd.f32 0.0, %v2111
      %2113 = vmatprep.mubr.f32.mxu0 0.0
      %2114 = vmatmul.mubr.f32.gmra.mxu0 %v2020
      %v2115 = vpop.f32.mrf.mxu0
      %v2116 = vadd.f32 0.0, %v2115
      %v2117 = vpop.f32.mrf.mxu0
      %v2118 = vadd.f32 0.0, %v2117
      %2119 = vmatprep.mubr.f32.mxu0 0.0
      %2120 = vmatmul.mubr.f32.gmra.mxu0 %v2023
      %v2121 = vpop.f32.mrf.mxu0
      %v2122 = vadd.f32 0.0, %v2121
      %v2123 = vpop.f32.mrf.mxu0
      %v2124 = vadd.f32 0.0, %v2123
      %2125 = vmatprep.mubr.f32.mxu0 0.0
      %2126 = vmatmul.mubr.f32.gmra.mxu0 %v2026
      %v2127 = vpop.f32.mrf.mxu0
      %v2128 = vadd.f32 0.0, %v2127
      %v2129 = vpop.f32.mrf.mxu0
      %v2130 = vadd.f32 0.0, %v2129
      %2131 = vmatprep.mubr.f32.mxu0 0.0
      %2132 = vmatmul.mubr.f32.gmra.mxu0 %v2029
      %v2133 = vpop.f32.mrf.mxu0
      %v2134 = vadd.f32 0.0, %v2133
      %v2135 = vpop.f32.mrf.mxu0
      %v2136 = vadd.f32 0.0, %v2135
      %2137 = vmatprep.mubr.f32.mxu0 0.0
      %2138 = vmatmul.mubr.f32.gmra.mxu0 %v2032
      %v2139 = vpop.f32.mrf.mxu0
      %v2140 = vadd.f32 0.0, %v2139
      %v2141 = vpop.f32.mrf.mxu0
      %v2142 = vadd.f32 0.0, %v2141
      %2143 = vmatprep.mubr.f32.mxu0 0.0
      %2144 = vmatmul.mubr.f32.gmra.mxu0 %v2035
      %v2145 = vpop.f32.mrf.mxu0
      %v2146 = vadd.f32 0.0, %v2145
      %v2147 = vpop.f32.mrf.mxu0
      %v2148 = vadd.f32 0.0, %v2147
      %2149 = vmatprep.mubr.f32.mxu0 0.0
      %2150 = vmatmul.mubr.f32.gmra.mxu0 %v2038
      %v2151 = vpop.f32.mrf.mxu0
      %v2152 = vadd.f32 0.0, %v2151
      %v2153 = vpop.f32.mrf.mxu0
      %v2154 = vadd.f32 0.0, %v2153
      %2155 = vmatprep.mubr.f32.mxu0 0.0
      %2156 = vmatmul.mubr.f32.gmra.mxu0 %v2041
      %v2157 = vpop.f32.mrf.mxu0
      %v2158 = vadd.f32 0.0, %v2157
      %v2159 = vpop.f32.mrf.mxu0
      %v2160 = vadd.f32 0.0, %v2159
      %2161 = vdwg.mxu0
      %2162 = vrot.lane.b32.xlu0 %v2110, 1
      %v2163 = vpop.permute.xlu0 %2162
      %2164 = vrot.lane.b32.xlu0 %v2112, 1
      %v2165 = vpop.permute.xlu0 %2164
      %v2166 = vsel %vm1793, %v2163, %v2165
      %v2167 = vsel %vm1793, %v2165, %v2163
      %2168 = vrot.lane.b32.xlu0 %v2110, 17
      %v2169 = vpop.permute.xlu0 %2168
      %2170 = vrot.lane.b32.xlu0 %v2112, 17
      %v2171 = vpop.permute.xlu0 %2170
      %vm2172 = vcmp.lt.s32.totalorder %v22, 17
      %v2173 = vsel %vm2172, %v2169, %v2171
      %v2174 = vsel %vm2172, %v2171, %v2169
      %v2175 = vsel %vm48, %v2167, %v2174
      %v2176 = vsel %vm49, %v2166, %v2173
      %v2177 = vadd.f32 %v122, %v2175
      %v2178 = vadd.f32 %v122, %v2176
      %2179 = vrot.lane.b32.xlu0 %v2116, 16
      %v2180 = vpop.permute.xlu0 %2179
      %2181 = vrot.lane.b32.xlu0 %v2118, 16
      %v2182 = vpop.permute.xlu0 %2181
      %v2183 = vsel %vm1802, %v2180, %v2182
      %v2184 = vsel %vm1802, %v2182, %v2180
      %v2185 = vadd.f32 %v2177, %v2184
      %v2186 = vadd.f32 %v2178, %v2183
      %2187 = vrot.lane.b32.xlu0 %v2122, 31
      %v2188 = vpop.permute.xlu0 %2187
      %2189 = vrot.lane.b32.xlu0 %v2124, 31
      %v2190 = vpop.permute.xlu0 %2189
      %vm2191 = vcmp.lt.s32.totalorder %v22, 31
      %v2192 = vsel %vm2191, %v2188, %v2190
      %v2193 = vsel %vm2191, %v2190, %v2188
      %2194 = vrot.lane.b32.xlu0 %v2122, 15
      %v2195 = vpop.permute.xlu0 %2194
      %2196 = vrot.lane.b32.xlu0 %v2124, 15
      %v2197 = vpop.permute.xlu0 %2196
      %v2198 = vsel %vm1770, %v2195, %v2197
      %v2199 = vsel %vm1770, %v2197, %v2195
      %v2200 = vsel %vm50, %v2193, %v2199
      %v2201 = vsel %vm51, %v2192, %v2198
      %v2202 = vadd.f32 %v2185, %v2200
      %v2203 = vadd.f32 %v2186, %v2201
      %2204 = vrot.lane.b32.xlu0 %v2128, 113
      %v2205 = vpop.permute.xlu0 %2204
      %2206 = vrot.lane.b32.xlu0 %v2130, 113
      %v2207 = vpop.permute.xlu0 %2206
      %v2208 = vsel %vm1786, %v2205, %v2207
      %v2209 = vsel %vm1786, %v2207, %v2205
      %2210 = vrot.lane.b32.xlu0 %v2128, 1
      %v2211 = vpop.permute.xlu0 %2210
      %2212 = vrot.lane.b32.xlu0 %v2130, 1
      %v2213 = vpop.permute.xlu0 %2212
      %v2214 = vsel %vm1793, %v2211, %v2213
      %v2215 = vsel %vm1793, %v2213, %v2211
      %v2216 = vsel %vm48, %v2208, %v2215
      %v2217 = vsel %vm49, %v2209, %v2214
      %v2218 = vadd.f32 %v2202, %v2216
      %v2219 = vadd.f32 %v2203, %v2217
      %v2220 = vadd.f32 %v2218, %v2134
      %v2221 = vadd.f32 %v2219, %v2136
      %2222 = vrot.lane.b32.xlu0 %v2140, 15
      %v2223 = vpop.permute.xlu0 %2222
      %2224 = vrot.lane.b32.xlu0 %v2142, 15
      %v2225 = vpop.permute.xlu0 %2224
      %v2226 = vsel %vm1770, %v2223, %v2225
      %v2227 = vsel %vm1770, %v2225, %v2223
      %2228 = vrot.lane.b32.xlu0 %v2140, 127
      %v2229 = vpop.permute.xlu0 %2228
      %2230 = vrot.lane.b32.xlu0 %v2142, 127
      %v2231 = vpop.permute.xlu0 %2230
      %v2232 = vsel %vm1777, %v2229, %v2231
      %v2233 = vsel %vm1777, %v2231, %v2229
      %v2234 = vsel %vm50, %v2227, %v2232
      %v2235 = vsel %vm51, %v2226, %v2233
      %v2236 = vadd.f32 %v2220, %v2234
      %v2237 = vadd.f32 %v2221, %v2235
      %2238 = vrot.lane.b32.xlu0 %v2146, 97
      %v2239 = vpop.permute.xlu0 %2238
      %2240 = vrot.lane.b32.xlu0 %v2148, 97
      %v2241 = vpop.permute.xlu0 %2240
      %vm2242 = vcmp.lt.s32.totalorder %v22, 97
      %v2243 = vsel %vm2242, %v2239, %v2241
      %v2244 = vsel %vm2242, %v2241, %v2239
      %2245 = vrot.lane.b32.xlu0 %v2146, 113
      %v2246 = vpop.permute.xlu0 %2245
      %2247 = vrot.lane.b32.xlu0 %v2148, 113
      %v2248 = vpop.permute.xlu0 %2247
      %v2249 = vsel %vm1786, %v2246, %v2248
      %v2250 = vsel %vm1786, %v2248, %v2246
      %v2251 = vsel %vm48, %v2243, %v2249
      %v2252 = vsel %vm49, %v2244, %v2250
      %v2253 = vadd.f32 %v2236, %v2251
      %v2254 = vadd.f32 %v2237, %v2252
      %2255 = vrot.lane.b32.xlu0 %v2152, 112
      %v2256 = vpop.permute.xlu0 %2255
      %2257 = vrot.lane.b32.xlu0 %v2154, 112
      %v2258 = vpop.permute.xlu0 %2257
      %v2259 = vsel %vm1821, %v2256, %v2258
      %v2260 = vsel %vm1821, %v2258, %v2256
      %v2261 = vadd.f32 %v2253, %v2259
      %v2262 = vadd.f32 %v2254, %v2260
      %2263 = vrot.lane.b32.xlu0 %v2158, 127
      %v2264 = vpop.permute.xlu0 %2263
      %2265 = vrot.lane.b32.xlu0 %v2160, 127
      %v2266 = vpop.permute.xlu0 %2265
      %v2267 = vsel %vm1777, %v2264, %v2266
      %v2268 = vsel %vm1777, %v2266, %v2264
      %2269 = vrot.lane.b32.xlu0 %v2158, 111
      %v2270 = vpop.permute.xlu0 %2269
      %2271 = vrot.lane.b32.xlu0 %v2160, 111
      %v2272 = vpop.permute.xlu0 %2271
      %vm2273 = vcmp.lt.s32.totalorder %v22, 111
      %v2274 = vsel %vm2273, %v2270, %v2272
      %v2275 = vsel %vm2273, %v2272, %v2270
      %v2276 = vsel %vm50, %v2267, %v2274
      %v2277 = vsel %vm51, %v2268, %v2275
      %v2278 = vadd.f32 %v2261, %v2276
      %v2279 = vadd.f32 %v2262, %v2277
      %v2280 = vadd.f32 %v1979, %v2278
      %v2281 = vadd.f32 %v1981, %v2279
      %v2282 = vadd.f32 %v1764, %v2280
      %v2283 = vadd.f32 %v1765, %v2281
      %2284 = vst [vmem:[#allocation2] sm:$0xff] %v2282
      %2285 = vst [vmem:[#allocation2 + $0x8] sm:$0xff] %v2283
    $region53: #{tpu_custom_call.1} parent=1 // pred_fallthru
      _
    %v2286 = vld [vmem:[#allocation2] sm:$0xff]
    %v2287 = vld [vmem:[#allocation2 + $0x8] sm:$0xff]
    %s2288 = scalar_lea.vmem [#allocation3], 48
    %2289 = vst [vmem:[%s2288] sm:$0xff] %v2286
    %2290 = vst [vmem:[%s2288 + $0x8] sm:$0xff] %v2287
    %s2291 = sadd.s32 %s124, 4
    %p2292 = scmp.eq.s32.totalorder %s2291, 0
    // Predicated region
    $region54: #{tpu_custom_call.1} parent=1 // pred_check
      %p2293 = pneg %p2292
    $region55: #{tpu_custom_call.1} parent=1 // pred_check_branch
      %2295 = sbr.rel (%p2293) target = $region57
    $region56: #{tpu_custom_call.1} parent=1 // pred_region
      %v2296 = vld [vmem:[%s4] sm:$0xff]
      %v2297 = vld [vmem:[%s4 + $0x8] sm:$0xff]
      %2298 = vst [vmem:[#allocation2] sm:$0xff] %v2296
      %2299 = vst [vmem:[#allocation2 + $0x8] sm:$0xff] %v2297
    $region57: #{tpu_custom_call.1} parent=1 // pred_fallthru
      _
    %p2300 = scmp.gt.s32.totalorder %s2291, 0
    %p2301 = scmp.lt.s32.totalorder %s2291, 8
    %p2302 = pnand %p2300, %p2301
    %p2303 = pneg %p2302
    // Predicated region
    $region58: #{tpu_custom_call.1} parent=1 // pred_check
      _
    $region59: #{tpu_custom_call.1} parent=1 // pred_check_branch
      %2305 = sbr.rel (%p2302) target = $region61
    $region60: #{tpu_custom_call.1} parent=1 // pred_region
      %v2306 = vld [vmem:[#allocation2] sm:$0xff]
      %v2307 = vld [vmem:[#allocation2 + $0x8] sm:$0xff]
      %2308 = vrot.lane.b32.xlu0 %v2306, 15
      %v2309 = vpop.permute.xlu0 %2308
      %2310 = vrot.lane.b32.xlu0 %v2307, 15
      %v2311 = vpop.permute.xlu0 %2310
      %vm2312 = vcmp.lt.s32.totalorder %v22, 15
      %v2313 = vsel %vm2312, %v2309, %v2311
      %v2314 = vsel %vm2312, %v2311, %v2309
      %2315 = vrot.lane.b32.xlu0 %v2306, 127
      %v2316 = vpop.permute.xlu0 %2315
      %2317 = vrot.lane.b32.xlu0 %v2307, 127
      %v2318 = vpop.permute.xlu0 %2317
      %vm2319 = vcmp.lt.s32.totalorder %v22, 127
      %v2320 = vsel %vm2319, %v2316, %v2318
      %v2321 = vsel %vm2319, %v2318, %v2316
      %v2322 = vsel %vm50, %v2314, %v2320
      %v2323 = vsel %vm51, %v2313, %v2321
      %2324 = vrot.lane.b32.xlu0 %v2306, 113
      %v2325 = vpop.permute.xlu0 %2324
      %2326 = vrot.lane.b32.xlu0 %v2307, 113
      %v2327 = vpop.permute.xlu0 %2326
      %vm2328 = vcmp.lt.s32.totalorder %v22, 113
      %v2329 = vsel %vm2328, %v2325, %v2327
      %v2330 = vsel %vm2328, %v2327, %v2325
      %2331 = vrot.lane.b32.xlu0 %v2306, 1
      %v2332 = vpop.permute.xlu0 %2331
      %2333 = vrot.lane.b32.xlu0 %v2307, 1
      %v2334 = vpop.permute.xlu0 %2333
      %vm2335 = vcmp.lt.s32.totalorder %v22, 1
      %v2336 = vsel %vm2335, %v2332, %v2334
      %v2337 = vsel %vm2335, %v2334, %v2332
      %v2338 = vsel %vm48, %v2329, %v2337
      %v2339 = vsel %vm49, %v2330, %v2336
      %2340 = vrot.lane.b32.xlu0 %v2338, 16
      %v2341 = vpop.permute.xlu0 %2340
      %2342 = vrot.lane.b32.xlu0 %v2339, 16
      %v2343 = vpop.permute.xlu0 %2342
      %vm2344 = vcmp.lt.s32.totalorder %v22, 16
      %v2345 = vsel %vm2344, %v2341, %v2343
      %v2346 = vsel %vm2344, %v2343, %v2341
      %2347 = vrot.lane.b32.xlu0 %v2306, 16
      %v2348 = vpop.permute.xlu0 %2347
      %2349 = vrot.lane.b32.xlu0 %v2307, 16
      %v2350 = vpop.permute.xlu0 %2349
      %v2351 = vsel %vm2344, %v2348, %v2350
      %v2352 = vsel %vm2344, %v2350, %v2348
      %2353 = vrot.lane.b32.xlu0 %v2322, 16
      %v2354 = vpop.permute.xlu0 %2353
      %2355 = vrot.lane.b32.xlu0 %v2323, 16
      %v2356 = vpop.permute.xlu0 %2355
      %v2357 = vsel %vm2344, %v2354, %v2356
      %v2358 = vsel %vm2344, %v2356, %v2354
      %2359 = vrot.lane.b32.xlu0 %v2338, 112
      %v2360 = vpop.permute.xlu0 %2359
      %2361 = vrot.lane.b32.xlu0 %v2339, 112
      %v2362 = vpop.permute.xlu0 %2361
      %vm2363 = vcmp.lt.s32.totalorder %v22, 112
      %v2364 = vsel %vm2363, %v2360, %v2362
      %v2365 = vsel %vm2363, %v2362, %v2360
      %2366 = vrot.lane.b32.xlu0 %v2306, 112
      %v2367 = vpop.permute.xlu0 %2366
      %2368 = vrot.lane.b32.xlu0 %v2307, 112
      %v2369 = vpop.permute.xlu0 %2368
      %v2370 = vsel %vm2363, %v2367, %v2369
      %v2371 = vsel %vm2363, %v2369, %v2367
      %2372 = vrot.lane.b32.xlu0 %v2322, 112
      %v2373 = vpop.permute.xlu0 %2372
      %2374 = vrot.lane.b32.xlu0 %v2323, 112
      %v2375 = vpop.permute.xlu0 %2374
      %v2376 = vsel %vm2363, %v2373, %v2375
      %v2377 = vsel %vm2363, %v2375, %v2373
      %vm2378 = vcmask 588800
      %v2380 = vsel %vm2378, %v52, 0
      %v2383 = vsel %vm2378, %v53, 0
      %v2386 = vsel %vm2378, %v54, 0
      %v2389 = vsel %vm2378, %v55, 0
      %v2392 = vsel %vm2378, %v56, 0
      %v2395 = vsel %vm2378, %v57, 0
      %v2398 = vsel %vm2378, %v58, 0
      %v2401 = vsel %vm2378, %v59, 0
      %v2404 = vsel %vm2378, %v60, 0
      %2406 = vmatprep.subr.mxu0 0.0
      %2407 = vmatpush1.msra.mxu0 0.0
      %2408 = vmatprep.subr.mxu0 0.0
      %2409 = vmatpush1.msra.mxu0 0.0
      %2410 = vmatprep.subr.mxu0 0.0
      %2411 = vmatpush1.msra.mxu0 0.0
      %2412 = vmatprep.subr.mxu0 0.0
      %2413 = vmatpush1.msra.mxu0 0.0
      %2414 = vmatprep.subr.mxu0 0.0
      %2415 = vmatpush1.msra.mxu0 0.0
      %2416 = vmatprep.subr.mxu0 0.0
      %2417 = vmatpush1.msra.mxu0 0.0
      %2418 = vmatprep.subr.mxu0 0.0
      %2419 = vmatpush1.msra.mxu0 0.0
      %2420 = vmatprep.subr.mxu0 %v2377
      %2421 = vmatpush1.msra.mxu0 %v2376
      %2422 = vmatprep.subr.mxu0 %v2371
      %2423 = vmatpush1.msra.mxu0 %v2370
      %2424 = vmatprep.subr.mxu0 %v2365
      %2425 = vmatpush1.msra.mxu0 %v2364
      %2426 = vmatprep.subr.mxu0 %v2323
      %2427 = vmatpush1.msra.mxu0 %v2322
      %2428 = vmatprep.subr.mxu0 %v2307
      %2429 = vmatpush1.msra.mxu0 %v2306
      %2430 = vmatprep.subr.mxu0 %v2339
      %2431 = vmatpush1.msra.mxu0 %v2338
      %2432 = vmatprep.subr.mxu0 %v2357
      %2433 = vmatpush1.msra.mxu0 %v2358
      %2434 = vmatprep.subr.mxu0 %v2351
      %2435 = vmatpush1.msra.mxu0 %v2352
      %2436 = vmatprep.subr.mxu0 %v2345
      %2437 = vmatpush1.msra.mxu0 %v2346
      %2438 = vmatprep.subr.mxu0 0.0
      %2439 = vmatpush2.msra.mxu0 0.0
      %2440 = vmatprep.subr.mxu0 0.0
      %2441 = vmatpush2.msra.mxu0 0.0
      %2442 = vmatprep.subr.mxu0 0.0
      %2443 = vmatpush2.msra.mxu0 0.0
      %2444 = vmatprep.subr.mxu0 0.0
      %2445 = vmatpush2.msra.mxu0 0.0
      %2446 = vmatprep.subr.mxu0 0.0
      %2447 = vmatpush2.msra.mxu0 0.0
      %2448 = vmatprep.subr.mxu0 0.0
      %2449 = vmatpush2.msra.mxu0 0.0
      %2450 = vmatprep.subr.mxu0 0.0
      %2451 = vmatpush2.msra.mxu0 0.0
      %2452 = vmatprep.subr.mxu0 0.0
      %2453 = vmatpush2.msra.mxu0 0.0
      %2454 = vmatprep.subr.mxu0 0.0
      %2455 = vmatpush2.msra.mxu0 0.0
      %2456 = vmatprep.subr.mxu0 0.0
      %2457 = vmatpush2.msra.mxu0 0.0
      %2458 = vmatprep.subr.mxu0 0.0
      %2459 = vmatpush2.msra.mxu0 0.0
      %2460 = vmatprep.subr.mxu0 0.0
      %2461 = vmatpush2.msra.mxu0 0.0
      %2462 = vmatprep.subr.mxu0 0.0
      %2463 = vmatpush2.msra.mxu0 0.0
      %2464 = vmatprep.subr.mxu0 0.0
      %2465 = vmatpush2.msra.mxu0 0.0
      %2466 = vmatprep.subr.mxu0 0.0
      %2467 = vmatpush2.msra.mxu0 0.0
      %2468 = vmatprep.subr.mxu0 0.0
      %2469 = vmatpush2.msra.mxu0 0.0
      %2470 = vmatprep.mubr.f32.mxu0 0.0
      %2471 = vmatmul.mubr.f32.gmra.mxu0 %v2380
      %v2472 = vpop.f32.mrf.mxu0
      %v2473 = vadd.f32 0.0, %v2472
      %v2474 = vpop.f32.mrf.mxu0
      %v2475 = vadd.f32 0.0, %v2474
      %2476 = vmatprep.mubr.f32.mxu0 0.0
      %2477 = vmatmul.mubr.f32.gmra.mxu0 %v2383
      %v2478 = vpop.f32.mrf.mxu0
      %v2479 = vadd.f32 0.0, %v2478
      %v2480 = vpop.f32.mrf.mxu0
      %v2481 = vadd.f32 0.0, %v2480
      %2482 = vmatprep.mubr.f32.mxu0 0.0
      %2483 = vmatmul.mubr.f32.gmra.mxu0 %v2386
      %v2484 = vpop.f32.mrf.mxu0
      %v2485 = vadd.f32 0.0, %v2484
      %v2486 = vpop.f32.mrf.mxu0
      %v2487 = vadd.f32 0.0, %v2486
      %2488 = vmatprep.mubr.f32.mxu0 0.0
      %2489 = vmatmul.mubr.f32.gmra.mxu0 %v2389
      %v2490 = vpop.f32.mrf.mxu0
      %v2491 = vadd.f32 0.0, %v2490
      %v2492 = vpop.f32.mrf.mxu0
      %v2493 = vadd.f32 0.0, %v2492
      %2494 = vmatprep.mubr.f32.mxu0 0.0
      %2495 = vmatmul.mubr.f32.gmra.mxu0 %v2392
      %v2496 = vpop.f32.mrf.mxu0
      %v2497 = vadd.f32 0.0, %v2496
      %v2498 = vpop.f32.mrf.mxu0
      %v2499 = vadd.f32 0.0, %v2498
      %2500 = vmatprep.mubr.f32.mxu0 0.0
      %2501 = vmatmul.mubr.f32.gmra.mxu0 %v2395
      %v2502 = vpop.f32.mrf.mxu0
      %v2503 = vadd.f32 0.0, %v2502
      %v2504 = vpop.f32.mrf.mxu0
      %v2505 = vadd.f32 0.0, %v2504
      %2506 = vmatprep.mubr.f32.mxu0 0.0
      %2507 = vmatmul.mubr.f32.gmra.mxu0 %v2398
      %v2508 = vpop.f32.mrf.mxu0
      %v2509 = vadd.f32 0.0, %v2508
      %v2510 = vpop.f32.mrf.mxu0
      %v2511 = vadd.f32 0.0, %v2510
      %2512 = vmatprep.mubr.f32.mxu0 0.0
      %2513 = vmatmul.mubr.f32.gmra.mxu0 %v2401
      %v2514 = vpop.f32.mrf.mxu0
      %v2515 = vadd.f32 0.0, %v2514
      %v2516 = vpop.f32.mrf.mxu0
      %v2517 = vadd.f32 0.0, %v2516
      %2518 = vmatprep.mubr.f32.mxu0 0.0
      %2519 = vmatmul.mubr.f32.gmra.mxu0 %v2404
      %v2520 = vpop.f32.mrf.mxu0
      %v2521 = vadd.f32 0.0, %v2520
      %v2522 = vpop.f32.mrf.mxu0
      %v2523 = vadd.f32 0.0, %v2522
      %2524 = vdwg.mxu0
      %v2525 = vadd.f32 %v2473, %v81
      %v2526 = vadd.f32 %v2475, %v81
      %v2527 = vadd.f32 %v2479, %v86
      %v2528 = vadd.f32 %v2481, %v86
      %v2529 = vadd.f32 %v2485, %v91
      %v2530 = vadd.f32 %v2487, %v91
      %v2531 = vadd.f32 %v2491, %v96
      %v2532 = vadd.f32 %v2493, %v96
      %v2533 = vadd.f32 %v2497, %v101
      %v2534 = vadd.f32 %v2499, %v101
      %v2535 = vadd.f32 %v2503, %v106
      %v2536 = vadd.f32 %v2505, %v106
      %v2537 = vadd.f32 %v2509, %v111
      %v2538 = vadd.f32 %v2511, %v111
      %v2539 = vadd.f32 %v2515, %v116
      %v2540 = vadd.f32 %v2517, %v116
      %v2541 = vtanh.pop %v2525
      %v2542 = vtanh.pop %v2526
      %v2543 = vtanh.pop %v2527
      %v2544 = vtanh.pop %v2528
      %v2545 = vtanh.pop %v2529
      %v2546 = vtanh.pop %v2530
      %v2547 = vtanh.pop %v2531
      %v2548 = vtanh.pop %v2532
      %v2549 = vtanh.pop %v2533
      %v2550 = vtanh.pop %v2534
      %v2551 = vtanh.pop %v2535
      %v2552 = vtanh.pop %v2536
      %v2553 = vtanh.pop %v2537
      %v2554 = vtanh.pop %v2538
      %v2555 = vtanh.pop %v2539
      %v2556 = vtanh.pop %v2540
      %vm2557 = vcmask 523264
      %v2559 = vsel %vm2557, %v61, 0
      %v2562 = vsel %vm2557, %v62, 0
      %v2565 = vsel %vm2557, %v63, 0
      %v2568 = vsel %vm2557, %v64, 0
      %v2571 = vsel %vm2557, %v65, 0
      %v2574 = vsel %vm2557, %v66, 0
      %v2577 = vsel %vm2557, %v67, 0
      %v2580 = vsel %vm2557, %v68, 0
      %v2583 = vsel %vm2557, %v69, 0
      %2585 = vmatprep.subr.mxu0 0.0
      %2586 = vmatpush1.msra.mxu0 0.0
      %2587 = vmatprep.subr.mxu0 0.0
      %2588 = vmatpush1.msra.mxu0 0.0
      %2589 = vmatprep.subr.mxu0 0.0
      %2590 = vmatpush1.msra.mxu0 0.0
      %2591 = vmatprep.subr.mxu0 0.0
      %2592 = vmatpush1.msra.mxu0 0.0
      %2593 = vmatprep.subr.mxu0 0.0
      %2594 = vmatpush1.msra.mxu0 0.0
      %2595 = vmatprep.subr.mxu0 0.0
      %2596 = vmatpush1.msra.mxu0 0.0
      %2597 = vmatprep.subr.mxu0 0.0
      %2598 = vmatpush1.msra.mxu0 0.0
      %2599 = vmatprep.subr.mxu0 0.0
      %2600 = vmatpush1.msra.mxu0 0.0
      %2601 = vmatprep.subr.mxu0 %v2556
      %2602 = vmatpush1.msra.mxu0 %v2555
      %2603 = vmatprep.subr.mxu0 %v2554
      %2604 = vmatpush1.msra.mxu0 %v2553
      %2605 = vmatprep.subr.mxu0 %v2552
      %2606 = vmatpush1.msra.mxu0 %v2551
      %2607 = vmatprep.subr.mxu0 %v2550
      %2608 = vmatpush1.msra.mxu0 %v2549
      %2609 = vmatprep.subr.mxu0 %v2548
      %2610 = vmatpush1.msra.mxu0 %v2547
      %2611 = vmatprep.subr.mxu0 %v2546
      %2612 = vmatpush1.msra.mxu0 %v2545
      %2613 = vmatprep.subr.mxu0 %v2544
      %2614 = vmatpush1.msra.mxu0 %v2543
      %2615 = vmatprep.subr.mxu0 %v2542
      %2616 = vmatpush1.msra.mxu0 %v2541
      %2617 = vmatprep.subr.mxu0 0.0
      %2618 = vmatpush2.msra.mxu0 0.0
      %2619 = vmatprep.subr.mxu0 0.0
      %2620 = vmatpush2.msra.mxu0 0.0
      %2621 = vmatprep.subr.mxu0 0.0
      %2622 = vmatpush2.msra.mxu0 0.0
      %2623 = vmatprep.subr.mxu0 0.0
      %2624 = vmatpush2.msra.mxu0 0.0
      %2625 = vmatprep.subr.mxu0 0.0
      %2626 = vmatpush2.msra.mxu0 0.0
      %2627 = vmatprep.subr.mxu0 0.0
      %2628 = vmatpush2.msra.mxu0 0.0
      %2629 = vmatprep.subr.mxu0 0.0
      %2630 = vmatpush2.msra.mxu0 0.0
      %2631 = vmatprep.subr.mxu0 0.0
      %2632 = vmatpush2.msra.mxu0 0.0
      %2633 = vmatprep.subr.mxu0 0.0
      %2634 = vmatpush2.msra.mxu0 0.0
      %2635 = vmatprep.subr.mxu0 0.0
      %2636 = vmatpush2.msra.mxu0 0.0
      %2637 = vmatprep.subr.mxu0 0.0
      %2638 = vmatpush2.msra.mxu0 0.0
      %2639 = vmatprep.subr.mxu0 0.0
      %2640 = vmatpush2.msra.mxu0 0.0
      %2641 = vmatprep.subr.mxu0 0.0
      %2642 = vmatpush2.msra.mxu0 0.0
      %2643 = vmatprep.subr.mxu0 0.0
      %2644 = vmatpush2.msra.mxu0 0.0
      %2645 = vmatprep.subr.mxu0 0.0
      %2646 = vmatpush2.msra.mxu0 0.0
      %2647 = vmatprep.subr.mxu0 0.0
      %2648 = vmatpush2.msra.mxu0 0.0
      %2649 = vmatprep.mubr.f32.mxu0 0.0
      %2650 = vmatmul.mubr.f32.gmra.mxu0 %v2559
      %v2651 = vpop.f32.mrf.mxu0
      %v2652 = vadd.f32 0.0, %v2651
      %v2653 = vpop.f32.mrf.mxu0
      %v2654 = vadd.f32 0.0, %v2653
      %2655 = vmatprep.mubr.f32.mxu0 0.0
      %2656 = vmatmul.mubr.f32.gmra.mxu0 %v2562
      %v2657 = vpop.f32.mrf.mxu0
      %v2658 = vadd.f32 0.0, %v2657
      %v2659 = vpop.f32.mrf.mxu0
      %v2660 = vadd.f32 0.0, %v2659
      %2661 = vmatprep.mubr.f32.mxu0 0.0
      %2662 = vmatmul.mubr.f32.gmra.mxu0 %v2565
      %v2663 = vpop.f32.mrf.mxu0
      %v2664 = vadd.f32 0.0, %v2663
      %v2665 = vpop.f32.mrf.mxu0
      %v2666 = vadd.f32 0.0, %v2665
      %2667 = vmatprep.mubr.f32.mxu0 0.0
      %2668 = vmatmul.mubr.f32.gmra.mxu0 %v2568
      %v2669 = vpop.f32.mrf.mxu0
      %v2670 = vadd.f32 0.0, %v2669
      %v2671 = vpop.f32.mrf.mxu0
      %v2672 = vadd.f32 0.0, %v2671
      %2673 = vmatprep.mubr.f32.mxu0 0.0
      %2674 = vmatmul.mubr.f32.gmra.mxu0 %v2571
      %v2675 = vpop.f32.mrf.mxu0
      %v2676 = vadd.f32 0.0, %v2675
      %v2677 = vpop.f32.mrf.mxu0
      %v2678 = vadd.f32 0.0, %v2677
      %2679 = vmatprep.mubr.f32.mxu0 0.0
      %2680 = vmatmul.mubr.f32.gmra.mxu0 %v2574
      %v2681 = vpop.f32.mrf.mxu0
      %v2682 = vadd.f32 0.0, %v2681
      %v2683 = vpop.f32.mrf.mxu0
      %v2684 = vadd.f32 0.0, %v2683
      %2685 = vmatprep.mubr.f32.mxu0 0.0
      %2686 = vmatmul.mubr.f32.gmra.mxu0 %v2577
      %v2687 = vpop.f32.mrf.mxu0
      %v2688 = vadd.f32 0.0, %v2687
      %v2689 = vpop.f32.mrf.mxu0
      %v2690 = vadd.f32 0.0, %v2689
      %2691 = vmatprep.mubr.f32.mxu0 0.0
      %2692 = vmatmul.mubr.f32.gmra.mxu0 %v2580
      %v2693 = vpop.f32.mrf.mxu0
      %v2694 = vadd.f32 0.0, %v2693
      %v2695 = vpop.f32.mrf.mxu0
      %v2696 = vadd.f32 0.0, %v2695
      %2697 = vmatprep.mubr.f32.mxu0 0.0
      %2698 = vmatmul.mubr.f32.gmra.mxu0 %v2583
      %v2699 = vpop.f32.mrf.mxu0
      %v2700 = vadd.f32 0.0, %v2699
      %v2701 = vpop.f32.mrf.mxu0
      %v2702 = vadd.f32 0.0, %v2701
      %2703 = vdwg.mxu0
      %2704 = vrot.lane.b32.xlu0 %v2652, 1
      %v2705 = vpop.permute.xlu0 %2704
      %2706 = vrot.lane.b32.xlu0 %v2654, 1
      %v2707 = vpop.permute.xlu0 %2706
      %v2708 = vsel %vm2335, %v2705, %v2707
      %v2709 = vsel %vm2335, %v2707, %v2705
      %2710 = vrot.lane.b32.xlu0 %v2652, 17
      %v2711 = vpop.permute.xlu0 %2710
      %2712 = vrot.lane.b32.xlu0 %v2654, 17
      %v2713 = vpop.permute.xlu0 %2712
      %vm2714 = vcmp.lt.s32.totalorder %v22, 17
      %v2715 = vsel %vm2714, %v2711, %v2713
      %v2716 = vsel %vm2714, %v2713, %v2711
      %v2717 = vsel %vm48, %v2709, %v2716
      %v2718 = vsel %vm49, %v2708, %v2715
      %v2719 = vadd.f32 %v122, %v2717
      %v2720 = vadd.f32 %v122, %v2718
      %2721 = vrot.lane.b32.xlu0 %v2658, 16
      %v2722 = vpop.permute.xlu0 %2721
      %2723 = vrot.lane.b32.xlu0 %v2660, 16
      %v2724 = vpop.permute.xlu0 %2723
      %v2725 = vsel %vm2344, %v2722, %v2724
      %v2726 = vsel %vm2344, %v2724, %v2722
      %v2727 = vadd.f32 %v2719, %v2726
      %v2728 = vadd.f32 %v2720, %v2725
      %2729 = vrot.lane.b32.xlu0 %v2664, 31
      %v2730 = vpop.permute.xlu0 %2729
      %2731 = vrot.lane.b32.xlu0 %v2666, 31
      %v2732 = vpop.permute.xlu0 %2731
      %vm2733 = vcmp.lt.s32.totalorder %v22, 31
      %v2734 = vsel %vm2733, %v2730, %v2732
      %v2735 = vsel %vm2733, %v2732, %v2730
      %2736 = vrot.lane.b32.xlu0 %v2664, 15
      %v2737 = vpop.permute.xlu0 %2736
      %2738 = vrot.lane.b32.xlu0 %v2666, 15
      %v2739 = vpop.permute.xlu0 %2738
      %v2740 = vsel %vm2312, %v2737, %v2739
      %v2741 = vsel %vm2312, %v2739, %v2737
      %v2742 = vsel %vm50, %v2735, %v2741
      %v2743 = vsel %vm51, %v2734, %v2740
      %v2744 = vadd.f32 %v2727, %v2742
      %v2745 = vadd.f32 %v2728, %v2743
      %2746 = vrot.lane.b32.xlu0 %v2670, 113
      %v2747 = vpop.permute.xlu0 %2746
      %2748 = vrot.lane.b32.xlu0 %v2672, 113
      %v2749 = vpop.permute.xlu0 %2748
      %v2750 = vsel %vm2328, %v2747, %v2749
      %v2751 = vsel %vm2328, %v2749, %v2747
      %2752 = vrot.lane.b32.xlu0 %v2670, 1
      %v2753 = vpop.permute.xlu0 %2752
      %2754 = vrot.lane.b32.xlu0 %v2672, 1
      %v2755 = vpop.permute.xlu0 %2754
      %v2756 = vsel %vm2335, %v2753, %v2755
      %v2757 = vsel %vm2335, %v2755, %v2753
      %v2758 = vsel %vm48, %v2750, %v2757
      %v2759 = vsel %vm49, %v2751, %v2756
      %v2760 = vadd.f32 %v2744, %v2758
      %v2761 = vadd.f32 %v2745, %v2759
      %v2762 = vadd.f32 %v2760, %v2676
      %v2763 = vadd.f32 %v2761, %v2678
      %2764 = vrot.lane.b32.xlu0 %v2682, 15
      %v2765 = vpop.permute.xlu0 %2764
      %2766 = vrot.lane.b32.xlu0 %v2684, 15
      %v2767 = vpop.permute.xlu0 %2766
      %v2768 = vsel %vm2312, %v2765, %v2767
      %v2769 = vsel %vm2312, %v2767, %v2765
      %2770 = vrot.lane.b32.xlu0 %v2682, 127
      %v2771 = vpop.permute.xlu0 %2770
      %2772 = vrot.lane.b32.xlu0 %v2684, 127
      %v2773 = vpop.permute.xlu0 %2772
      %v2774 = vsel %vm2319, %v2771, %v2773
      %v2775 = vsel %vm2319, %v2773, %v2771
      %v2776 = vsel %vm50, %v2769, %v2774
      %v2777 = vsel %vm51, %v2768, %v2775
      %v2778 = vadd.f32 %v2762, %v2776
      %v2779 = vadd.f32 %v2763, %v2777
      %2780 = vrot.lane.b32.xlu0 %v2688, 97
      %v2781 = vpop.permute.xlu0 %2780
      %2782 = vrot.lane.b32.xlu0 %v2690, 97
      %v2783 = vpop.permute.xlu0 %2782
      %vm2784 = vcmp.lt.s32.totalorder %v22, 97
      %v2785 = vsel %vm2784, %v2781, %v2783
      %v2786 = vsel %vm2784, %v2783, %v2781
      %2787 = vrot.lane.b32.xlu0 %v2688, 113
      %v2788 = vpop.permute.xlu0 %2787
      %2789 = vrot.lane.b32.xlu0 %v2690, 113
      %v2790 = vpop.permute.xlu0 %2789
      %v2791 = vsel %vm2328, %v2788, %v2790
      %v2792 = vsel %vm2328, %v2790, %v2788
      %v2793 = vsel %vm48, %v2785, %v2791
      %v2794 = vsel %vm49, %v2786, %v2792
      %v2795 = vadd.f32 %v2778, %v2793
      %v2796 = vadd.f32 %v2779, %v2794
      %2797 = vrot.lane.b32.xlu0 %v2694, 112
      %v2798 = vpop.permute.xlu0 %2797
      %2799 = vrot.lane.b32.xlu0 %v2696, 112
      %v2800 = vpop.permute.xlu0 %2799
      %v2801 = vsel %vm2363, %v2798, %v2800
      %v2802 = vsel %vm2363, %v2800, %v2798
      %v2803 = vadd.f32 %v2795, %v2801
      %v2804 = vadd.f32 %v2796, %v2802
      %2805 = vrot.lane.b32.xlu0 %v2700, 127
      %v2806 = vpop.permute.xlu0 %2805
      %2807 = vrot.lane.b32.xlu0 %v2702, 127
      %v2808 = vpop.permute.xlu0 %2807
      %v2809 = vsel %vm2319, %v2806, %v2808
      %v2810 = vsel %vm2319, %v2808, %v2806
      %2811 = vrot.lane.b32.xlu0 %v2700, 111
      %v2812 = vpop.permute.xlu0 %2811
      %2813 = vrot.lane.b32.xlu0 %v2702, 111
      %v2814 = vpop.permute.xlu0 %2813
      %vm2815 = vcmp.lt.s32.totalorder %v22, 111
      %v2816 = vsel %vm2815, %v2812, %v2814
      %v2817 = vsel %vm2815, %v2814, %v2812
      %v2818 = vsel %vm50, %v2809, %v2816
      %v2819 = vsel %vm51, %v2810, %v2817
      %v2820 = vadd.f32 %v2803, %v2818
      %v2821 = vadd.f32 %v2804, %v2819
      %v2822 = vadd.f32 %v2521, %v2820
      %v2823 = vadd.f32 %v2523, %v2821
      %v2824 = vadd.f32 %v2306, %v2822
      %v2825 = vadd.f32 %v2307, %v2823
      %2826 = vst [vmem:[#allocation2] sm:$0xff] %v2824
      %2827 = vst [vmem:[#allocation2 + $0x8] sm:$0xff] %v2825
    $region61: #{tpu_custom_call.1} parent=1 // pred_fallthru
      _
    %v2828 = vld [vmem:[#allocation2] sm:$0xff]
    %v2829 = vld [vmem:[#allocation2 + $0x8] sm:$0xff]
    %s2830 = scalar_lea.vmem [#allocation3], 64
    %2831 = vst [vmem:[%s2830] sm:$0xff] %v2828
    %2832 = vst [vmem:[%s2830 + $0x8] sm:$0xff] %v2829
    %s2833 = sadd.s32 %s124, 5
    %p2834 = scmp.eq.s32.totalorder %s2833, 0
    // Predicated region
    $region62: #{tpu_custom_call.1} parent=1 // pred_check
      %p2835 = pneg %p2834
    $region63: #{tpu_custom_call.1} parent=1 // pred_check_branch
      %2837 = sbr.rel (%p2835) target = $region65
    $region64: #{tpu_custom_call.1} parent=1 // pred_region
      %v2838 = vld [vmem:[%s4] sm:$0xff]
      %v2839 = vld [vmem:[%s4 + $0x8] sm:$0xff]
      %2840 = vst [vmem:[#allocation2] sm:$0xff] %v2838
      %2841 = vst [vmem:[#allocation2 + $0x8] sm:$0xff] %v2839
    $region65: #{tpu_custom_call.1} parent=1 // pred_fallthru
      _
    %p2842 = scmp.gt.s32.totalorder %s2833, 0
    %p2843 = scmp.lt.s32.totalorder %s2833, 8
    %p2844 = pnand %p2842, %p2843
    %p2845 = pneg %p2844
    // Predicated region
    $region66: #{tpu_custom_call.1} parent=1 // pred_check
      _
    $region67: #{tpu_custom_call.1} parent=1 // pred_check_branch
      %2847 = sbr.rel (%p2844) target = $region69
    $region68: #{tpu_custom_call.1} parent=1 // pred_region
      %v2848 = vld [vmem:[#allocation2] sm:$0xff]
      %v2849 = vld [vmem:[#allocation2 + $0x8] sm:$0xff]
      %2850 = vrot.lane.b32.xlu0 %v2848, 15
      %v2851 = vpop.permute.xlu0 %2850
      %2852 = vrot.lane.b32.xlu0 %v2849, 15
      %v2853 = vpop.permute.xlu0 %2852
      %vm2854 = vcmp.lt.s32.totalorder %v22, 15
      %v2855 = vsel %vm2854, %v2851, %v2853
      %v2856 = vsel %vm2854, %v2853, %v2851
      %2857 = vrot.lane.b32.xlu0 %v2848, 127
      %v2858 = vpop.permute.xlu0 %2857
      %2859 = vrot.lane.b32.xlu0 %v2849, 127
      %v2860 = vpop.permute.xlu0 %2859
      %vm2861 = vcmp.lt.s32.totalorder %v22, 127
      %v2862 = vsel %vm2861, %v2858, %v2860
      %v2863 = vsel %vm2861, %v2860, %v2858
      %v2864 = vsel %vm50, %v2856, %v2862
      %v2865 = vsel %vm51, %v2855, %v2863
      %2866 = vrot.lane.b32.xlu0 %v2848, 113
      %v2867 = vpop.permute.xlu0 %2866
      %2868 = vrot.lane.b32.xlu0 %v2849, 113
      %v2869 = vpop.permute.xlu0 %2868
      %vm2870 = vcmp.lt.s32.totalorder %v22, 113
      %v2871 = vsel %vm2870, %v2867, %v2869
      %v2872 = vsel %vm2870, %v2869, %v2867
      %2873 = vrot.lane.b32.xlu0 %v2848, 1
      %v2874 = vpop.permute.xlu0 %2873
      %2875 = vrot.lane.b32.xlu0 %v2849, 1
      %v2876 = vpop.permute.xlu0 %2875
      %vm2877 = vcmp.lt.s32.totalorder %v22, 1
      %v2878 = vsel %vm2877, %v2874, %v2876
      %v2879 = vsel %vm2877, %v2876, %v2874
      %v2880 = vsel %vm48, %v2871, %v2879
      %v2881 = vsel %vm49, %v2872, %v2878
      %2882 = vrot.lane.b32.xlu0 %v2880, 16
      %v2883 = vpop.permute.xlu0 %2882
      %2884 = vrot.lane.b32.xlu0 %v2881, 16
      %v2885 = vpop.permute.xlu0 %2884
      %vm2886 = vcmp.lt.s32.totalorder %v22, 16
      %v2887 = vsel %vm2886, %v2883, %v2885
      %v2888 = vsel %vm2886, %v2885, %v2883
      %2889 = vrot.lane.b32.xlu0 %v2848, 16
      %v2890 = vpop.permute.xlu0 %2889
      %2891 = vrot.lane.b32.xlu0 %v2849, 16
      %v2892 = vpop.permute.xlu0 %2891
      %v2893 = vsel %vm2886, %v2890, %v2892
      %v2894 = vsel %vm2886, %v2892, %v2890
      %2895 = vrot.lane.b32.xlu0 %v2864, 16
      %v2896 = vpop.permute.xlu0 %2895
      %2897 = vrot.lane.b32.xlu0 %v2865, 16
      %v2898 = vpop.permute.xlu0 %2897
      %v2899 = vsel %vm2886, %v2896, %v2898
      %v2900 = vsel %vm2886, %v2898, %v2896
      %2901 = vrot.lane.b32.xlu0 %v2880, 112
      %v2902 = vpop.permute.xlu0 %2901
      %2903 = vrot.lane.b32.xlu0 %v2881, 112
      %v2904 = vpop.permute.xlu0 %2903
      %vm2905 = vcmp.lt.s32.totalorder %v22, 112
      %v2906 = vsel %vm2905, %v2902, %v2904
      %v2907 = vsel %vm2905, %v2904, %v2902
      %2908 = vrot.lane.b32.xlu0 %v2848, 112
      %v2909 = vpop.permute.xlu0 %2908
      %2910 = vrot.lane.b32.xlu0 %v2849, 112
      %v2911 = vpop.permute.xlu0 %2910
      %v2912 = vsel %vm2905, %v2909, %v2911
      %v2913 = vsel %vm2905, %v2911, %v2909
      %2914 = vrot.lane.b32.xlu0 %v2864, 112
      %v2915 = vpop.permute.xlu0 %2914
      %2916 = vrot.lane.b32.xlu0 %v2865, 112
      %v2917 = vpop.permute.xlu0 %2916
      %v2918 = vsel %vm2905, %v2915, %v2917
      %v2919 = vsel %vm2905, %v2917, %v2915
      %vm2920 = vcmask 588800
      %v2922 = vsel %vm2920, %v52, 0
      %v2925 = vsel %vm2920, %v53, 0
      %v2928 = vsel %vm2920, %v54, 0
      %v2931 = vsel %vm2920, %v55, 0
      %v2934 = vsel %vm2920, %v56, 0
      %v2937 = vsel %vm2920, %v57, 0
      %v2940 = vsel %vm2920, %v58, 0
      %v2943 = vsel %vm2920, %v59, 0
      %v2946 = vsel %vm2920, %v60, 0
      %2948 = vmatprep.subr.mxu0 0.0
      %2949 = vmatpush1.msra.mxu0 0.0
      %2950 = vmatprep.subr.mxu0 0.0
      %2951 = vmatpush1.msra.mxu0 0.0
      %2952 = vmatprep.subr.mxu0 0.0
      %2953 = vmatpush1.msra.mxu0 0.0
      %2954 = vmatprep.subr.mxu0 0.0
      %2955 = vmatpush1.msra.mxu0 0.0
      %2956 = vmatprep.subr.mxu0 0.0
      %2957 = vmatpush1.msra.mxu0 0.0
      %2958 = vmatprep.subr.mxu0 0.0
      %2959 = vmatpush1.msra.mxu0 0.0
      %2960 = vmatprep.subr.mxu0 0.0
      %2961 = vmatpush1.msra.mxu0 0.0
      %2962 = vmatprep.subr.mxu0 %v2919
      %2963 = vmatpush1.msra.mxu0 %v2918
      %2964 = vmatprep.subr.mxu0 %v2913
      %2965 = vmatpush1.msra.mxu0 %v2912
      %2966 = vmatprep.subr.mxu0 %v2907
      %2967 = vmatpush1.msra.mxu0 %v2906
      %2968 = vmatprep.subr.mxu0 %v2865
      %2969 = vmatpush1.msra.mxu0 %v2864
      %2970 = vmatprep.subr.mxu0 %v2849
      %2971 = vmatpush1.msra.mxu0 %v2848
      %2972 = vmatprep.subr.mxu0 %v2881
      %2973 = vmatpush1.msra.mxu0 %v2880
      %2974 = vmatprep.subr.mxu0 %v2899
      %2975 = vmatpush1.msra.mxu0 %v2900
      %2976 = vmatprep.subr.mxu0 %v2893
      %2977 = vmatpush1.msra.mxu0 %v2894
      %2978 = vmatprep.subr.mxu0 %v2887
      %2979 = vmatpush1.msra.mxu0 %v2888
      %2980 = vmatprep.subr.mxu0 0.0
      %2981 = vmatpush2.msra.mxu0 0.0
      %2982 = vmatprep.subr.mxu0 0.0
      %2983 = vmatpush2.msra.mxu0 0.0
      %2984 = vmatprep.subr.mxu0 0.0
      %2985 = vmatpush2.msra.mxu0 0.0
      %2986 = vmatprep.subr.mxu0 0.0
      %2987 = vmatpush2.msra.mxu0 0.0
      %2988 = vmatprep.subr.mxu0 0.0
      %2989 = vmatpush2.msra.mxu0 0.0
      %2990 = vmatprep.subr.mxu0 0.0
      %2991 = vmatpush2.msra.mxu0 0.0
      %2992 = vmatprep.subr.mxu0 0.0
      %2993 = vmatpush2.msra.mxu0 0.0
      %2994 = vmatprep.subr.mxu0 0.0
      %2995 = vmatpush2.msra.mxu0 0.0
      %2996 = vmatprep.subr.mxu0 0.0
      %2997 = vmatpush2.msra.mxu0 0.0
      %2998 = vmatprep.subr.mxu0 0.0
      %2999 = vmatpush2.msra.mxu0 0.0
      %3000 = vmatprep.subr.mxu0 0.0
      %3001 = vmatpush2.msra.mxu0 0.0
      %3002 = vmatprep.subr.mxu0 0.0
      %3003 = vmatpush2.msra.mxu0 0.0
      %3004 = vmatprep.subr.mxu0 0.0
      %3005 = vmatpush2.msra.mxu0 0.0
      %3006 = vmatprep.subr.mxu0 0.0
      %3007 = vmatpush2.msra.mxu0 0.0
      %3008 = vmatprep.subr.mxu0 0.0
      %3009 = vmatpush2.msra.mxu0 0.0
      %3010 = vmatprep.subr.mxu0 0.0
      %3011 = vmatpush2.msra.mxu0 0.0
      %3012 = vmatprep.mubr.f32.mxu0 0.0
      %3013 = vmatmul.mubr.f32.gmra.mxu0 %v2922
      %v3014 = vpop.f32.mrf.mxu0
      %v3015 = vadd.f32 0.0, %v3014
      %v3016 = vpop.f32.mrf.mxu0
      %v3017 = vadd.f32 0.0, %v3016
      %3018 = vmatprep.mubr.f32.mxu0 0.0
      %3019 = vmatmul.mubr.f32.gmra.mxu0 %v2925
      %v3020 = vpop.f32.mrf.mxu0
      %v3021 = vadd.f32 0.0, %v3020
      %v3022 = vpop.f32.mrf.mxu0
      %v3023 = vadd.f32 0.0, %v3022
      %3024 = vmatprep.mubr.f32.mxu0 0.0
      %3025 = vmatmul.mubr.f32.gmra.mxu0 %v2928
      %v3026 = vpop.f32.mrf.mxu0
      %v3027 = vadd.f32 0.0, %v3026
      %v3028 = vpop.f32.mrf.mxu0
      %v3029 = vadd.f32 0.0, %v3028
      %3030 = vmatprep.mubr.f32.mxu0 0.0
      %3031 = vmatmul.mubr.f32.gmra.mxu0 %v2931
      %v3032 = vpop.f32.mrf.mxu0
      %v3033 = vadd.f32 0.0, %v3032
      %v3034 = vpop.f32.mrf.mxu0
      %v3035 = vadd.f32 0.0, %v3034
      %3036 = vmatprep.mubr.f32.mxu0 0.0
      %3037 = vmatmul.mubr.f32.gmra.mxu0 %v2934
      %v3038 = vpop.f32.mrf.mxu0
      %v3039 = vadd.f32 0.0, %v3038
      %v3040 = vpop.f32.mrf.mxu0
      %v3041 = vadd.f32 0.0, %v3040
      %3042 = vmatprep.mubr.f32.mxu0 0.0
      %3043 = vmatmul.mubr.f32.gmra.mxu0 %v2937
      %v3044 = vpop.f32.mrf.mxu0
      %v3045 = vadd.f32 0.0, %v3044
      %v3046 = vpop.f32.mrf.mxu0
      %v3047 = vadd.f32 0.0, %v3046
      %3048 = vmatprep.mubr.f32.mxu0 0.0
      %3049 = vmatmul.mubr.f32.gmra.mxu0 %v2940
      %v3050 = vpop.f32.mrf.mxu0
      %v3051 = vadd.f32 0.0, %v3050
      %v3052 = vpop.f32.mrf.mxu0
      %v3053 = vadd.f32 0.0, %v3052
      %3054 = vmatprep.mubr.f32.mxu0 0.0
      %3055 = vmatmul.mubr.f32.gmra.mxu0 %v2943
      %v3056 = vpop.f32.mrf.mxu0
      %v3057 = vadd.f32 0.0, %v3056
      %v3058 = vpop.f32.mrf.mxu0
      %v3059 = vadd.f32 0.0, %v3058
      %3060 = vmatprep.mubr.f32.mxu0 0.0
      %3061 = vmatmul.mubr.f32.gmra.mxu0 %v2946
      %v3062 = vpop.f32.mrf.mxu0
      %v3063 = vadd.f32 0.0, %v3062
      %v3064 = vpop.f32.mrf.mxu0
      %v3065 = vadd.f32 0.0, %v3064
      %3066 = vdwg.mxu0
      %v3067 = vadd.f32 %v3015, %v81
      %v3068 = vadd.f32 %v3017, %v81
      %v3069 = vadd.f32 %v3021, %v86
      %v3070 = vadd.f32 %v3023, %v86
      %v3071 = vadd.f32 %v3027, %v91
      %v3072 = vadd.f32 %v3029, %v91
      %v3073 = vadd.f32 %v3033, %v96
      %v3074 = vadd.f32 %v3035, %v96
      %v3075 = vadd.f32 %v3039, %v101
      %v3076 = vadd.f32 %v3041, %v101
      %v3077 = vadd.f32 %v3045, %v106
      %v3078 = vadd.f32 %v3047, %v106
      %v3079 = vadd.f32 %v3051, %v111
      %v3080 = vadd.f32 %v3053, %v111
      %v3081 = vadd.f32 %v3057, %v116
      %v3082 = vadd.f32 %v3059, %v116
      %v3083 = vtanh.pop %v3067
      %v3084 = vtanh.pop %v3068
      %v3085 = vtanh.pop %v3069
      %v3086 = vtanh.pop %v3070
      %v3087 = vtanh.pop %v3071
      %v3088 = vtanh.pop %v3072
      %v3089 = vtanh.pop %v3073
      %v3090 = vtanh.pop %v3074
      %v3091 = vtanh.pop %v3075
      %v3092 = vtanh.pop %v3076
      %v3093 = vtanh.pop %v3077
      %v3094 = vtanh.pop %v3078
      %v3095 = vtanh.pop %v3079
      %v3096 = vtanh.pop %v3080
      %v3097 = vtanh.pop %v3081
      %v3098 = vtanh.pop %v3082
      %vm3099 = vcmask 523264
      %v3101 = vsel %vm3099, %v61, 0
      %v3104 = vsel %vm3099, %v62, 0
      %v3107 = vsel %vm3099, %v63, 0
      %v3110 = vsel %vm3099, %v64, 0
      %v3113 = vsel %vm3099, %v65, 0
      %v3116 = vsel %vm3099, %v66, 0
      %v3119 = vsel %vm3099, %v67, 0
      %v3122 = vsel %vm3099, %v68, 0
      %v3125 = vsel %vm3099, %v69, 0
      %3127 = vmatprep.subr.mxu0 0.0
      %3128 = vmatpush1.msra.mxu0 0.0
      %3129 = vmatprep.subr.mxu0 0.0
      %3130 = vmatpush1.msra.mxu0 0.0
      %3131 = vmatprep.subr.mxu0 0.0
      %3132 = vmatpush1.msra.mxu0 0.0
      %3133 = vmatprep.subr.mxu0 0.0
      %3134 = vmatpush1.msra.mxu0 0.0
      %3135 = vmatprep.subr.mxu0 0.0
      %3136 = vmatpush1.msra.mxu0 0.0
      %3137 = vmatprep.subr.mxu0 0.0
      %3138 = vmatpush1.msra.mxu0 0.0
      %3139 = vmatprep.subr.mxu0 0.0
      %3140 = vmatpush1.msra.mxu0 0.0
      %3141 = vmatprep.subr.mxu0 0.0
      %3142 = vmatpush1.msra.mxu0 0.0
      %3143 = vmatprep.subr.mxu0 %v3098
      %3144 = vmatpush1.msra.mxu0 %v3097
      %3145 = vmatprep.subr.mxu0 %v3096
      %3146 = vmatpush1.msra.mxu0 %v3095
      %3147 = vmatprep.subr.mxu0 %v3094
      %3148 = vmatpush1.msra.mxu0 %v3093
      %3149 = vmatprep.subr.mxu0 %v3092
      %3150 = vmatpush1.msra.mxu0 %v3091
      %3151 = vmatprep.subr.mxu0 %v3090
      %3152 = vmatpush1.msra.mxu0 %v3089
      %3153 = vmatprep.subr.mxu0 %v3088
      %3154 = vmatpush1.msra.mxu0 %v3087
      %3155 = vmatprep.subr.mxu0 %v3086
      %3156 = vmatpush1.msra.mxu0 %v3085
      %3157 = vmatprep.subr.mxu0 %v3084
      %3158 = vmatpush1.msra.mxu0 %v3083
      %3159 = vmatprep.subr.mxu0 0.0
      %3160 = vmatpush2.msra.mxu0 0.0
      %3161 = vmatprep.subr.mxu0 0.0
      %3162 = vmatpush2.msra.mxu0 0.0
      %3163 = vmatprep.subr.mxu0 0.0
      %3164 = vmatpush2.msra.mxu0 0.0
      %3165 = vmatprep.subr.mxu0 0.0
      %3166 = vmatpush2.msra.mxu0 0.0
      %3167 = vmatprep.subr.mxu0 0.0
      %3168 = vmatpush2.msra.mxu0 0.0
      %3169 = vmatprep.subr.mxu0 0.0
      %3170 = vmatpush2.msra.mxu0 0.0
      %3171 = vmatprep.subr.mxu0 0.0
      %3172 = vmatpush2.msra.mxu0 0.0
      %3173 = vmatprep.subr.mxu0 0.0
      %3174 = vmatpush2.msra.mxu0 0.0
      %3175 = vmatprep.subr.mxu0 0.0
      %3176 = vmatpush2.msra.mxu0 0.0
      %3177 = vmatprep.subr.mxu0 0.0
      %3178 = vmatpush2.msra.mxu0 0.0
      %3179 = vmatprep.subr.mxu0 0.0
      %3180 = vmatpush2.msra.mxu0 0.0
      %3181 = vmatprep.subr.mxu0 0.0
      %3182 = vmatpush2.msra.mxu0 0.0
      %3183 = vmatprep.subr.mxu0 0.0
      %3184 = vmatpush2.msra.mxu0 0.0
      %3185 = vmatprep.subr.mxu0 0.0
      %3186 = vmatpush2.msra.mxu0 0.0
      %3187 = vmatprep.subr.mxu0 0.0
      %3188 = vmatpush2.msra.mxu0 0.0
      %3189 = vmatprep.subr.mxu0 0.0
      %3190 = vmatpush2.msra.mxu0 0.0
      %3191 = vmatprep.mubr.f32.mxu0 0.0
      %3192 = vmatmul.mubr.f32.gmra.mxu0 %v3101
      %v3193 = vpop.f32.mrf.mxu0
      %v3194 = vadd.f32 0.0, %v3193
      %v3195 = vpop.f32.mrf.mxu0
      %v3196 = vadd.f32 0.0, %v3195
      %3197 = vmatprep.mubr.f32.mxu0 0.0
      %3198 = vmatmul.mubr.f32.gmra.mxu0 %v3104
      %v3199 = vpop.f32.mrf.mxu0
      %v3200 = vadd.f32 0.0, %v3199
      %v3201 = vpop.f32.mrf.mxu0
      %v3202 = vadd.f32 0.0, %v3201
      %3203 = vmatprep.mubr.f32.mxu0 0.0
      %3204 = vmatmul.mubr.f32.gmra.mxu0 %v3107
      %v3205 = vpop.f32.mrf.mxu0
      %v3206 = vadd.f32 0.0, %v3205
      %v3207 = vpop.f32.mrf.mxu0
      %v3208 = vadd.f32 0.0, %v3207
      %3209 = vmatprep.mubr.f32.mxu0 0.0
      %3210 = vmatmul.mubr.f32.gmra.mxu0 %v3110
      %v3211 = vpop.f32.mrf.mxu0
      %v3212 = vadd.f32 0.0, %v3211
      %v3213 = vpop.f32.mrf.mxu0
      %v3214 = vadd.f32 0.0, %v3213
      %3215 = vmatprep.mubr.f32.mxu0 0.0
      %3216 = vmatmul.mubr.f32.gmra.mxu0 %v3113
      %v3217 = vpop.f32.mrf.mxu0
      %v3218 = vadd.f32 0.0, %v3217
      %v3219 = vpop.f32.mrf.mxu0
      %v3220 = vadd.f32 0.0, %v3219
      %3221 = vmatprep.mubr.f32.mxu0 0.0
      %3222 = vmatmul.mubr.f32.gmra.mxu0 %v3116
      %v3223 = vpop.f32.mrf.mxu0
      %v3224 = vadd.f32 0.0, %v3223
      %v3225 = vpop.f32.mrf.mxu0
      %v3226 = vadd.f32 0.0, %v3225
      %3227 = vmatprep.mubr.f32.mxu0 0.0
      %3228 = vmatmul.mubr.f32.gmra.mxu0 %v3119
      %v3229 = vpop.f32.mrf.mxu0
      %v3230 = vadd.f32 0.0, %v3229
      %v3231 = vpop.f32.mrf.mxu0
      %v3232 = vadd.f32 0.0, %v3231
      %3233 = vmatprep.mubr.f32.mxu0 0.0
      %3234 = vmatmul.mubr.f32.gmra.mxu0 %v3122
      %v3235 = vpop.f32.mrf.mxu0
      %v3236 = vadd.f32 0.0, %v3235
      %v3237 = vpop.f32.mrf.mxu0
      %v3238 = vadd.f32 0.0, %v3237
      %3239 = vmatprep.mubr.f32.mxu0 0.0
      %3240 = vmatmul.mubr.f32.gmra.mxu0 %v3125
      %v3241 = vpop.f32.mrf.mxu0
      %v3242 = vadd.f32 0.0, %v3241
      %v3243 = vpop.f32.mrf.mxu0
      %v3244 = vadd.f32 0.0, %v3243
      %3245 = vdwg.mxu0
      %3246 = vrot.lane.b32.xlu0 %v3194, 1
      %v3247 = vpop.permute.xlu0 %3246
      %3248 = vrot.lane.b32.xlu0 %v3196, 1
      %v3249 = vpop.permute.xlu0 %3248
      %v3250 = vsel %vm2877, %v3247, %v3249
      %v3251 = vsel %vm2877, %v3249, %v3247
      %3252 = vrot.lane.b32.xlu0 %v3194, 17
      %v3253 = vpop.permute.xlu0 %3252
      %3254 = vrot.lane.b32.xlu0 %v3196, 17
      %v3255 = vpop.permute.xlu0 %3254
      %vm3256 = vcmp.lt.s32.totalorder %v22, 17
      %v3257 = vsel %vm3256, %v3253, %v3255
      %v3258 = vsel %vm3256, %v3255, %v3253
      %v3259 = vsel %vm48, %v3251, %v3258
      %v3260 = vsel %vm49, %v3250, %v3257
      %v3261 = vadd.f32 %v122, %v3259
      %v3262 = vadd.f32 %v122, %v3260
      %3263 = vrot.lane.b32.xlu0 %v3200, 16
      %v3264 = vpop.permute.xlu0 %3263
      %3265 = vrot.lane.b32.xlu0 %v3202, 16
      %v3266 = vpop.permute.xlu0 %3265
      %v3267 = vsel %vm2886, %v3264, %v3266
      %v3268 = vsel %vm2886, %v3266, %v3264
      %v3269 = vadd.f32 %v3261, %v3268
      %v3270 = vadd.f32 %v3262, %v3267
      %3271 = vrot.lane.b32.xlu0 %v3206, 31
      %v3272 = vpop.permute.xlu0 %3271
      %3273 = vrot.lane.b32.xlu0 %v3208, 31
      %v3274 = vpop.permute.xlu0 %3273
      %vm3275 = vcmp.lt.s32.totalorder %v22, 31
      %v3276 = vsel %vm3275, %v3272, %v3274
      %v3277 = vsel %vm3275, %v3274, %v3272
      %3278 = vrot.lane.b32.xlu0 %v3206, 15
      %v3279 = vpop.permute.xlu0 %3278
      %3280 = vrot.lane.b32.xlu0 %v3208, 15
      %v3281 = vpop.permute.xlu0 %3280
      %v3282 = vsel %vm2854, %v3279, %v3281
      %v3283 = vsel %vm2854, %v3281, %v3279
      %v3284 = vsel %vm50, %v3277, %v3283
      %v3285 = vsel %vm51, %v3276, %v3282
      %v3286 = vadd.f32 %v3269, %v3284
      %v3287 = vadd.f32 %v3270, %v3285
      %3288 = vrot.lane.b32.xlu0 %v3212, 113
      %v3289 = vpop.permute.xlu0 %3288
      %3290 = vrot.lane.b32.xlu0 %v3214, 113
      %v3291 = vpop.permute.xlu0 %3290
      %v3292 = vsel %vm2870, %v3289, %v3291
      %v3293 = vsel %vm2870, %v3291, %v3289
      %3294 = vrot.lane.b32.xlu0 %v3212, 1
      %v3295 = vpop.permute.xlu0 %3294
      %3296 = vrot.lane.b32.xlu0 %v3214, 1
      %v3297 = vpop.permute.xlu0 %3296
      %v3298 = vsel %vm2877, %v3295, %v3297
      %v3299 = vsel %vm2877, %v3297, %v3295
      %v3300 = vsel %vm48, %v3292, %v3299
      %v3301 = vsel %vm49, %v3293, %v3298
      %v3302 = vadd.f32 %v3286, %v3300
      %v3303 = vadd.f32 %v3287, %v3301
      %v3304 = vadd.f32 %v3302, %v3218
      %v3305 = vadd.f32 %v3303, %v3220
      %3306 = vrot.lane.b32.xlu0 %v3224, 15
      %v3307 = vpop.permute.xlu0 %3306
      %3308 = vrot.lane.b32.xlu0 %v3226, 15
      %v3309 = vpop.permute.xlu0 %3308
      %v3310 = vsel %vm2854, %v3307, %v3309
      %v3311 = vsel %vm2854, %v3309, %v3307
      %3312 = vrot.lane.b32.xlu0 %v3224, 127
      %v3313 = vpop.permute.xlu0 %3312
      %3314 = vrot.lane.b32.xlu0 %v3226, 127
      %v3315 = vpop.permute.xlu0 %3314
      %v3316 = vsel %vm2861, %v3313, %v3315
      %v3317 = vsel %vm2861, %v3315, %v3313
      %v3318 = vsel %vm50, %v3311, %v3316
      %v3319 = vsel %vm51, %v3310, %v3317
      %v3320 = vadd.f32 %v3304, %v3318
      %v3321 = vadd.f32 %v3305, %v3319
      %3322 = vrot.lane.b32.xlu0 %v3230, 97
      %v3323 = vpop.permute.xlu0 %3322
      %3324 = vrot.lane.b32.xlu0 %v3232, 97
      %v3325 = vpop.permute.xlu0 %3324
      %vm3326 = vcmp.lt.s32.totalorder %v22, 97
      %v3327 = vsel %vm3326, %v3323, %v3325
      %v3328 = vsel %vm3326, %v3325, %v3323
      %3329 = vrot.lane.b32.xlu0 %v3230, 113
      %v3330 = vpop.permute.xlu0 %3329
      %3331 = vrot.lane.b32.xlu0 %v3232, 113
      %v3332 = vpop.permute.xlu0 %3331
      %v3333 = vsel %vm2870, %v3330, %v3332
      %v3334 = vsel %vm2870, %v3332, %v3330
      %v3335 = vsel %vm48, %v3327, %v3333
      %v3336 = vsel %vm49, %v3328, %v3334
      %v3337 = vadd.f32 %v3320, %v3335
      %v3338 = vadd.f32 %v3321, %v3336
      %3339 = vrot.lane.b32.xlu0 %v3236, 112
      %v3340 = vpop.permute.xlu0 %3339
      %3341 = vrot.lane.b32.xlu0 %v3238, 112
      %v3342 = vpop.permute.xlu0 %3341
      %v3343 = vsel %vm2905, %v3340, %v3342
      %v3344 = vsel %vm2905, %v3342, %v3340
      %v3345 = vadd.f32 %v3337, %v3343
      %v3346 = vadd.f32 %v3338, %v3344
      %3347 = vrot.lane.b32.xlu0 %v3242, 127
      %v3348 = vpop.permute.xlu0 %3347
      %3349 = vrot.lane.b32.xlu0 %v3244, 127
      %v3350 = vpop.permute.xlu0 %3349
      %v3351 = vsel %vm2861, %v3348, %v3350
      %v3352 = vsel %vm2861, %v3350, %v3348
      %3353 = vrot.lane.b32.xlu0 %v3242, 111
      %v3354 = vpop.permute.xlu0 %3353
      %3355 = vrot.lane.b32.xlu0 %v3244, 111
      %v3356 = vpop.permute.xlu0 %3355
      %vm3357 = vcmp.lt.s32.totalorder %v22, 111
      %v3358 = vsel %vm3357, %v3354, %v3356
      %v3359 = vsel %vm3357, %v3356, %v3354
      %v3360 = vsel %vm50, %v3351, %v3358
      %v3361 = vsel %vm51, %v3352, %v3359
      %v3362 = vadd.f32 %v3345, %v3360
      %v3363 = vadd.f32 %v3346, %v3361
      %v3364 = vadd.f32 %v3063, %v3362
      %v3365 = vadd.f32 %v3065, %v3363
      %v3366 = vadd.f32 %v2848, %v3364
      %v3367 = vadd.f32 %v2849, %v3365
      %3368 = vst [vmem:[#allocation2] sm:$0xff] %v3366
      %3369 = vst [vmem:[#allocation2 + $0x8] sm:$0xff] %v3367
    $region69: #{tpu_custom_call.1} parent=1 // pred_fallthru
      _
    %v3370 = vld [vmem:[#allocation2] sm:$0xff]
    %v3371 = vld [vmem:[#allocation2 + $0x8] sm:$0xff]
    %s3372 = scalar_lea.vmem [#allocation3], 80
    %3373 = vst [vmem:[%s3372] sm:$0xff] %v3370
    %3374 = vst [vmem:[%s3372 + $0x8] sm:$0xff] %v3371
    %s3375 = sadd.s32 %s124, 6
    %p3376 = scmp.eq.s32.totalorder %s3375, 0
    // Predicated region
    $region70: #{tpu_custom_call.1} parent=1 // pred_check
      %p3377 = pneg %p3376
    $region71: #{tpu_custom_call.1} parent=1 // pred_check_branch
      %3379 = sbr.rel (%p3377) target = $region73
    $region72: #{tpu_custom_call.1} parent=1 // pred_region
      %v3380 = vld [vmem:[%s4] sm:$0xff]
      %v3381 = vld [vmem:[%s4 + $0x8] sm:$0xff]
      %3382 = vst [vmem:[#allocation2] sm:$0xff] %v3380
      %3383 = vst [vmem:[#allocation2 + $0x8] sm:$0xff] %v3381
    $region73: #{tpu_custom_call.1} parent=1 // pred_fallthru
      _
    %p3384 = scmp.gt.s32.totalorder %s3375, 0
    %p3385 = scmp.lt.s32.totalorder %s3375, 8
    %p3386 = pnand %p3384, %p3385
    %p3387 = pneg %p3386
    // Predicated region
    $region74: #{tpu_custom_call.1} parent=1 // pred_check
      _
    $region75: #{tpu_custom_call.1} parent=1 // pred_check_branch
      %3389 = sbr.rel (%p3386) target = $region77
    $region76: #{tpu_custom_call.1} parent=1 // pred_region
      %v3390 = vld [vmem:[#allocation2] sm:$0xff]
      %v3391 = vld [vmem:[#allocation2 + $0x8] sm:$0xff]
      %3392 = vrot.lane.b32.xlu0 %v3390, 15
      %v3393 = vpop.permute.xlu0 %3392
      %3394 = vrot.lane.b32.xlu0 %v3391, 15
      %v3395 = vpop.permute.xlu0 %3394
      %vm3396 = vcmp.lt.s32.totalorder %v22, 15
      %v3397 = vsel %vm3396, %v3393, %v3395
      %v3398 = vsel %vm3396, %v3395, %v3393
      %3399 = vrot.lane.b32.xlu0 %v3390, 127
      %v3400 = vpop.permute.xlu0 %3399
      %3401 = vrot.lane.b32.xlu0 %v3391, 127
      %v3402 = vpop.permute.xlu0 %3401
      %vm3403 = vcmp.lt.s32.totalorder %v22, 127
      %v3404 = vsel %vm3403, %v3400, %v3402
      %v3405 = vsel %vm3403, %v3402, %v3400
      %v3406 = vsel %vm50, %v3398, %v3404
      %v3407 = vsel %vm51, %v3397, %v3405
      %3408 = vrot.lane.b32.xlu0 %v3390, 113
      %v3409 = vpop.permute.xlu0 %3408
      %3410 = vrot.lane.b32.xlu0 %v3391, 113
      %v3411 = vpop.permute.xlu0 %3410
      %vm3412 = vcmp.lt.s32.totalorder %v22, 113
      %v3413 = vsel %vm3412, %v3409, %v3411
      %v3414 = vsel %vm3412, %v3411, %v3409
      %3415 = vrot.lane.b32.xlu0 %v3390, 1
      %v3416 = vpop.permute.xlu0 %3415
      %3417 = vrot.lane.b32.xlu0 %v3391, 1
      %v3418 = vpop.permute.xlu0 %3417
      %vm3419 = vcmp.lt.s32.totalorder %v22, 1
      %v3420 = vsel %vm3419, %v3416, %v3418
      %v3421 = vsel %vm3419, %v3418, %v3416
      %v3422 = vsel %vm48, %v3413, %v3421
      %v3423 = vsel %vm49, %v3414, %v3420
      %3424 = vrot.lane.b32.xlu0 %v3422, 16
      %v3425 = vpop.permute.xlu0 %3424
      %3426 = vrot.lane.b32.xlu0 %v3423, 16
      %v3427 = vpop.permute.xlu0 %3426
      %vm3428 = vcmp.lt.s32.totalorder %v22, 16
      %v3429 = vsel %vm3428, %v3425, %v3427
      %v3430 = vsel %vm3428, %v3427, %v3425
      %3431 = vrot.lane.b32.xlu0 %v3390, 16
      %v3432 = vpop.permute.xlu0 %3431
      %3433 = vrot.lane.b32.xlu0 %v3391, 16
      %v3434 = vpop.permute.xlu0 %3433
      %v3435 = vsel %vm3428, %v3432, %v3434
      %v3436 = vsel %vm3428, %v3434, %v3432
      %3437 = vrot.lane.b32.xlu0 %v3406, 16
      %v3438 = vpop.permute.xlu0 %3437
      %3439 = vrot.lane.b32.xlu0 %v3407, 16
      %v3440 = vpop.permute.xlu0 %3439
      %v3441 = vsel %vm3428, %v3438, %v3440
      %v3442 = vsel %vm3428, %v3440, %v3438
      %3443 = vrot.lane.b32.xlu0 %v3422, 112
      %v3444 = vpop.permute.xlu0 %3443
      %3445 = vrot.lane.b32.xlu0 %v3423, 112
      %v3446 = vpop.permute.xlu0 %3445
      %vm3447 = vcmp.lt.s32.totalorder %v22, 112
      %v3448 = vsel %vm3447, %v3444, %v3446
      %v3449 = vsel %vm3447, %v3446, %v3444
      %3450 = vrot.lane.b32.xlu0 %v3390, 112
      %v3451 = vpop.permute.xlu0 %3450
      %3452 = vrot.lane.b32.xlu0 %v3391, 112
      %v3453 = vpop.permute.xlu0 %3452
      %v3454 = vsel %vm3447, %v3451, %v3453
      %v3455 = vsel %vm3447, %v3453, %v3451
      %3456 = vrot.lane.b32.xlu0 %v3406, 112
      %v3457 = vpop.permute.xlu0 %3456
      %3458 = vrot.lane.b32.xlu0 %v3407, 112
      %v3459 = vpop.permute.xlu0 %3458
      %v3460 = vsel %vm3447, %v3457, %v3459
      %v3461 = vsel %vm3447, %v3459, %v3457
      %vm3462 = vcmask 588800
      %v3464 = vsel %vm3462, %v52, 0
      %v3467 = vsel %vm3462, %v53, 0
      %v3470 = vsel %vm3462, %v54, 0
      %v3473 = vsel %vm3462, %v55, 0
      %v3476 = vsel %vm3462, %v56, 0
      %v3479 = vsel %vm3462, %v57, 0
      %v3482 = vsel %vm3462, %v58, 0
      %v3485 = vsel %vm3462, %v59, 0
      %v3488 = vsel %vm3462, %v60, 0
      %3490 = vmatprep.subr.mxu0 0.0
      %3491 = vmatpush1.msra.mxu0 0.0
      %3492 = vmatprep.subr.mxu0 0.0
      %3493 = vmatpush1.msra.mxu0 0.0
      %3494 = vmatprep.subr.mxu0 0.0
      %3495 = vmatpush1.msra.mxu0 0.0
      %3496 = vmatprep.subr.mxu0 0.0
      %3497 = vmatpush1.msra.mxu0 0.0
      %3498 = vmatprep.subr.mxu0 0.0
      %3499 = vmatpush1.msra.mxu0 0.0
      %3500 = vmatprep.subr.mxu0 0.0
      %3501 = vmatpush1.msra.mxu0 0.0
      %3502 = vmatprep.subr.mxu0 0.0
      %3503 = vmatpush1.msra.mxu0 0.0
      %3504 = vmatprep.subr.mxu0 %v3461
      %3505 = vmatpush1.msra.mxu0 %v3460
      %3506 = vmatprep.subr.mxu0 %v3455
      %3507 = vmatpush1.msra.mxu0 %v3454
      %3508 = vmatprep.subr.mxu0 %v3449
      %3509 = vmatpush1.msra.mxu0 %v3448
      %3510 = vmatprep.subr.mxu0 %v3407
      %3511 = vmatpush1.msra.mxu0 %v3406
      %3512 = vmatprep.subr.mxu0 %v3391
      %3513 = vmatpush1.msra.mxu0 %v3390
      %3514 = vmatprep.subr.mxu0 %v3423
      %3515 = vmatpush1.msra.mxu0 %v3422
      %3516 = vmatprep.subr.mxu0 %v3441
      %3517 = vmatpush1.msra.mxu0 %v3442
      %3518 = vmatprep.subr.mxu0 %v3435
      %3519 = vmatpush1.msra.mxu0 %v3436
      %3520 = vmatprep.subr.mxu0 %v3429
      %3521 = vmatpush1.msra.mxu0 %v3430
      %3522 = vmatprep.subr.mxu0 0.0
      %3523 = vmatpush2.msra.mxu0 0.0
      %3524 = vmatprep.subr.mxu0 0.0
      %3525 = vmatpush2.msra.mxu0 0.0
      %3526 = vmatprep.subr.mxu0 0.0
      %3527 = vmatpush2.msra.mxu0 0.0
      %3528 = vmatprep.subr.mxu0 0.0
      %3529 = vmatpush2.msra.mxu0 0.0
      %3530 = vmatprep.subr.mxu0 0.0
      %3531 = vmatpush2.msra.mxu0 0.0
      %3532 = vmatprep.subr.mxu0 0.0
      %3533 = vmatpush2.msra.mxu0 0.0
      %3534 = vmatprep.subr.mxu0 0.0
      %3535 = vmatpush2.msra.mxu0 0.0
      %3536 = vmatprep.subr.mxu0 0.0
      %3537 = vmatpush2.msra.mxu0 0.0
      %3538 = vmatprep.subr.mxu0 0.0
      %3539 = vmatpush2.msra.mxu0 0.0
      %3540 = vmatprep.subr.mxu0 0.0
      %3541 = vmatpush2.msra.mxu0 0.0
      %3542 = vmatprep.subr.mxu0 0.0
      %3543 = vmatpush2.msra.mxu0 0.0
      %3544 = vmatprep.subr.mxu0 0.0
      %3545 = vmatpush2.msra.mxu0 0.0
      %3546 = vmatprep.subr.mxu0 0.0
      %3547 = vmatpush2.msra.mxu0 0.0
      %3548 = vmatprep.subr.mxu0 0.0
      %3549 = vmatpush2.msra.mxu0 0.0
      %3550 = vmatprep.subr.mxu0 0.0
      %3551 = vmatpush2.msra.mxu0 0.0
      %3552 = vmatprep.subr.mxu0 0.0
      %3553 = vmatpush2.msra.mxu0 0.0
      %3554 = vmatprep.mubr.f32.mxu0 0.0
      %3555 = vmatmul.mubr.f32.gmra.mxu0 %v3464
      %v3556 = vpop.f32.mrf.mxu0
      %v3557 = vadd.f32 0.0, %v3556
      %v3558 = vpop.f32.mrf.mxu0
      %v3559 = vadd.f32 0.0, %v3558
      %3560 = vmatprep.mubr.f32.mxu0 0.0
      %3561 = vmatmul.mubr.f32.gmra.mxu0 %v3467
      %v3562 = vpop.f32.mrf.mxu0
      %v3563 = vadd.f32 0.0, %v3562
      %v3564 = vpop.f32.mrf.mxu0
      %v3565 = vadd.f32 0.0, %v3564
      %3566 = vmatprep.mubr.f32.mxu0 0.0
      %3567 = vmatmul.mubr.f32.gmra.mxu0 %v3470
      %v3568 = vpop.f32.mrf.mxu0
      %v3569 = vadd.f32 0.0, %v3568
      %v3570 = vpop.f32.mrf.mxu0
      %v3571 = vadd.f32 0.0, %v3570
      %3572 = vmatprep.mubr.f32.mxu0 0.0
      %3573 = vmatmul.mubr.f32.gmra.mxu0 %v3473
      %v3574 = vpop.f32.mrf.mxu0
      %v3575 = vadd.f32 0.0, %v3574
      %v3576 = vpop.f32.mrf.mxu0
      %v3577 = vadd.f32 0.0, %v3576
      %3578 = vmatprep.mubr.f32.mxu0 0.0
      %3579 = vmatmul.mubr.f32.gmra.mxu0 %v3476
      %v3580 = vpop.f32.mrf.mxu0
      %v3581 = vadd.f32 0.0, %v3580
      %v3582 = vpop.f32.mrf.mxu0
      %v3583 = vadd.f32 0.0, %v3582
      %3584 = vmatprep.mubr.f32.mxu0 0.0
      %3585 = vmatmul.mubr.f32.gmra.mxu0 %v3479
      %v3586 = vpop.f32.mrf.mxu0
      %v3587 = vadd.f32 0.0, %v3586
      %v3588 = vpop.f32.mrf.mxu0
      %v3589 = vadd.f32 0.0, %v3588
      %3590 = vmatprep.mubr.f32.mxu0 0.0
      %3591 = vmatmul.mubr.f32.gmra.mxu0 %v3482
      %v3592 = vpop.f32.mrf.mxu0
      %v3593 = vadd.f32 0.0, %v3592
      %v3594 = vpop.f32.mrf.mxu0
      %v3595 = vadd.f32 0.0, %v3594
      %3596 = vmatprep.mubr.f32.mxu0 0.0
      %3597 = vmatmul.mubr.f32.gmra.mxu0 %v3485
      %v3598 = vpop.f32.mrf.mxu0
      %v3599 = vadd.f32 0.0, %v3598
      %v3600 = vpop.f32.mrf.mxu0
      %v3601 = vadd.f32 0.0, %v3600
      %3602 = vmatprep.mubr.f32.mxu0 0.0
      %3603 = vmatmul.mubr.f32.gmra.mxu0 %v3488
      %v3604 = vpop.f32.mrf.mxu0
      %v3605 = vadd.f32 0.0, %v3604
      %v3606 = vpop.f32.mrf.mxu0
      %v3607 = vadd.f32 0.0, %v3606
      %3608 = vdwg.mxu0
      %v3609 = vadd.f32 %v3557, %v81
      %v3610 = vadd.f32 %v3559, %v81
      %v3611 = vadd.f32 %v3563, %v86
      %v3612 = vadd.f32 %v3565, %v86
      %v3613 = vadd.f32 %v3569, %v91
      %v3614 = vadd.f32 %v3571, %v91
      %v3615 = vadd.f32 %v3575, %v96
      %v3616 = vadd.f32 %v3577, %v96
      %v3617 = vadd.f32 %v3581, %v101
      %v3618 = vadd.f32 %v3583, %v101
      %v3619 = vadd.f32 %v3587, %v106
      %v3620 = vadd.f32 %v3589, %v106
      %v3621 = vadd.f32 %v3593, %v111
      %v3622 = vadd.f32 %v3595, %v111
      %v3623 = vadd.f32 %v3599, %v116
      %v3624 = vadd.f32 %v3601, %v116
      %v3625 = vtanh.pop %v3609
      %v3626 = vtanh.pop %v3610
      %v3627 = vtanh.pop %v3611
      %v3628 = vtanh.pop %v3612
      %v3629 = vtanh.pop %v3613
      %v3630 = vtanh.pop %v3614
      %v3631 = vtanh.pop %v3615
      %v3632 = vtanh.pop %v3616
      %v3633 = vtanh.pop %v3617
      %v3634 = vtanh.pop %v3618
      %v3635 = vtanh.pop %v3619
      %v3636 = vtanh.pop %v3620
      %v3637 = vtanh.pop %v3621
      %v3638 = vtanh.pop %v3622
      %v3639 = vtanh.pop %v3623
      %v3640 = vtanh.pop %v3624
      %vm3641 = vcmask 523264
      %v3643 = vsel %vm3641, %v61, 0
      %v3646 = vsel %vm3641, %v62, 0
      %v3649 = vsel %vm3641, %v63, 0
      %v3652 = vsel %vm3641, %v64, 0
      %v3655 = vsel %vm3641, %v65, 0
      %v3658 = vsel %vm3641, %v66, 0
      %v3661 = vsel %vm3641, %v67, 0
      %v3664 = vsel %vm3641, %v68, 0
      %v3667 = vsel %vm3641, %v69, 0
      %3669 = vmatprep.subr.mxu0 0.0
      %3670 = vmatpush1.msra.mxu0 0.0
      %3671 = vmatprep.subr.mxu0 0.0
      %3672 = vmatpush1.msra.mxu0 0.0
      %3673 = vmatprep.subr.mxu0 0.0
      %3674 = vmatpush1.msra.mxu0 0.0
      %3675 = vmatprep.subr.mxu0 0.0
      %3676 = vmatpush1.msra.mxu0 0.0
      %3677 = vmatprep.subr.mxu0 0.0
      %3678 = vmatpush1.msra.mxu0 0.0
      %3679 = vmatprep.subr.mxu0 0.0
      %3680 = vmatpush1.msra.mxu0 0.0
      %3681 = vmatprep.subr.mxu0 0.0
      %3682 = vmatpush1.msra.mxu0 0.0
      %3683 = vmatprep.subr.mxu0 0.0
      %3684 = vmatpush1.msra.mxu0 0.0
      %3685 = vmatprep.subr.mxu0 %v3640
      %3686 = vmatpush1.msra.mxu0 %v3639
      %3687 = vmatprep.subr.mxu0 %v3638
      %3688 = vmatpush1.msra.mxu0 %v3637
      %3689 = vmatprep.subr.mxu0 %v3636
      %3690 = vmatpush1.msra.mxu0 %v3635
      %3691 = vmatprep.subr.mxu0 %v3634
      %3692 = vmatpush1.msra.mxu0 %v3633
      %3693 = vmatprep.subr.mxu0 %v3632
      %3694 = vmatpush1.msra.mxu0 %v3631
      %3695 = vmatprep.subr.mxu0 %v3630
      %3696 = vmatpush1.msra.mxu0 %v3629
      %3697 = vmatprep.subr.mxu0 %v3628
      %3698 = vmatpush1.msra.mxu0 %v3627
      %3699 = vmatprep.subr.mxu0 %v3626
      %3700 = vmatpush1.msra.mxu0 %v3625
      %3701 = vmatprep.subr.mxu0 0.0
      %3702 = vmatpush2.msra.mxu0 0.0
      %3703 = vmatprep.subr.mxu0 0.0
      %3704 = vmatpush2.msra.mxu0 0.0
      %3705 = vmatprep.subr.mxu0 0.0
      %3706 = vmatpush2.msra.mxu0 0.0
      %3707 = vmatprep.subr.mxu0 0.0
      %3708 = vmatpush2.msra.mxu0 0.0
      %3709 = vmatprep.subr.mxu0 0.0
      %3710 = vmatpush2.msra.mxu0 0.0
      %3711 = vmatprep.subr.mxu0 0.0
      %3712 = vmatpush2.msra.mxu0 0.0
      %3713 = vmatprep.subr.mxu0 0.0
      %3714 = vmatpush2.msra.mxu0 0.0
      %3715 = vmatprep.subr.mxu0 0.0
      %3716 = vmatpush2.msra.mxu0 0.0
      %3717 = vmatprep.subr.mxu0 0.0
      %3718 = vmatpush2.msra.mxu0 0.0
      %3719 = vmatprep.subr.mxu0 0.0
      %3720 = vmatpush2.msra.mxu0 0.0
      %3721 = vmatprep.subr.mxu0 0.0
      %3722 = vmatpush2.msra.mxu0 0.0
      %3723 = vmatprep.subr.mxu0 0.0
      %3724 = vmatpush2.msra.mxu0 0.0
      %3725 = vmatprep.subr.mxu0 0.0
      %3726 = vmatpush2.msra.mxu0 0.0
      %3727 = vmatprep.subr.mxu0 0.0
      %3728 = vmatpush2.msra.mxu0 0.0
      %3729 = vmatprep.subr.mxu0 0.0
      %3730 = vmatpush2.msra.mxu0 0.0
      %3731 = vmatprep.subr.mxu0 0.0
      %3732 = vmatpush2.msra.mxu0 0.0
      %3733 = vmatprep.mubr.f32.mxu0 0.0
      %3734 = vmatmul.mubr.f32.gmra.mxu0 %v3643
      %v3735 = vpop.f32.mrf.mxu0
      %v3736 = vadd.f32 0.0, %v3735
      %v3737 = vpop.f32.mrf.mxu0
      %v3738 = vadd.f32 0.0, %v3737
      %3739 = vmatprep.mubr.f32.mxu0 0.0
      %3740 = vmatmul.mubr.f32.gmra.mxu0 %v3646
      %v3741 = vpop.f32.mrf.mxu0
      %v3742 = vadd.f32 0.0, %v3741
      %v3743 = vpop.f32.mrf.mxu0
      %v3744 = vadd.f32 0.0, %v3743
      %3745 = vmatprep.mubr.f32.mxu0 0.0
      %3746 = vmatmul.mubr.f32.gmra.mxu0 %v3649
      %v3747 = vpop.f32.mrf.mxu0
      %v3748 = vadd.f32 0.0, %v3747
      %v3749 = vpop.f32.mrf.mxu0
      %v3750 = vadd.f32 0.0, %v3749
      %3751 = vmatprep.mubr.f32.mxu0 0.0
      %3752 = vmatmul.mubr.f32.gmra.mxu0 %v3652
      %v3753 = vpop.f32.mrf.mxu0
      %v3754 = vadd.f32 0.0, %v3753
      %v3755 = vpop.f32.mrf.mxu0
      %v3756 = vadd.f32 0.0, %v3755
      %3757 = vmatprep.mubr.f32.mxu0 0.0
      %3758 = vmatmul.mubr.f32.gmra.mxu0 %v3655
      %v3759 = vpop.f32.mrf.mxu0
      %v3760 = vadd.f32 0.0, %v3759
      %v3761 = vpop.f32.mrf.mxu0
      %v3762 = vadd.f32 0.0, %v3761
      %3763 = vmatprep.mubr.f32.mxu0 0.0
      %3764 = vmatmul.mubr.f32.gmra.mxu0 %v3658
      %v3765 = vpop.f32.mrf.mxu0
      %v3766 = vadd.f32 0.0, %v3765
      %v3767 = vpop.f32.mrf.mxu0
      %v3768 = vadd.f32 0.0, %v3767
      %3769 = vmatprep.mubr.f32.mxu0 0.0
      %3770 = vmatmul.mubr.f32.gmra.mxu0 %v3661
      %v3771 = vpop.f32.mrf.mxu0
      %v3772 = vadd.f32 0.0, %v3771
      %v3773 = vpop.f32.mrf.mxu0
      %v3774 = vadd.f32 0.0, %v3773
      %3775 = vmatprep.mubr.f32.mxu0 0.0
      %3776 = vmatmul.mubr.f32.gmra.mxu0 %v3664
      %v3777 = vpop.f32.mrf.mxu0
      %v3778 = vadd.f32 0.0, %v3777
      %v3779 = vpop.f32.mrf.mxu0
      %v3780 = vadd.f32 0.0, %v3779
      %3781 = vmatprep.mubr.f32.mxu0 0.0
      %3782 = vmatmul.mubr.f32.gmra.mxu0 %v3667
      %v3783 = vpop.f32.mrf.mxu0
      %v3784 = vadd.f32 0.0, %v3783
      %v3785 = vpop.f32.mrf.mxu0
      %v3786 = vadd.f32 0.0, %v3785
      %3787 = vdwg.mxu0
      %3788 = vrot.lane.b32.xlu0 %v3736, 1
      %v3789 = vpop.permute.xlu0 %3788
      %3790 = vrot.lane.b32.xlu0 %v3738, 1
      %v3791 = vpop.permute.xlu0 %3790
      %v3792 = vsel %vm3419, %v3789, %v3791
      %v3793 = vsel %vm3419, %v3791, %v3789
      %3794 = vrot.lane.b32.xlu0 %v3736, 17
      %v3795 = vpop.permute.xlu0 %3794
      %3796 = vrot.lane.b32.xlu0 %v3738, 17
      %v3797 = vpop.permute.xlu0 %3796
      %vm3798 = vcmp.lt.s32.totalorder %v22, 17
      %v3799 = vsel %vm3798, %v3795, %v3797
      %v3800 = vsel %vm3798, %v3797, %v3795
      %v3801 = vsel %vm48, %v3793, %v3800
      %v3802 = vsel %vm49, %v3792, %v3799
      %v3803 = vadd.f32 %v122, %v3801
      %v3804 = vadd.f32 %v122, %v3802
      %3805 = vrot.lane.b32.xlu0 %v3742, 16
      %v3806 = vpop.permute.xlu0 %3805
      %3807 = vrot.lane.b32.xlu0 %v3744, 16
      %v3808 = vpop.permute.xlu0 %3807
      %v3809 = vsel %vm3428, %v3806, %v3808
      %v3810 = vsel %vm3428, %v3808, %v3806
      %v3811 = vadd.f32 %v3803, %v3810
      %v3812 = vadd.f32 %v3804, %v3809
      %3813 = vrot.lane.b32.xlu0 %v3748, 31
      %v3814 = vpop.permute.xlu0 %3813
      %3815 = vrot.lane.b32.xlu0 %v3750, 31
      %v3816 = vpop.permute.xlu0 %3815
      %vm3817 = vcmp.lt.s32.totalorder %v22, 31
      %v3818 = vsel %vm3817, %v3814, %v3816
      %v3819 = vsel %vm3817, %v3816, %v3814
      %3820 = vrot.lane.b32.xlu0 %v3748, 15
      %v3821 = vpop.permute.xlu0 %3820
      %3822 = vrot.lane.b32.xlu0 %v3750, 15
      %v3823 = vpop.permute.xlu0 %3822
      %v3824 = vsel %vm3396, %v3821, %v3823
      %v3825 = vsel %vm3396, %v3823, %v3821
      %v3826 = vsel %vm50, %v3819, %v3825
      %v3827 = vsel %vm51, %v3818, %v3824
      %v3828 = vadd.f32 %v3811, %v3826
      %v3829 = vadd.f32 %v3812, %v3827
      %3830 = vrot.lane.b32.xlu0 %v3754, 113
      %v3831 = vpop.permute.xlu0 %3830
      %3832 = vrot.lane.b32.xlu0 %v3756, 113
      %v3833 = vpop.permute.xlu0 %3832
      %v3834 = vsel %vm3412, %v3831, %v3833
      %v3835 = vsel %vm3412, %v3833, %v3831
      %3836 = vrot.lane.b32.xlu0 %v3754, 1
      %v3837 = vpop.permute.xlu0 %3836
      %3838 = vrot.lane.b32.xlu0 %v3756, 1
      %v3839 = vpop.permute.xlu0 %3838
      %v3840 = vsel %vm3419, %v3837, %v3839
      %v3841 = vsel %vm3419, %v3839, %v3837
      %v3842 = vsel %vm48, %v3834, %v3841
      %v3843 = vsel %vm49, %v3835, %v3840
      %v3844 = vadd.f32 %v3828, %v3842
      %v3845 = vadd.f32 %v3829, %v3843
      %v3846 = vadd.f32 %v3844, %v3760
      %v3847 = vadd.f32 %v3845, %v3762
      %3848 = vrot.lane.b32.xlu0 %v3766, 15
      %v3849 = vpop.permute.xlu0 %3848
      %3850 = vrot.lane.b32.xlu0 %v3768, 15
      %v3851 = vpop.permute.xlu0 %3850
      %v3852 = vsel %vm3396, %v3849, %v3851
      %v3853 = vsel %vm3396, %v3851, %v3849
      %3854 = vrot.lane.b32.xlu0 %v3766, 127
      %v3855 = vpop.permute.xlu0 %3854
      %3856 = vrot.lane.b32.xlu0 %v3768, 127
      %v3857 = vpop.permute.xlu0 %3856
      %v3858 = vsel %vm3403, %v3855, %v3857
      %v3859 = vsel %vm3403, %v3857, %v3855
      %v3860 = vsel %vm50, %v3853, %v3858
      %v3861 = vsel %vm51, %v3852, %v3859
      %v3862 = vadd.f32 %v3846, %v3860
      %v3863 = vadd.f32 %v3847, %v3861
      %3864 = vrot.lane.b32.xlu0 %v3772, 97
      %v3865 = vpop.permute.xlu0 %3864
      %3866 = vrot.lane.b32.xlu0 %v3774, 97
      %v3867 = vpop.permute.xlu0 %3866
      %vm3868 = vcmp.lt.s32.totalorder %v22, 97
      %v3869 = vsel %vm3868, %v3865, %v3867
      %v3870 = vsel %vm3868, %v3867, %v3865
      %3871 = vrot.lane.b32.xlu0 %v3772, 113
      %v3872 = vpop.permute.xlu0 %3871
      %3873 = vrot.lane.b32.xlu0 %v3774, 113
      %v3874 = vpop.permute.xlu0 %3873
      %v3875 = vsel %vm3412, %v3872, %v3874
      %v3876 = vsel %vm3412, %v3874, %v3872
      %v3877 = vsel %vm48, %v3869, %v3875
      %v3878 = vsel %vm49, %v3870, %v3876
      %v3879 = vadd.f32 %v3862, %v3877
      %v3880 = vadd.f32 %v3863, %v3878
      %3881 = vrot.lane.b32.xlu0 %v3778, 112
      %v3882 = vpop.permute.xlu0 %3881
      %3883 = vrot.lane.b32.xlu0 %v3780, 112
      %v3884 = vpop.permute.xlu0 %3883
      %v3885 = vsel %vm3447, %v3882, %v3884
      %v3886 = vsel %vm3447, %v3884, %v3882
      %v3887 = vadd.f32 %v3879, %v3885
      %v3888 = vadd.f32 %v3880, %v3886
      %3889 = vrot.lane.b32.xlu0 %v3784, 127
      %v3890 = vpop.permute.xlu0 %3889
      %3891 = vrot.lane.b32.xlu0 %v3786, 127
      %v3892 = vpop.permute.xlu0 %3891
      %v3893 = vsel %vm3403, %v3890, %v3892
      %v3894 = vsel %vm3403, %v3892, %v3890
      %3895 = vrot.lane.b32.xlu0 %v3784, 111
      %v3896 = vpop.permute.xlu0 %3895
      %3897 = vrot.lane.b32.xlu0 %v3786, 111
      %v3898 = vpop.permute.xlu0 %3897
      %vm3899 = vcmp.lt.s32.totalorder %v22, 111
      %v3900 = vsel %vm3899, %v3896, %v3898
      %v3901 = vsel %vm3899, %v3898, %v3896
      %v3902 = vsel %vm50, %v3893, %v3900
      %v3903 = vsel %vm51, %v3894, %v3901
      %v3904 = vadd.f32 %v3887, %v3902
      %v3905 = vadd.f32 %v3888, %v3903
      %v3906 = vadd.f32 %v3605, %v3904
      %v3907 = vadd.f32 %v3607, %v3905
      %v3908 = vadd.f32 %v3390, %v3906
      %v3909 = vadd.f32 %v3391, %v3907
      %3910 = vst [vmem:[#allocation2] sm:$0xff] %v3908
      %3911 = vst [vmem:[#allocation2 + $0x8] sm:$0xff] %v3909
    $region77: #{tpu_custom_call.1} parent=1 // pred_fallthru
      _
    %v3912 = vld [vmem:[#allocation2] sm:$0xff]
    %v3913 = vld [vmem:[#allocation2 + $0x8] sm:$0xff]
    %s3914 = scalar_lea.vmem [#allocation3], 96
    %3915 = vst [vmem:[%s3914] sm:$0xff] %v3912
    %3916 = vst [vmem:[%s3914 + $0x8] sm:$0xff] %v3913
    %s3917 = sadd.s32 %s124, 7
    %p3918 = scmp.eq.s32.totalorder %s3917, 0
    // Predicated region
    $region78: #{tpu_custom_call.1} parent=1 // pred_check
      %p3919 = pneg %p3918
    $region79: #{tpu_custom_call.1} parent=1 // pred_check_branch
      %3921 = sbr.rel (%p3919) target = $region81
    $region80: #{tpu_custom_call.1} parent=1 // pred_region
      %v3922 = vld [vmem:[%s4] sm:$0xff]
      %v3923 = vld [vmem:[%s4 + $0x8] sm:$0xff]
      %3924 = vst [vmem:[#allocation2] sm:$0xff] %v3922
      %3925 = vst [vmem:[#allocation2 + $0x8] sm:$0xff] %v3923
    $region81: #{tpu_custom_call.1} parent=1 // pred_fallthru
      _
    %p3926 = scmp.gt.s32.totalorder %s3917, 0
    %p3927 = scmp.lt.s32.totalorder %s3917, 8
    %p3928 = pnand %p3926, %p3927
    %p3929 = pneg %p3928
    // Predicated region
    $region82: #{tpu_custom_call.1} parent=1 // pred_check
      _
    $region83: #{tpu_custom_call.1} parent=1 // pred_check_branch
      %3931 = sbr.rel (%p3928) target = $region85
    $region84: #{tpu_custom_call.1} parent=1 // pred_region
      %v3932 = vld [vmem:[#allocation2] sm:$0xff]
      %v3933 = vld [vmem:[#allocation2 + $0x8] sm:$0xff]
      %3934 = vrot.lane.b32.xlu0 %v3932, 15
      %v3935 = vpop.permute.xlu0 %3934
      %3936 = vrot.lane.b32.xlu0 %v3933, 15
      %v3937 = vpop.permute.xlu0 %3936
      %vm3938 = vcmp.lt.s32.totalorder %v22, 15
      %v3939 = vsel %vm3938, %v3935, %v3937
      %v3940 = vsel %vm3938, %v3937, %v3935
      %3941 = vrot.lane.b32.xlu0 %v3932, 127
      %v3942 = vpop.permute.xlu0 %3941
      %3943 = vrot.lane.b32.xlu0 %v3933, 127
      %v3944 = vpop.permute.xlu0 %3943
      %vm3945 = vcmp.lt.s32.totalorder %v22, 127
      %v3946 = vsel %vm3945, %v3942, %v3944
      %v3947 = vsel %vm3945, %v3944, %v3942
      %v3948 = vsel %vm50, %v3940, %v3946
      %v3949 = vsel %vm51, %v3939, %v3947
      %3950 = vrot.lane.b32.xlu0 %v3932, 113
      %v3951 = vpop.permute.xlu0 %3950
      %3952 = vrot.lane.b32.xlu0 %v3933, 113
      %v3953 = vpop.permute.xlu0 %3952
      %vm3954 = vcmp.lt.s32.totalorder %v22, 113
      %v3955 = vsel %vm3954, %v3951, %v3953
      %v3956 = vsel %vm3954, %v3953, %v3951
      %3957 = vrot.lane.b32.xlu0 %v3932, 1
      %v3958 = vpop.permute.xlu0 %3957
      %3959 = vrot.lane.b32.xlu0 %v3933, 1
      %v3960 = vpop.permute.xlu0 %3959
      %vm3961 = vcmp.lt.s32.totalorder %v22, 1
      %v3962 = vsel %vm3961, %v3958, %v3960
      %v3963 = vsel %vm3961, %v3960, %v3958
      %v3964 = vsel %vm48, %v3955, %v3963
      %v3965 = vsel %vm49, %v3956, %v3962
      %3966 = vrot.lane.b32.xlu0 %v3964, 16
      %v3967 = vpop.permute.xlu0 %3966
      %3968 = vrot.lane.b32.xlu0 %v3965, 16
      %v3969 = vpop.permute.xlu0 %3968
      %vm3970 = vcmp.lt.s32.totalorder %v22, 16
      %v3971 = vsel %vm3970, %v3967, %v3969
      %v3972 = vsel %vm3970, %v3969, %v3967
      %3973 = vrot.lane.b32.xlu0 %v3932, 16
      %v3974 = vpop.permute.xlu0 %3973
      %3975 = vrot.lane.b32.xlu0 %v3933, 16
      %v3976 = vpop.permute.xlu0 %3975
      %v3977 = vsel %vm3970, %v3974, %v3976
      %v3978 = vsel %vm3970, %v3976, %v3974
      %3979 = vrot.lane.b32.xlu0 %v3948, 16
      %v3980 = vpop.permute.xlu0 %3979
      %3981 = vrot.lane.b32.xlu0 %v3949, 16
      %v3982 = vpop.permute.xlu0 %3981
      %v3983 = vsel %vm3970, %v3980, %v3982
      %v3984 = vsel %vm3970, %v3982, %v3980
      %3985 = vrot.lane.b32.xlu0 %v3964, 112
      %v3986 = vpop.permute.xlu0 %3985
      %3987 = vrot.lane.b32.xlu0 %v3965, 112
      %v3988 = vpop.permute.xlu0 %3987
      %vm3989 = vcmp.lt.s32.totalorder %v22, 112
      %v3990 = vsel %vm3989, %v3986, %v3988
      %v3991 = vsel %vm3989, %v3988, %v3986
      %3992 = vrot.lane.b32.xlu0 %v3932, 112
      %v3993 = vpop.permute.xlu0 %3992
      %3994 = vrot.lane.b32.xlu0 %v3933, 112
      %v3995 = vpop.permute.xlu0 %3994
      %v3996 = vsel %vm3989, %v3993, %v3995
      %v3997 = vsel %vm3989, %v3995, %v3993
      %3998 = vrot.lane.b32.xlu0 %v3948, 112
      %v3999 = vpop.permute.xlu0 %3998
      %4000 = vrot.lane.b32.xlu0 %v3949, 112
      %v4001 = vpop.permute.xlu0 %4000
      %v4002 = vsel %vm3989, %v3999, %v4001
      %v4003 = vsel %vm3989, %v4001, %v3999
      %vm4004 = vcmask 588800
      %v4006 = vsel %vm4004, %v52, 0
      %v4009 = vsel %vm4004, %v53, 0
      %v4012 = vsel %vm4004, %v54, 0
      %v4015 = vsel %vm4004, %v55, 0
      %v4018 = vsel %vm4004, %v56, 0
      %v4021 = vsel %vm4004, %v57, 0
      %v4024 = vsel %vm4004, %v58, 0
      %v4027 = vsel %vm4004, %v59, 0
      %v4030 = vsel %vm4004, %v60, 0
      %4032 = vmatprep.subr.mxu0 0.0
      %4033 = vmatpush1.msra.mxu0 0.0
      %4034 = vmatprep.subr.mxu0 0.0
      %4035 = vmatpush1.msra.mxu0 0.0
      %4036 = vmatprep.subr.mxu0 0.0
      %4037 = vmatpush1.msra.mxu0 0.0
      %4038 = vmatprep.subr.mxu0 0.0
      %4039 = vmatpush1.msra.mxu0 0.0
      %4040 = vmatprep.subr.mxu0 0.0
      %4041 = vmatpush1.msra.mxu0 0.0
      %4042 = vmatprep.subr.mxu0 0.0
      %4043 = vmatpush1.msra.mxu0 0.0
      %4044 = vmatprep.subr.mxu0 0.0
      %4045 = vmatpush1.msra.mxu0 0.0
      %4046 = vmatprep.subr.mxu0 %v4003
      %4047 = vmatpush1.msra.mxu0 %v4002
      %4048 = vmatprep.subr.mxu0 %v3997
      %4049 = vmatpush1.msra.mxu0 %v3996
      %4050 = vmatprep.subr.mxu0 %v3991
      %4051 = vmatpush1.msra.mxu0 %v3990
      %4052 = vmatprep.subr.mxu0 %v3949
      %4053 = vmatpush1.msra.mxu0 %v3948
      %4054 = vmatprep.subr.mxu0 %v3933
      %4055 = vmatpush1.msra.mxu0 %v3932
      %4056 = vmatprep.subr.mxu0 %v3965
      %4057 = vmatpush1.msra.mxu0 %v3964
      %4058 = vmatprep.subr.mxu0 %v3983
      %4059 = vmatpush1.msra.mxu0 %v3984
      %4060 = vmatprep.subr.mxu0 %v3977
      %4061 = vmatpush1.msra.mxu0 %v3978
      %4062 = vmatprep.subr.mxu0 %v3971
      %4063 = vmatpush1.msra.mxu0 %v3972
      %4064 = vmatprep.subr.mxu0 0.0
      %4065 = vmatpush2.msra.mxu0 0.0
      %4066 = vmatprep.subr.mxu0 0.0
      %4067 = vmatpush2.msra.mxu0 0.0
      %4068 = vmatprep.subr.mxu0 0.0
      %4069 = vmatpush2.msra.mxu0 0.0
      %4070 = vmatprep.subr.mxu0 0.0
      %4071 = vmatpush2.msra.mxu0 0.0
      %4072 = vmatprep.subr.mxu0 0.0
      %4073 = vmatpush2.msra.mxu0 0.0
      %4074 = vmatprep.subr.mxu0 0.0
      %4075 = vmatpush2.msra.mxu0 0.0
      %4076 = vmatprep.subr.mxu0 0.0
      %4077 = vmatpush2.msra.mxu0 0.0
      %4078 = vmatprep.subr.mxu0 0.0
      %4079 = vmatpush2.msra.mxu0 0.0
      %4080 = vmatprep.subr.mxu0 0.0
      %4081 = vmatpush2.msra.mxu0 0.0
      %4082 = vmatprep.subr.mxu0 0.0
      %4083 = vmatpush2.msra.mxu0 0.0
      %4084 = vmatprep.subr.mxu0 0.0
      %4085 = vmatpush2.msra.mxu0 0.0
      %4086 = vmatprep.subr.mxu0 0.0
      %4087 = vmatpush2.msra.mxu0 0.0
      %4088 = vmatprep.subr.mxu0 0.0
      %4089 = vmatpush2.msra.mxu0 0.0
      %4090 = vmatprep.subr.mxu0 0.0
      %4091 = vmatpush2.msra.mxu0 0.0
      %4092 = vmatprep.subr.mxu0 0.0
      %4093 = vmatpush2.msra.mxu0 0.0
      %4094 = vmatprep.subr.mxu0 0.0
      %4095 = vmatpush2.msra.mxu0 0.0
      %4096 = vmatprep.mubr.f32.mxu0 0.0
      %4097 = vmatmul.mubr.f32.gmra.mxu0 %v4006
      %v4098 = vpop.f32.mrf.mxu0
      %v4099 = vadd.f32 0.0, %v4098
      %v4100 = vpop.f32.mrf.mxu0
      %v4101 = vadd.f32 0.0, %v4100
      %4102 = vmatprep.mubr.f32.mxu0 0.0
      %4103 = vmatmul.mubr.f32.gmra.mxu0 %v4009
      %v4104 = vpop.f32.mrf.mxu0
      %v4105 = vadd.f32 0.0, %v4104
      %v4106 = vpop.f32.mrf.mxu0
      %v4107 = vadd.f32 0.0, %v4106
      %4108 = vmatprep.mubr.f32.mxu0 0.0
      %4109 = vmatmul.mubr.f32.gmra.mxu0 %v4012
      %v4110 = vpop.f32.mrf.mxu0
      %v4111 = vadd.f32 0.0, %v4110
      %v4112 = vpop.f32.mrf.mxu0
      %v4113 = vadd.f32 0.0, %v4112
      %4114 = vmatprep.mubr.f32.mxu0 0.0
      %4115 = vmatmul.mubr.f32.gmra.mxu0 %v4015
      %v4116 = vpop.f32.mrf.mxu0
      %v4117 = vadd.f32 0.0, %v4116
      %v4118 = vpop.f32.mrf.mxu0
      %v4119 = vadd.f32 0.0, %v4118
      %4120 = vmatprep.mubr.f32.mxu0 0.0
      %4121 = vmatmul.mubr.f32.gmra.mxu0 %v4018
      %v4122 = vpop.f32.mrf.mxu0
      %v4123 = vadd.f32 0.0, %v4122
      %v4124 = vpop.f32.mrf.mxu0
      %v4125 = vadd.f32 0.0, %v4124
      %4126 = vmatprep.mubr.f32.mxu0 0.0
      %4127 = vmatmul.mubr.f32.gmra.mxu0 %v4021
      %v4128 = vpop.f32.mrf.mxu0
      %v4129 = vadd.f32 0.0, %v4128
      %v4130 = vpop.f32.mrf.mxu0
      %v4131 = vadd.f32 0.0, %v4130
      %4132 = vmatprep.mubr.f32.mxu0 0.0
      %4133 = vmatmul.mubr.f32.gmra.mxu0 %v4024
      %v4134 = vpop.f32.mrf.mxu0
      %v4135 = vadd.f32 0.0, %v4134
      %v4136 = vpop.f32.mrf.mxu0
      %v4137 = vadd.f32 0.0, %v4136
      %4138 = vmatprep.mubr.f32.mxu0 0.0
      %4139 = vmatmul.mubr.f32.gmra.mxu0 %v4027
      %v4140 = vpop.f32.mrf.mxu0
      %v4141 = vadd.f32 0.0, %v4140
      %v4142 = vpop.f32.mrf.mxu0
      %v4143 = vadd.f32 0.0, %v4142
      %4144 = vmatprep.mubr.f32.mxu0 0.0
      %4145 = vmatmul.mubr.f32.gmra.mxu0 %v4030
      %v4146 = vpop.f32.mrf.mxu0
      %v4147 = vadd.f32 0.0, %v4146
      %v4148 = vpop.f32.mrf.mxu0
      %v4149 = vadd.f32 0.0, %v4148
      %4150 = vdwg.mxu0
      %v4151 = vadd.f32 %v4099, %v81
      %v4152 = vadd.f32 %v4101, %v81
      %v4153 = vadd.f32 %v4105, %v86
      %v4154 = vadd.f32 %v4107, %v86
      %v4155 = vadd.f32 %v4111, %v91
      %v4156 = vadd.f32 %v4113, %v91
      %v4157 = vadd.f32 %v4117, %v96
      %v4158 = vadd.f32 %v4119, %v96
      %v4159 = vadd.f32 %v4123, %v101
      %v4160 = vadd.f32 %v4125, %v101
      %v4161 = vadd.f32 %v4129, %v106
      %v4162 = vadd.f32 %v4131, %v106
      %v4163 = vadd.f32 %v4135, %v111
      %v4164 = vadd.f32 %v4137, %v111
      %v4165 = vadd.f32 %v4141, %v116
      %v4166 = vadd.f32 %v4143, %v116
      %v4167 = vtanh.pop %v4151
      %v4168 = vtanh.pop %v4152
      %v4169 = vtanh.pop %v4153
      %v4170 = vtanh.pop %v4154
      %v4171 = vtanh.pop %v4155
      %v4172 = vtanh.pop %v4156
      %v4173 = vtanh.pop %v4157
      %v4174 = vtanh.pop %v4158
      %v4175 = vtanh.pop %v4159
      %v4176 = vtanh.pop %v4160
      %v4177 = vtanh.pop %v4161
      %v4178 = vtanh.pop %v4162
      %v4179 = vtanh.pop %v4163
      %v4180 = vtanh.pop %v4164
      %v4181 = vtanh.pop %v4165
      %v4182 = vtanh.pop %v4166
      %vm4183 = vcmask 523264
      %v4185 = vsel %vm4183, %v61, 0
      %v4188 = vsel %vm4183, %v62, 0
      %v4191 = vsel %vm4183, %v63, 0
      %v4194 = vsel %vm4183, %v64, 0
      %v4197 = vsel %vm4183, %v65, 0
      %v4200 = vsel %vm4183, %v66, 0
      %v4203 = vsel %vm4183, %v67, 0
      %v4206 = vsel %vm4183, %v68, 0
      %v4209 = vsel %vm4183, %v69, 0
      %4211 = vmatprep.subr.mxu0 0.0
      %4212 = vmatpush1.msra.mxu0 0.0
      %4213 = vmatprep.subr.mxu0 0.0
      %4214 = vmatpush1.msra.mxu0 0.0
      %4215 = vmatprep.subr.mxu0 0.0
      %4216 = vmatpush1.msra.mxu0 0.0
      %4217 = vmatprep.subr.mxu0 0.0
      %4218 = vmatpush1.msra.mxu0 0.0
      %4219 = vmatprep.subr.mxu0 0.0
      %4220 = vmatpush1.msra.mxu0 0.0
      %4221 = vmatprep.subr.mxu0 0.0
      %4222 = vmatpush1.msra.mxu0 0.0
      %4223 = vmatprep.subr.mxu0 0.0
      %4224 = vmatpush1.msra.mxu0 0.0
      %4225 = vmatprep.subr.mxu0 0.0
      %4226 = vmatpush1.msra.mxu0 0.0
      %4227 = vmatprep.subr.mxu0 %v4182
      %4228 = vmatpush1.msra.mxu0 %v4181
      %4229 = vmatprep.subr.mxu0 %v4180
      %4230 = vmatpush1.msra.mxu0 %v4179
      %4231 = vmatprep.subr.mxu0 %v4178
      %4232 = vmatpush1.msra.mxu0 %v4177
      %4233 = vmatprep.subr.mxu0 %v4176
      %4234 = vmatpush1.msra.mxu0 %v4175
      %4235 = vmatprep.subr.mxu0 %v4174
      %4236 = vmatpush1.msra.mxu0 %v4173
      %4237 = vmatprep.subr.mxu0 %v4172
      %4238 = vmatpush1.msra.mxu0 %v4171
      %4239 = vmatprep.subr.mxu0 %v4170
      %4240 = vmatpush1.msra.mxu0 %v4169
      %4241 = vmatprep.subr.mxu0 %v4168
      %4242 = vmatpush1.msra.mxu0 %v4167
      %4243 = vmatprep.subr.mxu0 0.0
      %4244 = vmatpush2.msra.mxu0 0.0
      %4245 = vmatprep.subr.mxu0 0.0
      %4246 = vmatpush2.msra.mxu0 0.0
      %4247 = vmatprep.subr.mxu0 0.0
      %4248 = vmatpush2.msra.mxu0 0.0
      %4249 = vmatprep.subr.mxu0 0.0
      %4250 = vmatpush2.msra.mxu0 0.0
      %4251 = vmatprep.subr.mxu0 0.0
      %4252 = vmatpush2.msra.mxu0 0.0
      %4253 = vmatprep.subr.mxu0 0.0
      %4254 = vmatpush2.msra.mxu0 0.0
      %4255 = vmatprep.subr.mxu0 0.0
      %4256 = vmatpush2.msra.mxu0 0.0
      %4257 = vmatprep.subr.mxu0 0.0
      %4258 = vmatpush2.msra.mxu0 0.0
      %4259 = vmatprep.subr.mxu0 0.0
      %4260 = vmatpush2.msra.mxu0 0.0
      %4261 = vmatprep.subr.mxu0 0.0
      %4262 = vmatpush2.msra.mxu0 0.0
      %4263 = vmatprep.subr.mxu0 0.0
      %4264 = vmatpush2.msra.mxu0 0.0
      %4265 = vmatprep.subr.mxu0 0.0
      %4266 = vmatpush2.msra.mxu0 0.0
      %4267 = vmatprep.subr.mxu0 0.0
      %4268 = vmatpush2.msra.mxu0 0.0
      %4269 = vmatprep.subr.mxu0 0.0
      %4270 = vmatpush2.msra.mxu0 0.0
      %4271 = vmatprep.subr.mxu0 0.0
      %4272 = vmatpush2.msra.mxu0 0.0
      %4273 = vmatprep.subr.mxu0 0.0
      %4274 = vmatpush2.msra.mxu0 0.0
      %4275 = vmatprep.mubr.f32.mxu0 0.0
      %4276 = vmatmul.mubr.f32.gmra.mxu0 %v4185
      %v4277 = vpop.f32.mrf.mxu0
      %v4278 = vadd.f32 0.0, %v4277
      %v4279 = vpop.f32.mrf.mxu0
      %v4280 = vadd.f32 0.0, %v4279
      %4281 = vmatprep.mubr.f32.mxu0 0.0
      %4282 = vmatmul.mubr.f32.gmra.mxu0 %v4188
      %v4283 = vpop.f32.mrf.mxu0
      %v4284 = vadd.f32 0.0, %v4283
      %v4285 = vpop.f32.mrf.mxu0
      %v4286 = vadd.f32 0.0, %v4285
      %4287 = vmatprep.mubr.f32.mxu0 0.0
      %4288 = vmatmul.mubr.f32.gmra.mxu0 %v4191
      %v4289 = vpop.f32.mrf.mxu0
      %v4290 = vadd.f32 0.0, %v4289
      %v4291 = vpop.f32.mrf.mxu0
      %v4292 = vadd.f32 0.0, %v4291
      %4293 = vmatprep.mubr.f32.mxu0 0.0
      %4294 = vmatmul.mubr.f32.gmra.mxu0 %v4194
      %v4295 = vpop.f32.mrf.mxu0
      %v4296 = vadd.f32 0.0, %v4295
      %v4297 = vpop.f32.mrf.mxu0
      %v4298 = vadd.f32 0.0, %v4297
      %4299 = vmatprep.mubr.f32.mxu0 0.0
      %4300 = vmatmul.mubr.f32.gmra.mxu0 %v4197
      %v4301 = vpop.f32.mrf.mxu0
      %v4302 = vadd.f32 0.0, %v4301
      %v4303 = vpop.f32.mrf.mxu0
      %v4304 = vadd.f32 0.0, %v4303
      %4305 = vmatprep.mubr.f32.mxu0 0.0
      %4306 = vmatmul.mubr.f32.gmra.mxu0 %v4200
      %v4307 = vpop.f32.mrf.mxu0
      %v4308 = vadd.f32 0.0, %v4307
      %v4309 = vpop.f32.mrf.mxu0
      %v4310 = vadd.f32 0.0, %v4309
      %4311 = vmatprep.mubr.f32.mxu0 0.0
      %4312 = vmatmul.mubr.f32.gmra.mxu0 %v4203
      %v4313 = vpop.f32.mrf.mxu0
      %v4314 = vadd.f32 0.0, %v4313
      %v4315 = vpop.f32.mrf.mxu0
      %v4316 = vadd.f32 0.0, %v4315
      %4317 = vmatprep.mubr.f32.mxu0 0.0
      %4318 = vmatmul.mubr.f32.gmra.mxu0 %v4206
      %v4319 = vpop.f32.mrf.mxu0
      %v4320 = vadd.f32 0.0, %v4319
      %v4321 = vpop.f32.mrf.mxu0
      %v4322 = vadd.f32 0.0, %v4321
      %4323 = vmatprep.mubr.f32.mxu0 0.0
      %4324 = vmatmul.mubr.f32.gmra.mxu0 %v4209
      %v4325 = vpop.f32.mrf.mxu0
      %v4326 = vadd.f32 0.0, %v4325
      %v4327 = vpop.f32.mrf.mxu0
      %v4328 = vadd.f32 0.0, %v4327
      %4329 = vdwg.mxu0
      %4330 = vrot.lane.b32.xlu0 %v4278, 1
      %v4331 = vpop.permute.xlu0 %4330
      %4332 = vrot.lane.b32.xlu0 %v4280, 1
      %v4333 = vpop.permute.xlu0 %4332
      %v4334 = vsel %vm3961, %v4331, %v4333
      %v4335 = vsel %vm3961, %v4333, %v4331
      %4336 = vrot.lane.b32.xlu0 %v4278, 17
      %v4337 = vpop.permute.xlu0 %4336
      %4338 = vrot.lane.b32.xlu0 %v4280, 17
      %v4339 = vpop.permute.xlu0 %4338
      %vm4340 = vcmp.lt.s32.totalorder %v22, 17
      %v4341 = vsel %vm4340, %v4337, %v4339
      %v4342 = vsel %vm4340, %v4339, %v4337
      %v4343 = vsel %vm48, %v4335, %v4342
      %v4344 = vsel %vm49, %v4334, %v4341
      %v4345 = vadd.f32 %v122, %v4343
      %v4346 = vadd.f32 %v122, %v4344
      %4347 = vrot.lane.b32.xlu0 %v4284, 16
      %v4348 = vpop.permute.xlu0 %4347
      %4349 = vrot.lane.b32.xlu0 %v4286, 16
      %v4350 = vpop.permute.xlu0 %4349
      %v4351 = vsel %vm3970, %v4348, %v4350
      %v4352 = vsel %vm3970, %v4350, %v4348
      %v4353 = vadd.f32 %v4345, %v4352
      %v4354 = vadd.f32 %v4346, %v4351
      %4355 = vrot.lane.b32.xlu0 %v4290, 31
      %v4356 = vpop.permute.xlu0 %4355
      %4357 = vrot.lane.b32.xlu0 %v4292, 31
      %v4358 = vpop.permute.xlu0 %4357
      %vm4359 = vcmp.lt.s32.totalorder %v22, 31
      %v4360 = vsel %vm4359, %v4356, %v4358
      %v4361 = vsel %vm4359, %v4358, %v4356
      %4362 = vrot.lane.b32.xlu0 %v4290, 15
      %v4363 = vpop.permute.xlu0 %4362
      %4364 = vrot.lane.b32.xlu0 %v4292, 15
      %v4365 = vpop.permute.xlu0 %4364
      %v4366 = vsel %vm3938, %v4363, %v4365
      %v4367 = vsel %vm3938, %v4365, %v4363
      %v4368 = vsel %vm50, %v4361, %v4367
      %v4369 = vsel %vm51, %v4360, %v4366
      %v4370 = vadd.f32 %v4353, %v4368
      %v4371 = vadd.f32 %v4354, %v4369
      %4372 = vrot.lane.b32.xlu0 %v4296, 113
      %v4373 = vpop.permute.xlu0 %4372
      %4374 = vrot.lane.b32.xlu0 %v4298, 113
      %v4375 = vpop.permute.xlu0 %4374
      %v4376 = vsel %vm3954, %v4373, %v4375
      %v4377 = vsel %vm3954, %v4375, %v4373
      %4378 = vrot.lane.b32.xlu0 %v4296, 1
      %v4379 = vpop.permute.xlu0 %4378
      %4380 = vrot.lane.b32.xlu0 %v4298, 1
      %v4381 = vpop.permute.xlu0 %4380
      %v4382 = vsel %vm3961, %v4379, %v4381
      %v4383 = vsel %vm3961, %v4381, %v4379
      %v4384 = vsel %vm48, %v4376, %v4383
      %v4385 = vsel %vm49, %v4377, %v4382
      %v4386 = vadd.f32 %v4370, %v4384
      %v4387 = vadd.f32 %v4371, %v4385
      %v4388 = vadd.f32 %v4386, %v4302
      %v4389 = vadd.f32 %v4387, %v4304
      %4390 = vrot.lane.b32.xlu0 %v4308, 15
      %v4391 = vpop.permute.xlu0 %4390
      %4392 = vrot.lane.b32.xlu0 %v4310, 15
      %v4393 = vpop.permute.xlu0 %4392
      %v4394 = vsel %vm3938, %v4391, %v4393
      %v4395 = vsel %vm3938, %v4393, %v4391
      %4396 = vrot.lane.b32.xlu0 %v4308, 127
      %v4397 = vpop.permute.xlu0 %4396
      %4398 = vrot.lane.b32.xlu0 %v4310, 127
      %v4399 = vpop.permute.xlu0 %4398
      %v4400 = vsel %vm3945, %v4397, %v4399
      %v4401 = vsel %vm3945, %v4399, %v4397
      %v4402 = vsel %vm50, %v4395, %v4400
      %v4403 = vsel %vm51, %v4394, %v4401
      %v4404 = vadd.f32 %v4388, %v4402
      %v4405 = vadd.f32 %v4389, %v4403
      %4406 = vrot.lane.b32.xlu0 %v4314, 97
      %v4407 = vpop.permute.xlu0 %4406
      %4408 = vrot.lane.b32.xlu0 %v4316, 97
      %v4409 = vpop.permute.xlu0 %4408
      %vm4410 = vcmp.lt.s32.totalorder %v22, 97
      %v4411 = vsel %vm4410, %v4407, %v4409
      %v4412 = vsel %vm4410, %v4409, %v4407
      %4413 = vrot.lane.b32.xlu0 %v4314, 113
      %v4414 = vpop.permute.xlu0 %4413
      %4415 = vrot.lane.b32.xlu0 %v4316, 113
      %v4416 = vpop.permute.xlu0 %4415
      %v4417 = vsel %vm3954, %v4414, %v4416
      %v4418 = vsel %vm3954, %v4416, %v4414
      %v4419 = vsel %vm48, %v4411, %v4417
      %v4420 = vsel %vm49, %v4412, %v4418
      %v4421 = vadd.f32 %v4404, %v4419
      %v4422 = vadd.f32 %v4405, %v4420
      %4423 = vrot.lane.b32.xlu0 %v4320, 112
      %v4424 = vpop.permute.xlu0 %4423
      %4425 = vrot.lane.b32.xlu0 %v4322, 112
      %v4426 = vpop.permute.xlu0 %4425
      %v4427 = vsel %vm3989, %v4424, %v4426
      %v4428 = vsel %vm3989, %v4426, %v4424
      %v4429 = vadd.f32 %v4421, %v4427
      %v4430 = vadd.f32 %v4422, %v4428
      %4431 = vrot.lane.b32.xlu0 %v4326, 127
      %v4432 = vpop.permute.xlu0 %4431
      %4433 = vrot.lane.b32.xlu0 %v4328, 127
      %v4434 = vpop.permute.xlu0 %4433
      %v4435 = vsel %vm3945, %v4432, %v4434
      %v4436 = vsel %vm3945, %v4434, %v4432
      %4437 = vrot.lane.b32.xlu0 %v4326, 111
      %v4438 = vpop.permute.xlu0 %4437
      %4439 = vrot.lane.b32.xlu0 %v4328, 111
      %v4440 = vpop.permute.xlu0 %4439
      %vm4441 = vcmp.lt.s32.totalorder %v22, 111
      %v4442 = vsel %vm4441, %v4438, %v4440
      %v4443 = vsel %vm4441, %v4440, %v4438
      %v4444 = vsel %vm50, %v4435, %v4442
      %v4445 = vsel %vm51, %v4436, %v4443
      %v4446 = vadd.f32 %v4429, %v4444
      %v4447 = vadd.f32 %v4430, %v4445
      %v4448 = vadd.f32 %v4147, %v4446
      %v4449 = vadd.f32 %v4149, %v4447
      %v4450 = vadd.f32 %v3932, %v4448
      %v4451 = vadd.f32 %v3933, %v4449
      %4452 = vst [vmem:[#allocation2] sm:$0xff] %v4450
      %4453 = vst [vmem:[#allocation2 + $0x8] sm:$0xff] %v4451
    $region85: #{tpu_custom_call.1} parent=1 // pred_fallthru
      _
    %v4454 = vld [vmem:[#allocation2] sm:$0xff]
    %v4455 = vld [vmem:[#allocation2 + $0x8] sm:$0xff]
    %s4456 = scalar_lea.vmem [#allocation3], 112
    %4457 = vst [vmem:[%s4456] sm:$0xff] %v4454
    %4458 = vst [vmem:[%s4456 + $0x8] sm:$0xff] %v4455
    // Predicated region
    $region86: #{tpu_custom_call.1} parent=1 // pred_check
      _
    $region87: #{tpu_custom_call.1} parent=1 // pred_check_branch
      %4460 = sbr.rel (0) target = $region89
    $region88: #{tpu_custom_call.1} parent=1 // pred_region
      %s4462 = ssub.s32 2048, 2048
      %4463 = vsyncadd [#allocation4], %s4462
      %s4464 = sshll.u32 [#allocation3], 4
      %s4465 = int_to_ptr.vmem [resolvable:$true] %s4464
      %4470 = dma.vmem_to_hbm [thread:$0]  %s4465, 2048, %s5, [#allocation4], 256, 256, 16
    $region89: #{tpu_custom_call.1} parent=1 // pred_fallthru
      _
    // Predicated region
    $region90: #{tpu_custom_call.1} parent=1 // pred_check
      _
    $region91: #{tpu_custom_call.1} parent=1 // pred_check_branch
      %4472 = sbr.rel (0) target = $region93
    $region92: #{tpu_custom_call.1} parent=1 // pred_region
      %4473 = dma.done [#allocation4], 2048
    $region93: #{tpu_custom_call.1} parent=1 // pred_fallthru
      _
    %4474 = vsyncpa [#allocation4], 1

</llo_original>
